<compile_context>
chip_gen: v7x
topology: tpu7x:2x2x1
jax: 0.10.0
libtpu: 0.0.40
codegen_flags: <defaults>
</compile_context>

<pallas_src>
import functools

import jax
import jax.numpy as jnp
from jax.experimental import pallas as pl
from jax.experimental.pallas import tpu as pltpu

HIDDEN = 256
_ALIGN = 256  # batch-tile alignment: full MXU pass height on v6e/v7x


def _softq_kernel(x_ref, w1_ref, b1_ref, w2_ref, b2_ref, w3_ref, b3_ref, o_ref):
    # Layer 1: (block_b, S+A) @ (S+A, 256) on the MXU, bf16 operands, f32 acc.
    h1 = jnp.dot(x_ref[...], w1_ref[...],
                 preferred_element_type=jnp.float32) + b1_ref[...]
    h1 = jnp.maximum(h1, 0.0)

    # Layer 2: (block_b, 256) @ (256, 256), bf16 operands, f32 accumulation.
    h2 = jnp.dot(h1.astype(jnp.bfloat16), w2_ref[...],
                 preferred_element_type=jnp.float32) + b2_ref[...]
    h2 = jnp.maximum(h2, 0.0)

    # Output head (256 -> 1): VPU multiply + lane reduction (XLU slot is idle,
    # so this is free filler) instead of a degenerate 1-column MXU matmul.
    q = jnp.sum(h2 * w3_ref[...], axis=-1)           # (block_b,), f32
    q = q + b3_ref[0]                                 # scalar bias from SMEM
    # Store lane-dense: one (1, block_b) row per grid step.
    o_ref[...] = q[None, :].astype(o_ref.dtype)


def _batch_tiling(batch, block_b):
    """Pick (block, padded_batch).

    block is a multiple of 256 (full MXU pass height on v6e/v7x, a multiple of
    128 for v5e).  Whenever the padded batch is >= 512 we keep >= 2 blocks so
    the 'parallel' grid axis shards across both v7x TensorCores (near-free on
    single-TC v5e/v6e: one extra ~0.35 us step).
    """
    b_min = _ALIGN * pl.cdiv(batch, _ALIGN)           # batch rounded up to 256
    blk = min(block_b, b_min)
    blk = _ALIGN * max(1, blk // _ALIGN)              # multiple of 256
    if b_min >= 2 * _ALIGN:
        half = _ALIGN * max(1, pl.cdiv(b_min, 2) // _ALIGN)
        blk = min(blk, half)                          # guarantee >= 2 blocks
    n_blocks = pl.cdiv(b_min, blk)
    return blk, blk * n_blocks


@functools.partial(jax.jit, static_argnames=("block_b",))
def softq_forward(state, action, params, *, block_b=512):
    """Pallas forward for SoftQNet. state: (B, S), action: (B, A) -> (B, 1)."""
    w1, b1, w2, b2, w3_row, b3 = params
    B = state.shape[0]

    # Fuse the concat here (negligible bytes) so layer 1 is a single matmul.
    # MXU operands are bf16; accumulation and all elementwise math stay f32.
    x = jnp.concatenate([state, action], axis=1).astype(jnp.bfloat16)
    w1 = w1.astype(jnp.bfloat16)
    w2 = w2.astype(jnp.bfloat16)
    feat = x.shape[1]

    blk, b_pad = _batch_tiling(B, block_b)
    if b_pad != B:
        x = jnp.pad(x, ((0, b_pad - B), (0, 0)))

    grid = (b_pad // blk,)
    rep = lambda i: (0, 0)   # weights/biases: same (resident) block every step

    q_row = pl.pallas_call(
        _softq_kernel,
        out_shape=jax.ShapeDtypeStruct((1, b_pad), jnp.float32),
        grid_spec=pltpu.PrefetchScalarGridSpec(
            num_scalar_prefetch=0,
            grid=grid,
            in_specs=[
                pl.BlockSpec((blk, feat), lambda i: (i, 0)),        # x tile (bf16)
                pl.BlockSpec((feat, HIDDEN), rep),                  # W1 (bf16)
                pl.BlockSpec((1, HIDDEN), rep),                     # b1 (f32)
                pl.BlockSpec((HIDDEN, HIDDEN), rep),                # W2 (bf16)
                pl.BlockSpec((1, HIDDEN), rep),                     # b2 (f32)
                pl.BlockSpec((1, HIDDEN), rep),                     # W3 row (f32)
                pl.BlockSpec(memory_space=pltpu.MemorySpace.SMEM),  # b3 scalar
            ],
            # Lane-dense output: (1, blk) row per step.
            out_specs=pl.BlockSpec((1, blk), lambda i: (0, i)),
        ),
        compiler_params=pltpu.CompilerParams(
            dimension_semantics=("parallel",)),
    )(x, w1, b1, w2, b2, w3_row, b3)

    # Back to the PyTorch-shaped (B, 1) result, dropping the batch padding.
    return q_row[0, :B].reshape(B, 1)


def init_softq_params(key, state_dim, action_dim, edge=0.003):
    """Deterministic init mirroring nn.Linear defaults + uniform(-edge, edge) head."""
    in_dim = state_dim + action_dim
    k1w, k1b, k2w, k2b, k3w, k3b = jax.random.split(key, 6)

    def uni(k, shape, bound):
        return jax.random.uniform(k, shape, jnp.float32, -bound, bound)

    bound1 = 1.0 / jnp.sqrt(in_dim)
    bound2 = 1.0 / jnp.sqrt(HIDDEN)

    # Weights stored as (in_features, out_features) for `x @ W`.
    w1 = uni(k1w, (in_dim, HIDDEN), bound1)
    b1 = uni(k1b, (1, HIDDEN), bound1)
    w2 = uni(k2w, (HIDDEN, HIDDEN), bound2)
    b2 = uni(k2b, (1, HIDDEN), bound2)
    w3_row = uni(k3w, (1, HIDDEN), edge)   # linear3.weight.uniform_(-edge, edge)
    b3 = uni(k3b, (1,), edge)              # linear3.bias.uniform_(-edge, edge)
    return (w1, b1, w2, b2, w3_row, b3)


def softq_reference_f32(state, action, params):
    """Pure f32 reference matching the PyTorch module exactly."""
    w1, b1, w2, b2, w3_row, b3 = params
    x = jnp.concatenate([state, action], axis=1)
    h = jax.nn.relu(x @ w1 + b1)
    h = jax.nn.relu(h @ w2 + b2)
    return h @ w3_row.T + b3


def softq_reference_bf16(state, action, params):
    """Reference mirroring kernel numerics: bf16 MXU operands, f32 elsewhere."""
    w1, b1, w2, b2, w3_row, b3 = params
    x = jnp.concatenate([state, action], axis=1).astype(jnp.bfloat16)
    h = jnp.dot(x, w1.astype(jnp.bfloat16),
                preferred_element_type=jnp.float32) + b1
    h = jnp.maximum(h, 0.0)
    h = jnp.dot(h.astype(jnp.bfloat16), w2.astype(jnp.bfloat16),
                preferred_element_type=jnp.float32) + b2
    h = jnp.maximum(h, 0.0)
    return jnp.sum(h * w3_row, axis=-1, keepdims=True) + b3


if __name__ == "__main__":
    key = jax.random.PRNGKey(0)
    k_param, k_state, k_action, k_state2, k_action2 = jax.random.split(key, 5)

    state_dim, action_dim = 12, 4
    params = init_softq_params(k_param, state_dim, action_dim, edge=0.003)

    # --- small-batch check (single grid block) ---
    batch = 8
    state = jax.random.normal(k_state, (batch, state_dim), jnp.float32)
    action = jax.random.normal(k_action, (batch, action_dim), jnp.float32)

    q = jax.block_until_ready(softq_forward(state, action, params))
    assert q.shape == (batch, 1)
    q_bf = softq_reference_bf16(state, action, params)
    q_f32 = softq_reference_f32(state, action, params)
    assert jnp.allclose(q, q_bf, atol=1e-3, rtol=1e-3), "mismatch vs bf16-matched ref"
    assert jnp.allclose(q, q_f32, atol=2e-2, rtol=2e-2), "mismatch vs f32 ref"

    # --- larger ragged batch: exercises padding + the >=2-block (dual-TC) path ---
    batch2 = 300
    state2 = jax.random.normal(k_state2, (batch2, state_dim), jnp.float32)
    action2 = jax.random.normal(k_action2, (batch2, action_dim), jnp.float32)

    q2 = jax.block_until_ready(softq_forward(state2, action2, params))
    assert q2.shape == (batch2, 1)
    q2_bf = softq_reference_bf16(state2, action2, params)
    assert jnp.allclose(q2, q2_bf, atol=1e-3, rtol=1e-3), "mismatch (multi-block)"

    print("KERNEL_OK")
</pallas_src>

<mosaic_0001>
module attributes {stable_mosaic.version = 11 : i64} {
  func.func @_softq_kernel(%arg0: i32, %arg1: memref<256x16xbf16, #tpu.memory_space<vmem>>, %arg2: memref<16x256xbf16, #tpu.memory_space<vmem>>, %arg3: memref<1x256xf32, #tpu.memory_space<vmem>>, %arg4: memref<256x256xbf16, #tpu.memory_space<vmem>>, %arg5: memref<1x256xf32, #tpu.memory_space<vmem>>, %arg6: memref<1x256xf32, #tpu.memory_space<vmem>>, %arg7: memref<1xf32, #tpu.memory_space<smem>>, %arg8: memref<1x256xf32, #tpu.memory_space<vmem>>) attributes {dimension_semantics = [#tpu.dimension_semantics<parallel>], iteration_bounds = array<i64: 1>, scalar_prefetch = 0 : i64, scratch_operands = 0 : i64, tpu.core_type = #tpu.core_type<tc>, window_params = [{transform_indices = @transform_0, window_bounds = array<i64: 256, 16>}, {pipeline_mode = #tpu.pipeline_mode<synchronous>, transform_indices = @transform_1, window_bounds = array<i64: 16, 256>}, {pipeline_mode = #tpu.pipeline_mode<synchronous>, transform_indices = @transform_2, window_bounds = array<i64: 1, 256>}, {pipeline_mode = #tpu.pipeline_mode<synchronous>, transform_indices = @transform_3, window_bounds = array<i64: 256, 256>}, {pipeline_mode = #tpu.pipeline_mode<synchronous>, transform_indices = @transform_4, window_bounds = array<i64: 1, 256>}, {pipeline_mode = #tpu.pipeline_mode<synchronous>, transform_indices = @transform_5, window_bounds = array<i64: 1, 256>}, {transform_indices = @transform_6, window_bounds = array<i64: 1>}, {transform_indices = @transform_7, window_bounds = array<i64: 1, 256>}]} {
    %c0 = arith.constant 0 : index
    %c0_0 = arith.constant 0 : index
    %0 = vector.load %arg1[%c0, %c0_0] : memref<256x16xbf16, #tpu.memory_space<vmem>>, vector<256x16xbf16>
    %c0_1 = arith.constant 0 : index
    %c0_2 = arith.constant 0 : index
    %1 = vector.load %arg2[%c0_1, %c0_2] : memref<16x256xbf16, #tpu.memory_space<vmem>>, vector<16x256xbf16>
    %cst = arith.constant dense<0.000000e+00> : vector<256x256xf32>
    %2 = tpu.matmul %0, %1, %cst {dimension_numbers = #tpu.dot_dimension_numbers<[1], [0], [0], [1], [0, 0, 1, 1], [], []>} : vector<256x16xbf16>, vector<16x256xbf16>, vector<256x256xf32> -> vector<256x256xf32>
    %c0_3 = arith.constant 0 : index
    %c0_4 = arith.constant 0 : index
    %3 = vector.load %arg3[%c0_3, %c0_4] : memref<1x256xf32, #tpu.memory_space<vmem>>, vector<1x256xf32>
    %4 = vector.broadcast %3 : vector<1x256xf32> to vector<256x256xf32>
    %5 = arith.addf %2, %4 : vector<256x256xf32>
    %cst_5 = arith.constant 0.000000e+00 : f32
    %6 = vector.broadcast %cst_5 : f32 to vector<256x256xf32>
    %7 = arith.maximumf %5, %6 : vector<256x256xf32>
    %8 = arith.truncf %7 : vector<256x256xf32> to vector<256x256xbf16>
    %c0_6 = arith.constant 0 : index
    %c0_7 = arith.constant 0 : index
    %9 = vector.load %arg4[%c0_6, %c0_7] : memref<256x256xbf16, #tpu.memory_space<vmem>>, vector<256x256xbf16>
    %cst_8 = arith.constant dense<0.000000e+00> : vector<256x256xf32>
    %10 = tpu.matmul %8, %9, %cst_8 {dimension_numbers = #tpu.dot_dimension_numbers<[1], [0], [0], [1], [0, 0, 1, 1], [], []>} : vector<256x256xbf16>, vector<256x256xbf16>, vector<256x256xf32> -> vector<256x256xf32>
    %c0_9 = arith.constant 0 : index
    %c0_10 = arith.constant 0 : index
    %11 = vector.load %arg5[%c0_9, %c0_10] : memref<1x256xf32, #tpu.memory_space<vmem>>, vector<1x256xf32>
    %12 = vector.broadcast %11 : vector<1x256xf32> to vector<256x256xf32>
    %13 = arith.addf %10, %12 : vector<256x256xf32>
    %cst_11 = arith.constant 0.000000e+00 : f32
    %14 = vector.broadcast %cst_11 : f32 to vector<256x256xf32>
    %15 = arith.maximumf %13, %14 : vector<256x256xf32>
    %c0_12 = arith.constant 0 : index
    %c0_13 = arith.constant 0 : index
    %16 = vector.load %arg6[%c0_12, %c0_13] : memref<1x256xf32, #tpu.memory_space<vmem>>, vector<1x256xf32>
    %17 = vector.broadcast %16 : vector<1x256xf32> to vector<256x256xf32>
    %18 = arith.mulf %15, %17 : vector<256x256xf32>
    %cst_14 = arith.constant dense<0.000000e+00> : vector<256xf32>
    %19 = vector.multi_reduction <add>, %18, %cst_14 [1] : vector<256x256xf32> to vector<256xf32>
    %c0_15 = arith.constant 0 : index
    %20 = memref.load %arg7[%c0_15] : memref<1xf32, #tpu.memory_space<smem>>
    %21 = vector.broadcast %20 : f32 to vector<256xf32>
    %22 = arith.addf %19, %21 : vector<256xf32>
    %23 = vector.shape_cast %22 : vector<256xf32> to vector<1x256xf32>
    %c0_16 = arith.constant 0 : index
    %c0_17 = arith.constant 0 : index
    %24 = vector.load %arg8[%c0_16, %c0_17] : memref<1x256xf32, #tpu.memory_space<vmem>>, vector<1x256xf32>
    tpu.vector_store %arg8[%c0_16, %c0_17], %23 {strides = array<i32>} : memref<1x256xf32, #tpu.memory_space<vmem>>, vector<1x256xf32>,
    return
  }
  func.func @transform_0(%arg0: i32) -> (i32, i32) {
    %c0_i32 = arith.constant 0 : i32
    %c0_i32_0 = arith.constant 0 : i32
    return %arg0, %c0_i32 : i32, i32
  }
  func.func @transform_1(%arg0: i32) -> (i32, i32) {
    %c0_i32 = arith.constant 0 : i32
    %c0_i32_0 = arith.constant 0 : i32
    %c0_i32_1 = arith.constant 0 : i32
    return %c0_i32, %c0_i32_0 : i32, i32
  }
  func.func @transform_2(%arg0: i32) -> (i32, i32) {
    %c0_i32 = arith.constant 0 : i32
    %c0_i32_0 = arith.constant 0 : i32
    %c0_i32_1 = arith.constant 0 : i32
    return %c0_i32, %c0_i32_0 : i32, i32
  }
  func.func @transform_3(%arg0: i32) -> (i32, i32) {
    %c0_i32 = arith.constant 0 : i32
    %c0_i32_0 = arith.constant 0 : i32
    %c0_i32_1 = arith.constant 0 : i32
    return %c0_i32, %c0_i32_0 : i32, i32
  }
  func.func @transform_4(%arg0: i32) -> (i32, i32) {
    %c0_i32 = arith.constant 0 : i32
    %c0_i32_0 = arith.constant 0 : i32
    %c0_i32_1 = arith.constant 0 : i32
    return %c0_i32, %c0_i32_0 : i32, i32
  }
  func.func @transform_5(%arg0: i32) -> (i32, i32) {
    %c0_i32 = arith.constant 0 : i32
    %c0_i32_0 = arith.constant 0 : i32
    %c0_i32_1 = arith.constant 0 : i32
    return %c0_i32, %c0_i32_0 : i32, i32
  }
  func.func @transform_6(%arg0: i32) -> i32 {
    %c0_i32 = arith.constant 0 : i32
    %c0_i32_0 = arith.constant 0 : i32
    return %c0_i32 : i32
  }
  func.func @transform_7(%arg0: i32) -> (i32, i32) {
    %c0_i32 = arith.constant 0 : i32
    %c0_i32_0 = arith.constant 0 : i32
    return %c0_i32, %arg0 : i32, i32
  }
}

</mosaic_0001>

<llo_original>
// kernel: softq_forward.1
$region0: #{softq_forward.1}
  #allocation0 [shape = 'u32[]', space=smem, size = 0x4, offset = 0x4, fixed_abs, tag = 'smem constant byte address 0x4 - core index']
  #allocation1 [shape = 'u32[144,128]{1,0:T(1,128)}', space=vmem, size = 0x12000, scoped, tag = 'internal scratch']
  #allocation2 [shape = 'f32[1]{0:T(128)S(6)}', space=smem, size = 0x200, scoped, tag = 'scoped memory for softq_forward.1']
  %s0 = inlined_call_operand.vmem [shape: bf16[256,16], index: 0, kind: input, shape index: {}]
  %s1 = inlined_call_operand.vmem [shape: bf16[16,256], index: 1, kind: input, shape index: {}]
  %s2 = inlined_call_operand.vmem [shape: f32[1,256], index: 2, kind: input, shape index: {}]
  %s3 = inlined_call_operand.vmem [shape: bf16[256,256], index: 3, kind: input, shape index: {}]
  %s4 = inlined_call_operand.vmem [shape: f32[1,256], index: 4, kind: input, shape index: {}]
  %s5 = inlined_call_operand.vmem [shape: f32[1,256], index: 5, kind: input, shape index: {}]
  %s6 = inlined_call_operand.<no memory space> [shape: f32[1], index: 6, kind: input, shape index: {}]
  %s7 = inlined_call_operand.vmem [shape: f32[1,256], index: 7, kind: output, shape index: {}]
  %s8 = sld [smem:[#allocation0]]
  $region38: #{softq_forward.1} parent=0
    _
  %s10 = ssub.s32 1, %s8
  %s11 = scalar_select 0, %s10, %s8
  %12 = sst [smem:[#allocation2]] %s6
  // Predicated region
  $region2: #{softq_forward.1} parent=0 // pred_check
    _
  $region3: #{softq_forward.1} parent=0 // pred_check_branch
    %14 = sbr.rel (0) target = $region5
  $region4: #{softq_forward.1} parent=0 // pred_region
    _
  $region5: #{softq_forward.1} parent=0 // pred_fallthru
    _
  // Predicated region
  $region6: #{softq_forward.1} parent=0 // pred_check
    _
  $region7: #{softq_forward.1} parent=0 // pred_check_branch
    %16 = sbr.rel (0) target = $region9
  $region8: #{softq_forward.1} parent=0 // pred_region
    _
  $region9: #{softq_forward.1} parent=0 // pred_fallthru
    _
  // Predicated region
  $region10: #{softq_forward.1} parent=0 // pred_check
    _
  $region11: #{softq_forward.1} parent=0 // pred_check_branch
    %18 = sbr.rel (0) target = $region13
  $region12: #{softq_forward.1} parent=0 // pred_region
    _
  $region13: #{softq_forward.1} parent=0 // pred_fallthru
    _
  // Predicated region
  $region14: #{softq_forward.1} parent=0 // pred_check
    _
  $region15: #{softq_forward.1} parent=0 // pred_check_branch
    %20 = sbr.rel (0) target = $region17
  $region16: #{softq_forward.1} parent=0 // pred_region
    _
  $region17: #{softq_forward.1} parent=0 // pred_fallthru
    _
  // Predicated region
  $region18: #{softq_forward.1} parent=0 // pred_check
    _
  $region19: #{softq_forward.1} parent=0 // pred_check_branch
    %22 = sbr.rel (0) target = $region21
  $region20: #{softq_forward.1} parent=0 // pred_region
    _
  $region21: #{softq_forward.1} parent=0 // pred_fallthru
    _
  // Predicated region
  $region22: #{softq_forward.1} parent=0 // pred_check
    _
  $region23: #{softq_forward.1} parent=0 // pred_check_branch
    %24 = sbr.rel (0) target = $region25
  $region24: #{softq_forward.1} parent=0 // pred_region
    _
  $region25: #{softq_forward.1} parent=0 // pred_fallthru
    _
  // Predicated region
  $region26: #{softq_forward.1} parent=0 // pred_check
    _
  $region27: #{softq_forward.1} parent=0 // pred_check_branch
    %26 = sbr.rel (0) target = $region29
  $region28: #{softq_forward.1} parent=0 // pred_region
    _
  $region29: #{softq_forward.1} parent=0 // pred_fallthru
    _
  %v28 = vld [vmem:[%s0] sm:$0xf]
  %v29 = vld [vmem:[%s0 + $0x4] sm:$0xf]
  %v30 = vld [vmem:[%s0 + $0x8] sm:$0xf]
  %v31 = vld [vmem:[%s0 + $0xc] sm:$0xf]
  %v32 = vld [vmem:[%s0 + $0x10] sm:$0xf]
  %v33 = vld [vmem:[%s0 + $0x14] sm:$0xf]
  %v34 = vld [vmem:[%s0 + $0x18] sm:$0xf]
  %v35 = vld [vmem:[%s0 + $0x1c] sm:$0xf]
  %v36 = vld [vmem:[%s0 + $0x20] sm:$0xf]
  %v37 = vld [vmem:[%s0 + $0x24] sm:$0xf]
  %v38 = vld [vmem:[%s0 + $0x28] sm:$0xf]
  %v39 = vld [vmem:[%s0 + $0x2c] sm:$0xf]
  %v40 = vld [vmem:[%s0 + $0x30] sm:$0xf]
  %v41 = vld [vmem:[%s0 + $0x34] sm:$0xf]
  %v42 = vld [vmem:[%s0 + $0x38] sm:$0xf]
  %v43 = vld [vmem:[%s0 + $0x3c] sm:$0xf]
  %v44 = vld [vmem:[%s0 + $0x40] sm:$0xf]
  %v45 = vld [vmem:[%s0 + $0x44] sm:$0xf]
  %v46 = vld [vmem:[%s0 + $0x48] sm:$0xf]
  %v47 = vld [vmem:[%s0 + $0x4c] sm:$0xf]
  %v48 = vld [vmem:[%s0 + $0x50] sm:$0xf]
  %v49 = vld [vmem:[%s0 + $0x54] sm:$0xf]
  %v50 = vld [vmem:[%s0 + $0x58] sm:$0xf]
  %v51 = vld [vmem:[%s0 + $0x5c] sm:$0xf]
  %v52 = vld [vmem:[%s0 + $0x60] sm:$0xf]
  %v53 = vld [vmem:[%s0 + $0x64] sm:$0xf]
  %v54 = vld [vmem:[%s0 + $0x68] sm:$0xf]
  %v55 = vld [vmem:[%s0 + $0x6c] sm:$0xf]
  %v56 = vld [vmem:[%s0 + $0x70] sm:$0xf]
  %v57 = vld [vmem:[%s0 + $0x74] sm:$0xf]
  %v58 = vld [vmem:[%s0 + $0x78] sm:$0xf]
  %v59 = vld [vmem:[%s0 + $0x7c] sm:$0xf]
  %v60 = vld [vmem:[%s1] sm:$0xff]
  %v61 = vld [vmem:[%s1 + $0x8] sm:$0xff]
  %v62 = vld [vmem:[%s2] sm:$0x3]
  %v64 = vlaneseq
  %v65 = vshrl.u32 %v64, 7
  %v66 = vsub.s32 0, %v65
  %v67 = vrot.slane %v62, %v66
  %v68 = vlaneseq
  %v69 = vshrl.u32 %v68, 7
  %v70 = vsub.s32 1, %v69
  %v71 = vrot.slane %v62, %v70
  %v106 = vunpack.c.l.b16 %v28
  %v107 = vunpack.c.l.b16 %v29
  %v108 = vunpack.c.l.b16 %v30
  %v109 = vunpack.c.l.b16 %v31
  %v110 = vunpack.c.l.b16 %v32
  %v111 = vunpack.c.l.b16 %v33
  %v112 = vunpack.c.l.b16 %v34
  %v113 = vunpack.c.l.b16 %v35
  %v114 = vunpack.c.l.b16 %v36
  %v115 = vunpack.c.l.b16 %v37
  %v116 = vunpack.c.l.b16 %v38
  %v117 = vunpack.c.l.b16 %v39
  %v118 = vunpack.c.l.b16 %v40
  %v119 = vunpack.c.l.b16 %v41
  %v120 = vunpack.c.l.b16 %v42
  %v121 = vunpack.c.l.b16 %v43
  %v122 = vunpack.c.l.b16 %v44
  %v123 = vunpack.c.l.b16 %v45
  %v124 = vunpack.c.l.b16 %v46
  %v125 = vunpack.c.l.b16 %v47
  %v126 = vunpack.c.l.b16 %v48
  %v127 = vunpack.c.l.b16 %v49
  %v128 = vunpack.c.l.b16 %v50
  %v129 = vunpack.c.l.b16 %v51
  %v130 = vunpack.c.l.b16 %v52
  %v131 = vunpack.c.l.b16 %v53
  %v132 = vunpack.c.l.b16 %v54
  %v133 = vunpack.c.l.b16 %v55
  %v134 = vunpack.c.l.b16 %v56
  %v135 = vunpack.c.l.b16 %v57
  %v136 = vunpack.c.l.b16 %v58
  %v137 = vunpack.c.l.b16 %v59
  %v138 = vpack.c.b16 %v107, %v106
  %v139 = vpack.c.b16 %v109, %v108
  %v140 = vpack.c.b16 %v111, %v110
  %v141 = vpack.c.b16 %v113, %v112
  %v142 = vpack.c.b16 %v115, %v114
  %v143 = vpack.c.b16 %v117, %v116
  %v144 = vpack.c.b16 %v119, %v118
  %v145 = vpack.c.b16 %v121, %v120
  %v146 = vpack.c.b16 %v123, %v122
  %v147 = vpack.c.b16 %v125, %v124
  %v148 = vpack.c.b16 %v127, %v126
  %v149 = vpack.c.b16 %v129, %v128
  %v150 = vpack.c.b16 %v131, %v130
  %v151 = vpack.c.b16 %v133, %v132
  %v152 = vpack.c.b16 %v135, %v134
  %v153 = vpack.c.b16 %v137, %v136
  %v156 = vunpack.c.l.b16 %v60
  %v157 = vunpack.c.h.b16 %v60
  %v158 = vunpack.c.l.b16 %v61
  %v159 = vunpack.c.h.b16 %v61
  %v160 = vpack.c.b16 %v158, %v156
  %v161 = vpack.c.b16 %v159, %v157
  %vm164 = vcmask 130048
  %v166 = vsel %vm164, %v138, 0
  %v169 = vsel %vm164, %v139, 0
  %v172 = vsel %vm164, %v140, 0
  %v175 = vsel %vm164, %v141, 0
  %v178 = vsel %vm164, %v142, 0
  %v181 = vsel %vm164, %v143, 0
  %v184 = vsel %vm164, %v144, 0
  %v187 = vsel %vm164, %v145, 0
  %v190 = vsel %vm164, %v146, 0
  %v193 = vsel %vm164, %v147, 0
  %v196 = vsel %vm164, %v148, 0
  %v199 = vsel %vm164, %v149, 0
  %v202 = vsel %vm164, %v150, 0
  %v205 = vsel %vm164, %v151, 0
  %v208 = vsel %vm164, %v152, 0
  %v211 = vsel %vm164, %v153, 0
  %213 = vmatprep.subr.bf16.mxu0 %v161
  %214 = vmatpush1.bf16.msra.mxu0 %v160
  %215 = vmatprep.subr.bf16.mxu0 0
  %216 = vmatpush1.bf16.msra.mxu0 0
  %217 = vmatprep.subr.bf16.mxu0 0
  %218 = vmatpush1.bf16.msra.mxu0 0
  %219 = vmatprep.subr.bf16.mxu0 0
  %220 = vmatpush1.bf16.msra.mxu0 0
  %221 = vmatprep.subr.bf16.mxu0 0
  %222 = vmatpush1.bf16.msra.mxu0 0
  %223 = vmatprep.subr.bf16.mxu0 0
  %224 = vmatpush1.bf16.msra.mxu0 0
  %225 = vmatprep.subr.bf16.mxu0 0
  %226 = vmatpush1.bf16.msra.mxu0 0
  %227 = vmatprep.subr.bf16.mxu0 0
  %228 = vmatpush1.bf16.msra.mxu0 0
  %229 = vmatprep.subr.bf16.mxu0 0
  %230 = vmatpush1.bf16.msra.mxu0 0
  %231 = vmatprep.subr.bf16.mxu0 0
  %232 = vmatpush1.bf16.msra.mxu0 0
  %233 = vmatprep.subr.bf16.mxu0 0
  %234 = vmatpush1.bf16.msra.mxu0 0
  %235 = vmatprep.subr.bf16.mxu0 0
  %236 = vmatpush1.bf16.msra.mxu0 0
  %237 = vmatprep.subr.bf16.mxu0 0
  %238 = vmatpush1.bf16.msra.mxu0 0
  %239 = vmatprep.subr.bf16.mxu0 0
  %240 = vmatpush1.bf16.msra.mxu0 0
  %241 = vmatprep.subr.bf16.mxu0 0
  %242 = vmatpush1.bf16.msra.mxu0 0
  %243 = vmatprep.subr.bf16.mxu0 0
  %244 = vmatpush1.bf16.msra.mxu0 0
  %245 = vmatprep.mubr.bf16.mxu0 0
  %246 = vmatmul.mubr.bf16.gmra.mrb[0].mxu0 %v166
  %v247 = vpop.f32.mrb[0].mxu0
  %v248 = vadd.f32 %v67, %v247
  %v249 = vpop.f32.mrb[0].mxu0
  %v250 = vadd.f32 %v71, %v249
  %v251 = vpop.f32.mrb[0].mxu0
  %v252 = vadd.f32 %v67, %v251
  %v253 = vpop.f32.mrb[0].mxu0
  %v254 = vadd.f32 %v71, %v253
  %255 = vmatprep.mubr.bf16.mxu0 0
  %256 = vmatmul.mubr.bf16.gmra.mrb[0].mxu0 %v169
  %v257 = vpop.f32.mrb[0].mxu0
  %v258 = vadd.f32 %v67, %v257
  %v259 = vpop.f32.mrb[0].mxu0
  %v260 = vadd.f32 %v71, %v259
  %v261 = vpop.f32.mrb[0].mxu0
  %v262 = vadd.f32 %v67, %v261
  %v263 = vpop.f32.mrb[0].mxu0
  %v264 = vadd.f32 %v71, %v263
  %265 = vmatprep.mubr.bf16.mxu0 0
  %266 = vmatmul.mubr.bf16.gmra.mrb[0].mxu0 %v172
  %v267 = vpop.f32.mrb[0].mxu0
  %v268 = vadd.f32 %v67, %v267
  %v269 = vpop.f32.mrb[0].mxu0
  %v270 = vadd.f32 %v71, %v269
  %v271 = vpop.f32.mrb[0].mxu0
  %v272 = vadd.f32 %v67, %v271
  %v273 = vpop.f32.mrb[0].mxu0
  %v274 = vadd.f32 %v71, %v273
  %275 = vmatprep.mubr.bf16.mxu0 0
  %276 = vmatmul.mubr.bf16.gmra.mrb[0].mxu0 %v175
  %v277 = vpop.f32.mrb[0].mxu0
  %v278 = vadd.f32 %v67, %v277
  %v279 = vpop.f32.mrb[0].mxu0
  %v280 = vadd.f32 %v71, %v279
  %v281 = vpop.f32.mrb[0].mxu0
  %v282 = vadd.f32 %v67, %v281
  %v283 = vpop.f32.mrb[0].mxu0
  %v284 = vadd.f32 %v71, %v283
  %285 = vmatprep.mubr.bf16.mxu0 0
  %286 = vmatmul.mubr.bf16.gmra.mrb[0].mxu0 %v178
  %v287 = vpop.f32.mrb[0].mxu0
  %v288 = vadd.f32 %v67, %v287
  %v289 = vpop.f32.mrb[0].mxu0
  %v290 = vadd.f32 %v71, %v289
  %v291 = vpop.f32.mrb[0].mxu0
  %v292 = vadd.f32 %v67, %v291
  %v293 = vpop.f32.mrb[0].mxu0
  %v294 = vadd.f32 %v71, %v293
  %295 = vmatprep.mubr.bf16.mxu0 0
  %296 = vmatmul.mubr.bf16.gmra.mrb[0].mxu0 %v181
  %v297 = vpop.f32.mrb[0].mxu0
  %v298 = vadd.f32 %v67, %v297
  %v299 = vpop.f32.mrb[0].mxu0
  %v300 = vadd.f32 %v71, %v299
  %v301 = vpop.f32.mrb[0].mxu0
  %v302 = vadd.f32 %v67, %v301
  %v303 = vpop.f32.mrb[0].mxu0
  %v304 = vadd.f32 %v71, %v303
  %305 = vmatprep.mubr.bf16.mxu0 0
  %306 = vmatmul.mubr.bf16.gmra.mrb[0].mxu0 %v184
  %v307 = vpop.f32.mrb[0].mxu0
  %v308 = vadd.f32 %v67, %v307
  %v309 = vpop.f32.mrb[0].mxu0
  %v310 = vadd.f32 %v71, %v309
  %v311 = vpop.f32.mrb[0].mxu0
  %v312 = vadd.f32 %v67, %v311
  %v313 = vpop.f32.mrb[0].mxu0
  %v314 = vadd.f32 %v71, %v313
  %315 = vmatprep.mubr.bf16.mxu0 0
  %316 = vmatmul.mubr.bf16.gmra.mrb[0].mxu0 %v187
  %v317 = vpop.f32.mrb[0].mxu0
  %v318 = vadd.f32 %v67, %v317
  %v319 = vpop.f32.mrb[0].mxu0
  %v320 = vadd.f32 %v71, %v319
  %v321 = vpop.f32.mrb[0].mxu0
  %v322 = vadd.f32 %v67, %v321
  %v323 = vpop.f32.mrb[0].mxu0
  %v324 = vadd.f32 %v71, %v323
  %325 = vmatprep.mubr.bf16.mxu0 0
  %326 = vmatmul.mubr.bf16.gmra.mrb[0].mxu0 %v190
  %v327 = vpop.f32.mrb[0].mxu0
  %v328 = vadd.f32 %v67, %v327
  %v329 = vpop.f32.mrb[0].mxu0
  %v330 = vadd.f32 %v71, %v329
  %v331 = vpop.f32.mrb[0].mxu0
  %v332 = vadd.f32 %v67, %v331
  %v333 = vpop.f32.mrb[0].mxu0
  %v334 = vadd.f32 %v71, %v333
  %335 = vmatprep.mubr.bf16.mxu0 0
  %336 = vmatmul.mubr.bf16.gmra.mrb[0].mxu0 %v193
  %v337 = vpop.f32.mrb[0].mxu0
  %v338 = vadd.f32 %v67, %v337
  %v339 = vpop.f32.mrb[0].mxu0
  %v340 = vadd.f32 %v71, %v339
  %v341 = vpop.f32.mrb[0].mxu0
  %v342 = vadd.f32 %v67, %v341
  %v343 = vpop.f32.mrb[0].mxu0
  %v344 = vadd.f32 %v71, %v343
  %345 = vmatprep.mubr.bf16.mxu0 0
  %346 = vmatmul.mubr.bf16.gmra.mrb[0].mxu0 %v196
  %v347 = vpop.f32.mrb[0].mxu0
  %v348 = vadd.f32 %v67, %v347
  %v349 = vpop.f32.mrb[0].mxu0
  %v350 = vadd.f32 %v71, %v349
  %v351 = vpop.f32.mrb[0].mxu0
  %v352 = vadd.f32 %v67, %v351
  %v353 = vpop.f32.mrb[0].mxu0
  %v354 = vadd.f32 %v71, %v353
  %355 = vmatprep.mubr.bf16.mxu0 0
  %356 = vmatmul.mubr.bf16.gmra.mrb[0].mxu0 %v199
  %v357 = vpop.f32.mrb[0].mxu0
  %v358 = vadd.f32 %v67, %v357
  %v359 = vpop.f32.mrb[0].mxu0
  %v360 = vadd.f32 %v71, %v359
  %v361 = vpop.f32.mrb[0].mxu0
  %v362 = vadd.f32 %v67, %v361
  %v363 = vpop.f32.mrb[0].mxu0
  %v364 = vadd.f32 %v71, %v363
  %365 = vmatprep.mubr.bf16.mxu0 0
  %366 = vmatmul.mubr.bf16.gmra.mrb[0].mxu0 %v202
  %v367 = vpop.f32.mrb[0].mxu0
  %v368 = vadd.f32 %v67, %v367
  %v369 = vpop.f32.mrb[0].mxu0
  %v370 = vadd.f32 %v71, %v369
  %v371 = vpop.f32.mrb[0].mxu0
  %v372 = vadd.f32 %v67, %v371
  %v373 = vpop.f32.mrb[0].mxu0
  %v374 = vadd.f32 %v71, %v373
  %375 = vmatprep.mubr.bf16.mxu0 0
  %376 = vmatmul.mubr.bf16.gmra.mrb[0].mxu0 %v205
  %v377 = vpop.f32.mrb[0].mxu0
  %v378 = vadd.f32 %v67, %v377
  %v379 = vpop.f32.mrb[0].mxu0
  %v380 = vadd.f32 %v71, %v379
  %v381 = vpop.f32.mrb[0].mxu0
  %v382 = vadd.f32 %v67, %v381
  %v383 = vpop.f32.mrb[0].mxu0
  %v384 = vadd.f32 %v71, %v383
  %385 = vmatprep.mubr.bf16.mxu0 0
  %386 = vmatmul.mubr.bf16.gmra.mrb[0].mxu0 %v208
  %v387 = vpop.f32.mrb[0].mxu0
  %v388 = vadd.f32 %v67, %v387
  %v389 = vpop.f32.mrb[0].mxu0
  %v390 = vadd.f32 %v71, %v389
  %v391 = vpop.f32.mrb[0].mxu0
  %v392 = vadd.f32 %v67, %v391
  %v393 = vpop.f32.mrb[0].mxu0
  %v394 = vadd.f32 %v71, %v393
  %395 = vmatprep.mubr.bf16.mxu0 0
  %396 = vmatmul.mubr.bf16.gmra.mrb[0].mxu0 %v211
  %v397 = vpop.f32.mrb[0].mxu0
  %v398 = vadd.f32 %v67, %v397
  %v399 = vpop.f32.mrb[0].mxu0
  %v400 = vadd.f32 %v71, %v399
  %v401 = vpop.f32.mrb[0].mxu0
  %v402 = vadd.f32 %v67, %v401
  %v403 = vpop.f32.mrb[0].mxu0
  %v404 = vadd.f32 %v71, %v403
  %405 = vdwg.mxu0
  %v406 = vmax.f32 %v248, 0.0
  %v407 = vmax.f32 %v250, 0.0
  %v408 = vmax.f32 %v252, 0.0
  %v409 = vmax.f32 %v254, 0.0
  %v410 = vmax.f32 %v258, 0.0
  %v411 = vmax.f32 %v260, 0.0
  %v412 = vmax.f32 %v262, 0.0
  %v413 = vmax.f32 %v264, 0.0
  %v414 = vmax.f32 %v268, 0.0
  %v415 = vmax.f32 %v270, 0.0
  %v416 = vmax.f32 %v272, 0.0
  %v417 = vmax.f32 %v274, 0.0
  %v418 = vmax.f32 %v278, 0.0
  %v419 = vmax.f32 %v280, 0.0
  %v420 = vmax.f32 %v282, 0.0
  %v421 = vmax.f32 %v284, 0.0
  %v422 = vmax.f32 %v288, 0.0
  %v423 = vmax.f32 %v290, 0.0
  %v424 = vmax.f32 %v292, 0.0
  %v425 = vmax.f32 %v294, 0.0
  %v426 = vmax.f32 %v298, 0.0
  %v427 = vmax.f32 %v300, 0.0
  %v428 = vmax.f32 %v302, 0.0
  %v429 = vmax.f32 %v304, 0.0
  %v430 = vmax.f32 %v308, 0.0
  %v431 = vmax.f32 %v310, 0.0
  %v432 = vmax.f32 %v312, 0.0
  %v433 = vmax.f32 %v314, 0.0
  %v434 = vmax.f32 %v318, 0.0
  %v435 = vmax.f32 %v320, 0.0
  %v436 = vmax.f32 %v322, 0.0
  %v437 = vmax.f32 %v324, 0.0
  %v438 = vmax.f32 %v328, 0.0
  %v439 = vmax.f32 %v330, 0.0
  %v440 = vmax.f32 %v332, 0.0
  %v441 = vmax.f32 %v334, 0.0
  %v442 = vmax.f32 %v338, 0.0
  %v443 = vmax.f32 %v340, 0.0
  %v444 = vmax.f32 %v342, 0.0
  %v445 = vmax.f32 %v344, 0.0
  %v446 = vmax.f32 %v348, 0.0
  %v447 = vmax.f32 %v350, 0.0
  %v448 = vmax.f32 %v352, 0.0
  %v449 = vmax.f32 %v354, 0.0
  %v450 = vmax.f32 %v358, 0.0
  %v451 = vmax.f32 %v360, 0.0
  %v452 = vmax.f32 %v362, 0.0
  %v453 = vmax.f32 %v364, 0.0
  %v454 = vmax.f32 %v368, 0.0
  %v455 = vmax.f32 %v370, 0.0
  %v456 = vmax.f32 %v372, 0.0
  %v457 = vmax.f32 %v374, 0.0
  %v458 = vmax.f32 %v378, 0.0
  %v459 = vmax.f32 %v380, 0.0
  %v460 = vmax.f32 %v382, 0.0
  %v461 = vmax.f32 %v384, 0.0
  %v462 = vmax.f32 %v388, 0.0
  %v463 = vmax.f32 %v390, 0.0
  %v464 = vmax.f32 %v392, 0.0
  %v465 = vmax.f32 %v394, 0.0
  %v466 = vmax.f32 %v398, 0.0
  %v467 = vmax.f32 %v400, 0.0
  %v468 = vmax.f32 %v402, 0.0
  %v469 = vmax.f32 %v404, 0.0
  %v470 = vpack.c.bf16 %v408, %v406
  %v471 = vpack.c.bf16 %v409, %v407
  %v472 = vpack.c.bf16 %v412, %v410
  %v473 = vpack.c.bf16 %v413, %v411
  %v474 = vpack.c.bf16 %v416, %v414
  %v475 = vpack.c.bf16 %v417, %v415
  %v476 = vpack.c.bf16 %v420, %v418
  %v477 = vpack.c.bf16 %v421, %v419
  %v478 = vpack.c.bf16 %v424, %v422
  %v479 = vpack.c.bf16 %v425, %v423
  %v480 = vpack.c.bf16 %v428, %v426
  %v481 = vpack.c.bf16 %v429, %v427
  %v482 = vpack.c.bf16 %v432, %v430
  %v483 = vpack.c.bf16 %v433, %v431
  %v484 = vpack.c.bf16 %v436, %v434
  %v485 = vpack.c.bf16 %v437, %v435
  %v486 = vpack.c.bf16 %v440, %v438
  %v487 = vpack.c.bf16 %v441, %v439
  %v488 = vpack.c.bf16 %v444, %v442
  %v489 = vpack.c.bf16 %v445, %v443
  %v490 = vpack.c.bf16 %v448, %v446
  %v491 = vpack.c.bf16 %v449, %v447
  %v492 = vpack.c.bf16 %v452, %v450
  %v493 = vpack.c.bf16 %v453, %v451
  %v494 = vpack.c.bf16 %v456, %v454
  %v495 = vpack.c.bf16 %v457, %v455
  %v496 = vpack.c.bf16 %v460, %v458
  %v497 = vpack.c.bf16 %v461, %v459
  %v498 = vpack.c.bf16 %v464, %v462
  %v499 = vpack.c.bf16 %v465, %v463
  %v500 = vpack.c.bf16 %v468, %v466
  %v501 = vpack.c.bf16 %v469, %v467
  %v502 = vld [vmem:[%s3] sm:$0xff]
  %v503 = vld [vmem:[%s3 + $0x8] sm:$0xff]
  %v504 = vld [vmem:[%s3 + $0x10] sm:$0xff]
  %v505 = vld [vmem:[%s3 + $0x18] sm:$0xff]
  %v506 = vld [vmem:[%s3 + $0x20] sm:$0xff]
  %v507 = vld [vmem:[%s3 + $0x28] sm:$0xff]
  %v508 = vld [vmem:[%s3 + $0x30] sm:$0xff]
  %v509 = vld [vmem:[%s3 + $0x38] sm:$0xff]
  %v510 = vld [vmem:[%s3 + $0x40] sm:$0xff]
  %v511 = vld [vmem:[%s3 + $0x48] sm:$0xff]
  %v512 = vld [vmem:[%s3 + $0x50] sm:$0xff]
  %v513 = vld [vmem:[%s3 + $0x58] sm:$0xff]
  %v514 = vld [vmem:[%s3 + $0x60] sm:$0xff]
  %v515 = vld [vmem:[%s3 + $0x68] sm:$0xff]
  %v516 = vld [vmem:[%s3 + $0x70] sm:$0xff]
  %v517 = vld [vmem:[%s3 + $0x78] sm:$0xff]
  %v518 = vld [vmem:[%s3 + $0x80] sm:$0xff]
  %v519 = vld [vmem:[%s3 + $0x88] sm:$0xff]
  %v520 = vld [vmem:[%s3 + $0x90] sm:$0xff]
  %v521 = vld [vmem:[%s3 + $0x98] sm:$0xff]
  %v522 = vld [vmem:[%s3 + $0xa0] sm:$0xff]
  %v523 = vld [vmem:[%s3 + $0xa8] sm:$0xff]
  %v524 = vld [vmem:[%s3 + $0xb0] sm:$0xff]
  %v525 = vld [vmem:[%s3 + $0xb8] sm:$0xff]
  %v526 = vld [vmem:[%s3 + $0xc0] sm:$0xff]
  %v527 = vld [vmem:[%s3 + $0xc8] sm:$0xff]
  %v528 = vld [vmem:[%s3 + $0xd0] sm:$0xff]
  %v529 = vld [vmem:[%s3 + $0xd8] sm:$0xff]
  %v530 = vld [vmem:[%s3 + $0xe0] sm:$0xff]
  %v531 = vld [vmem:[%s3 + $0xe8] sm:$0xff]
  %v532 = vld [vmem:[%s3 + $0xf0] sm:$0xff]
  %v533 = vld [vmem:[%s3 + $0xf8] sm:$0xff]
  %v534 = vld [vmem:[%s4] sm:$0x3]
  %v536 = vlaneseq
  %v537 = vshrl.u32 %v536, 7
  %v538 = vsub.s32 0, %v537
  %v539 = vrot.slane %v534, %v538
  %v540 = vlaneseq
  %v541 = vshrl.u32 %v540, 7
  %v542 = vsub.s32 1, %v541
  %v543 = vrot.slane %v534, %v542
  %v578 = vunpack.c.l.b16 %v502
  %v579 = vunpack.c.h.b16 %v502
  %v580 = vunpack.c.l.b16 %v503
  %v581 = vunpack.c.h.b16 %v503
  %v582 = vunpack.c.l.b16 %v504
  %v583 = vunpack.c.h.b16 %v504
  %v584 = vunpack.c.l.b16 %v505
  %v585 = vunpack.c.h.b16 %v505
  %v586 = vunpack.c.l.b16 %v506
  %v587 = vunpack.c.h.b16 %v506
  %v588 = vunpack.c.l.b16 %v507
  %v589 = vunpack.c.h.b16 %v507
  %v590 = vunpack.c.l.b16 %v508
  %v591 = vunpack.c.h.b16 %v508
  %v592 = vunpack.c.l.b16 %v509
  %v593 = vunpack.c.h.b16 %v509
  %v594 = vunpack.c.l.b16 %v510
  %v595 = vunpack.c.h.b16 %v510
  %v596 = vunpack.c.l.b16 %v511
  %v597 = vunpack.c.h.b16 %v511
  %v598 = vunpack.c.l.b16 %v512
  %v599 = vunpack.c.h.b16 %v512
  %v600 = vunpack.c.l.b16 %v513
  %v601 = vunpack.c.h.b16 %v513
  %v602 = vunpack.c.l.b16 %v514
  %v603 = vunpack.c.h.b16 %v514
  %v604 = vunpack.c.l.b16 %v515
  %v605 = vunpack.c.h.b16 %v515
  %v606 = vunpack.c.l.b16 %v516
  %v607 = vunpack.c.h.b16 %v516
  %v608 = vunpack.c.l.b16 %v517
  %v609 = vunpack.c.h.b16 %v517
  %v610 = vunpack.c.l.b16 %v518
  %v611 = vunpack.c.h.b16 %v518
  %v612 = vunpack.c.l.b16 %v519
  %v613 = vunpack.c.h.b16 %v519
  %v614 = vunpack.c.l.b16 %v520
  %v615 = vunpack.c.h.b16 %v520
  %v616 = vunpack.c.l.b16 %v521
  %v617 = vunpack.c.h.b16 %v521
  %v618 = vunpack.c.l.b16 %v522
  %v619 = vunpack.c.h.b16 %v522
  %v620 = vunpack.c.l.b16 %v523
  %v621 = vunpack.c.h.b16 %v523
  %v622 = vunpack.c.l.b16 %v524
  %v623 = vunpack.c.h.b16 %v524
  %v624 = vunpack.c.l.b16 %v525
  %v625 = vunpack.c.h.b16 %v525
  %v626 = vunpack.c.l.b16 %v526
  %v627 = vunpack.c.h.b16 %v526
  %v628 = vunpack.c.l.b16 %v527
  %v629 = vunpack.c.h.b16 %v527
  %v630 = vunpack.c.l.b16 %v528
  %v631 = vunpack.c.h.b16 %v528
  %v632 = vunpack.c.l.b16 %v529
  %v633 = vunpack.c.h.b16 %v529
  %v634 = vunpack.c.l.b16 %v530
  %v635 = vunpack.c.h.b16 %v530
  %v636 = vunpack.c.l.b16 %v531
  %v637 = vunpack.c.h.b16 %v531
  %v638 = vunpack.c.l.b16 %v532
  %v639 = vunpack.c.h.b16 %v532
  %v640 = vunpack.c.l.b16 %v533
  %v641 = vunpack.c.h.b16 %v533
  %v642 = vpack.c.b16 %v580, %v578
  %v643 = vpack.c.b16 %v581, %v579
  %v644 = vpack.c.b16 %v584, %v582
  %v645 = vpack.c.b16 %v585, %v583
  %v646 = vpack.c.b16 %v588, %v586
  %v647 = vpack.c.b16 %v589, %v587
  %v648 = vpack.c.b16 %v592, %v590
  %v649 = vpack.c.b16 %v593, %v591
  %v650 = vpack.c.b16 %v596, %v594
  %v651 = vpack.c.b16 %v597, %v595
  %v652 = vpack.c.b16 %v600, %v598
  %v653 = vpack.c.b16 %v601, %v599
  %v654 = vpack.c.b16 %v604, %v602
  %v655 = vpack.c.b16 %v605, %v603
  %v656 = vpack.c.b16 %v608, %v606
  %v657 = vpack.c.b16 %v609, %v607
  %v658 = vpack.c.b16 %v612, %v610
  %v659 = vpack.c.b16 %v613, %v611
  %v660 = vpack.c.b16 %v616, %v614
  %v661 = vpack.c.b16 %v617, %v615
  %v662 = vpack.c.b16 %v620, %v618
  %v663 = vpack.c.b16 %v621, %v619
  %v664 = vpack.c.b16 %v624, %v622
  %v665 = vpack.c.b16 %v625, %v623
  %v666 = vpack.c.b16 %v628, %v626
  %v667 = vpack.c.b16 %v629, %v627
  %v668 = vpack.c.b16 %v632, %v630
  %v669 = vpack.c.b16 %v633, %v631
  %v670 = vpack.c.b16 %v636, %v634
  %v671 = vpack.c.b16 %v637, %v635
  %v672 = vpack.c.b16 %v640, %v638
  %v673 = vpack.c.b16 %v641, %v639
  %706 = vmatprep.subr.bf16.mxu0 %v643
  %707 = vmatpush1.bf16.msra.mxu0 %v642
  %708 = vmatprep.subr.bf16.mxu0 %v645
  %709 = vmatpush1.bf16.msra.mxu0 %v644
  %710 = vmatprep.subr.bf16.mxu0 %v647
  %711 = vmatpush1.bf16.msra.mxu0 %v646
  %712 = vmatprep.subr.bf16.mxu0 %v649
  %713 = vmatpush1.bf16.msra.mxu0 %v648
  %714 = vmatprep.subr.bf16.mxu0 %v651
  %715 = vmatpush1.bf16.msra.mxu0 %v650
  %716 = vmatprep.subr.bf16.mxu0 %v653
  %717 = vmatpush1.bf16.msra.mxu0 %v652
  %718 = vmatprep.subr.bf16.mxu0 %v655
  %719 = vmatpush1.bf16.msra.mxu0 %v654
  %720 = vmatprep.subr.bf16.mxu0 %v657
  %721 = vmatpush1.bf16.msra.mxu0 %v656
  %722 = vmatprep.subr.bf16.mxu0 %v659
  %723 = vmatpush1.bf16.msra.mxu0 %v658
  %724 = vmatprep.subr.bf16.mxu0 %v661
  %725 = vmatpush1.bf16.msra.mxu0 %v660
  %726 = vmatprep.subr.bf16.mxu0 %v663
  %727 = vmatpush1.bf16.msra.mxu0 %v662
  %728 = vmatprep.subr.bf16.mxu0 %v665
  %729 = vmatpush1.bf16.msra.mxu0 %v664
  %730 = vmatprep.subr.bf16.mxu0 %v667
  %731 = vmatpush1.bf16.msra.mxu0 %v666
  %732 = vmatprep.subr.bf16.mxu0 %v669
  %733 = vmatpush1.bf16.msra.mxu0 %v668
  %734 = vmatprep.subr.bf16.mxu0 %v671
  %735 = vmatpush1.bf16.msra.mxu0 %v670
  %736 = vmatprep.subr.bf16.mxu0 %v673
  %737 = vmatpush1.bf16.msra.mxu0 %v672
  %738 = vmatprep.mubr.bf16.mxu0 %v471
  %739 = vmatmul.mubr.bf16.gmra.mrb[0].mxu0 %v470
  %v740 = vpop.f32.mrb[0].mxu0
  %v741 = vadd.f32 %v539, %v740
  %v742 = vpop.f32.mrb[0].mxu0
  %v743 = vadd.f32 %v543, %v742
  %v744 = vpop.f32.mrb[0].mxu0
  %v745 = vadd.f32 %v539, %v744
  %v746 = vpop.f32.mrb[0].mxu0
  %v747 = vadd.f32 %v543, %v746
  %748 = vmatprep.mubr.bf16.mxu0 %v473
  %749 = vmatmul.mubr.bf16.gmra.mrb[0].mxu0 %v472
  %v750 = vpop.f32.mrb[0].mxu0
  %v751 = vadd.f32 %v539, %v750
  %v752 = vpop.f32.mrb[0].mxu0
  %v753 = vadd.f32 %v543, %v752
  %v754 = vpop.f32.mrb[0].mxu0
  %v755 = vadd.f32 %v539, %v754
  %v756 = vpop.f32.mrb[0].mxu0
  %v757 = vadd.f32 %v543, %v756
  %758 = vmatprep.mubr.bf16.mxu0 %v475
  %759 = vmatmul.mubr.bf16.gmra.mrb[0].mxu0 %v474
  %v760 = vpop.f32.mrb[0].mxu0
  %v761 = vadd.f32 %v539, %v760
  %v762 = vpop.f32.mrb[0].mxu0
  %v763 = vadd.f32 %v543, %v762
  %v764 = vpop.f32.mrb[0].mxu0
  %v765 = vadd.f32 %v539, %v764
  %v766 = vpop.f32.mrb[0].mxu0
  %v767 = vadd.f32 %v543, %v766
  %768 = vmatprep.mubr.bf16.mxu0 %v477
  %769 = vmatmul.mubr.bf16.gmra.mrb[0].mxu0 %v476
  %v770 = vpop.f32.mrb[0].mxu0
  %v771 = vadd.f32 %v539, %v770
  %v772 = vpop.f32.mrb[0].mxu0
  %v773 = vadd.f32 %v543, %v772
  %v774 = vpop.f32.mrb[0].mxu0
  %v775 = vadd.f32 %v539, %v774
  %v776 = vpop.f32.mrb[0].mxu0
  %v777 = vadd.f32 %v543, %v776
  %778 = vmatprep.mubr.bf16.mxu0 %v479
  %779 = vmatmul.mubr.bf16.gmra.mrb[0].mxu0 %v478
  %v780 = vpop.f32.mrb[0].mxu0
  %v781 = vadd.f32 %v539, %v780
  %v782 = vpop.f32.mrb[0].mxu0
  %v783 = vadd.f32 %v543, %v782
  %v784 = vpop.f32.mrb[0].mxu0
  %v785 = vadd.f32 %v539, %v784
  %v786 = vpop.f32.mrb[0].mxu0
  %v787 = vadd.f32 %v543, %v786
  %788 = vmatprep.mubr.bf16.mxu0 %v481
  %789 = vmatmul.mubr.bf16.gmra.mrb[0].mxu0 %v480
  %v790 = vpop.f32.mrb[0].mxu0
  %v791 = vadd.f32 %v539, %v790
  %v792 = vpop.f32.mrb[0].mxu0
  %v793 = vadd.f32 %v543, %v792
  %v794 = vpop.f32.mrb[0].mxu0
  %v795 = vadd.f32 %v539, %v794
  %v796 = vpop.f32.mrb[0].mxu0
  %v797 = vadd.f32 %v543, %v796
  %798 = vmatprep.mubr.bf16.mxu0 %v483
  %799 = vmatmul.mubr.bf16.gmra.mrb[0].mxu0 %v482
  %v800 = vpop.f32.mrb[0].mxu0
  %v801 = vadd.f32 %v539, %v800
  %v802 = vpop.f32.mrb[0].mxu0
  %v803 = vadd.f32 %v543, %v802
  %v804 = vpop.f32.mrb[0].mxu0
  %v805 = vadd.f32 %v539, %v804
  %v806 = vpop.f32.mrb[0].mxu0
  %v807 = vadd.f32 %v543, %v806
  %808 = vmatprep.mubr.bf16.mxu0 %v485
  %809 = vmatmul.mubr.bf16.gmra.mrb[0].mxu0 %v484
  %v810 = vpop.f32.mrb[0].mxu0
  %v811 = vadd.f32 %v539, %v810
  %v812 = vpop.f32.mrb[0].mxu0
  %v813 = vadd.f32 %v543, %v812
  %v814 = vpop.f32.mrb[0].mxu0
  %v815 = vadd.f32 %v539, %v814
  %v816 = vpop.f32.mrb[0].mxu0
  %v817 = vadd.f32 %v543, %v816
  %818 = vmatprep.mubr.bf16.mxu0 %v487
  %819 = vmatmul.mubr.bf16.gmra.mrb[0].mxu0 %v486
  %v820 = vpop.f32.mrb[0].mxu0
  %v821 = vadd.f32 %v539, %v820
  %v822 = vpop.f32.mrb[0].mxu0
  %v823 = vadd.f32 %v543, %v822
  %v824 = vpop.f32.mrb[0].mxu0
  %v825 = vadd.f32 %v539, %v824
  %v826 = vpop.f32.mrb[0].mxu0
  %v827 = vadd.f32 %v543, %v826
  %828 = vmatprep.mubr.bf16.mxu0 %v489
  %829 = vmatmul.mubr.bf16.gmra.mrb[0].mxu0 %v488
  %v830 = vpop.f32.mrb[0].mxu0
  %v831 = vadd.f32 %v539, %v830
  %v832 = vpop.f32.mrb[0].mxu0
  %v833 = vadd.f32 %v543, %v832
  %v834 = vpop.f32.mrb[0].mxu0
  %v835 = vadd.f32 %v539, %v834
  %v836 = vpop.f32.mrb[0].mxu0
  %v837 = vadd.f32 %v543, %v836
  %838 = vmatprep.mubr.bf16.mxu0 %v491
  %839 = vmatmul.mubr.bf16.gmra.mrb[0].mxu0 %v490
  %v840 = vpop.f32.mrb[0].mxu0
  %v841 = vadd.f32 %v539, %v840
  %v842 = vpop.f32.mrb[0].mxu0
  %v843 = vadd.f32 %v543, %v842
  %v844 = vpop.f32.mrb[0].mxu0
  %v845 = vadd.f32 %v539, %v844
  %v846 = vpop.f32.mrb[0].mxu0
  %v847 = vadd.f32 %v543, %v846
  %848 = vmatprep.mubr.bf16.mxu0 %v493
  %849 = vmatmul.mubr.bf16.gmra.mrb[0].mxu0 %v492
  %v850 = vpop.f32.mrb[0].mxu0
  %v851 = vadd.f32 %v539, %v850
  %v852 = vpop.f32.mrb[0].mxu0
  %v853 = vadd.f32 %v543, %v852
  %v854 = vpop.f32.mrb[0].mxu0
  %v855 = vadd.f32 %v539, %v854
  %v856 = vpop.f32.mrb[0].mxu0
  %v857 = vadd.f32 %v543, %v856
  %858 = vmatprep.mubr.bf16.mxu0 %v495
  %859 = vmatmul.mubr.bf16.gmra.mrb[0].mxu0 %v494
  %v860 = vpop.f32.mrb[0].mxu0
  %v861 = vadd.f32 %v539, %v860
  %v862 = vpop.f32.mrb[0].mxu0
  %v863 = vadd.f32 %v543, %v862
  %v864 = vpop.f32.mrb[0].mxu0
  %v865 = vadd.f32 %v539, %v864
  %v866 = vpop.f32.mrb[0].mxu0
  %v867 = vadd.f32 %v543, %v866
  %868 = vmatprep.mubr.bf16.mxu0 %v497
  %869 = vmatmul.mubr.bf16.gmra.mrb[0].mxu0 %v496
  %v870 = vpop.f32.mrb[0].mxu0
  %v871 = vadd.f32 %v539, %v870
  %v872 = vpop.f32.mrb[0].mxu0
  %v873 = vadd.f32 %v543, %v872
  %v874 = vpop.f32.mrb[0].mxu0
  %v875 = vadd.f32 %v539, %v874
  %v876 = vpop.f32.mrb[0].mxu0
  %v877 = vadd.f32 %v543, %v876
  %878 = vmatprep.mubr.bf16.mxu0 %v499
  %879 = vmatmul.mubr.bf16.gmra.mrb[0].mxu0 %v498
  %v880 = vpop.f32.mrb[0].mxu0
  %v881 = vadd.f32 %v539, %v880
  %v882 = vpop.f32.mrb[0].mxu0
  %v883 = vadd.f32 %v543, %v882
  %v884 = vpop.f32.mrb[0].mxu0
  %v885 = vadd.f32 %v539, %v884
  %v886 = vpop.f32.mrb[0].mxu0
  %v887 = vadd.f32 %v543, %v886
  %888 = vmatprep.mubr.bf16.mxu0 %v501
  %889 = vmatmul.mubr.bf16.gmra.mrb[0].mxu0 %v500
  %v890 = vpop.f32.mrb[0].mxu0
  %v891 = vadd.f32 %v539, %v890
  %v892 = vpop.f32.mrb[0].mxu0
  %v893 = vadd.f32 %v543, %v892
  %v894 = vpop.f32.mrb[0].mxu0
  %v895 = vadd.f32 %v539, %v894
  %v896 = vpop.f32.mrb[0].mxu0
  %v897 = vadd.f32 %v543, %v896
  %898 = vdwg.mxu0
  %v899 = vmax.f32 %v741, 0.0
  %v900 = vmax.f32 %v743, 0.0
  %v901 = vmax.f32 %v745, 0.0
  %v902 = vmax.f32 %v747, 0.0
  %v903 = vmax.f32 %v751, 0.0
  %v904 = vmax.f32 %v753, 0.0
  %v905 = vmax.f32 %v755, 0.0
  %v906 = vmax.f32 %v757, 0.0
  %v907 = vmax.f32 %v761, 0.0
  %v908 = vmax.f32 %v763, 0.0
  %v909 = vmax.f32 %v765, 0.0
  %v910 = vmax.f32 %v767, 0.0
  %v911 = vmax.f32 %v771, 0.0
  %v912 = vmax.f32 %v773, 0.0
  %v913 = vmax.f32 %v775, 0.0
  %v914 = vmax.f32 %v777, 0.0
  %v915 = vmax.f32 %v781, 0.0
  %v916 = vmax.f32 %v783, 0.0
  %v917 = vmax.f32 %v785, 0.0
  %v918 = vmax.f32 %v787, 0.0
  %v919 = vmax.f32 %v791, 0.0
  %v920 = vmax.f32 %v793, 0.0
  %v921 = vmax.f32 %v795, 0.0
  %v922 = vmax.f32 %v797, 0.0
  %v923 = vmax.f32 %v801, 0.0
  %v924 = vmax.f32 %v803, 0.0
  %v925 = vmax.f32 %v805, 0.0
  %v926 = vmax.f32 %v807, 0.0
  %v927 = vmax.f32 %v811, 0.0
  %v928 = vmax.f32 %v813, 0.0
  %v929 = vmax.f32 %v815, 0.0
  %v930 = vmax.f32 %v817, 0.0
  %v931 = vmax.f32 %v821, 0.0
  %v932 = vmax.f32 %v823, 0.0
  %v933 = vmax.f32 %v825, 0.0
  %v934 = vmax.f32 %v827, 0.0
  %v935 = vmax.f32 %v831, 0.0
  %v936 = vmax.f32 %v833, 0.0
  %v937 = vmax.f32 %v835, 0.0
  %v938 = vmax.f32 %v837, 0.0
  %v939 = vmax.f32 %v841, 0.0
  %v940 = vmax.f32 %v843, 0.0
  %v941 = vmax.f32 %v845, 0.0
  %v942 = vmax.f32 %v847, 0.0
  %v943 = vmax.f32 %v851, 0.0
  %v944 = vmax.f32 %v853, 0.0
  %v945 = vmax.f32 %v855, 0.0
  %v946 = vmax.f32 %v857, 0.0
  %v947 = vmax.f32 %v861, 0.0
  %v948 = vmax.f32 %v863, 0.0
  %v949 = vmax.f32 %v865, 0.0
  %v950 = vmax.f32 %v867, 0.0
  %v951 = vmax.f32 %v871, 0.0
  %v952 = vmax.f32 %v873, 0.0
  %v953 = vmax.f32 %v875, 0.0
  %v954 = vmax.f32 %v877, 0.0
  %v955 = vmax.f32 %v881, 0.0
  %v956 = vmax.f32 %v883, 0.0
  %v957 = vmax.f32 %v885, 0.0
  %v958 = vmax.f32 %v887, 0.0
  %v959 = vmax.f32 %v891, 0.0
  %v960 = vmax.f32 %v893, 0.0
  %v961 = vmax.f32 %v895, 0.0
  %v962 = vmax.f32 %v897, 0.0
  %v963 = vld [vmem:[%s5] sm:$0x3]
  %v965 = vlaneseq
  %v966 = vshrl.u32 %v965, 7
  %v967 = vsub.s32 0, %v966
  %v968 = vrot.slane %v963, %v967
  %v969 = vlaneseq
  %v970 = vshrl.u32 %v969, 7
  %v971 = vsub.s32 1, %v970
  %v972 = vrot.slane %v963, %v971
  %v975 = vmul.f32 %v899, %v968
  %v976 = vmul.f32 %v900, %v972
  %v977 = vmul.f32 %v901, %v968
  %v978 = vmul.f32 %v902, %v972
  %v979 = vmul.f32 %v903, %v968
  %v980 = vmul.f32 %v904, %v972
  %v981 = vmul.f32 %v905, %v968
  %v982 = vmul.f32 %v906, %v972
  %v983 = vmul.f32 %v907, %v968
  %v984 = vmul.f32 %v908, %v972
  %v985 = vmul.f32 %v909, %v968
  %v986 = vmul.f32 %v910, %v972
  %v987 = vmul.f32 %v911, %v968
  %v988 = vmul.f32 %v912, %v972
  %v989 = vmul.f32 %v913, %v968
  %v990 = vmul.f32 %v914, %v972
  %v991 = vmul.f32 %v915, %v968
  %v992 = vmul.f32 %v916, %v972
  %v993 = vmul.f32 %v917, %v968
  %v994 = vmul.f32 %v918, %v972
  %v995 = vmul.f32 %v919, %v968
  %v996 = vmul.f32 %v920, %v972
  %v997 = vmul.f32 %v921, %v968
  %v998 = vmul.f32 %v922, %v972
  %v999 = vmul.f32 %v923, %v968
  %v1000 = vmul.f32 %v924, %v972
  %v1001 = vmul.f32 %v925, %v968
  %v1002 = vmul.f32 %v926, %v972
  %v1003 = vmul.f32 %v927, %v968
  %v1004 = vmul.f32 %v928, %v972
  %v1005 = vmul.f32 %v929, %v968
  %v1006 = vmul.f32 %v930, %v972
  %v1007 = vmul.f32 %v931, %v968
  %v1008 = vmul.f32 %v932, %v972
  %v1009 = vmul.f32 %v933, %v968
  %v1010 = vmul.f32 %v934, %v972
  %v1011 = vmul.f32 %v935, %v968
  %v1012 = vmul.f32 %v936, %v972
  %v1013 = vmul.f32 %v937, %v968
  %v1014 = vmul.f32 %v938, %v972
  %v1015 = vmul.f32 %v939, %v968
  %v1016 = vmul.f32 %v940, %v972
  %v1017 = vmul.f32 %v941, %v968
  %v1018 = vmul.f32 %v942, %v972
  %v1019 = vmul.f32 %v943, %v968
  %v1020 = vmul.f32 %v944, %v972
  %v1021 = vmul.f32 %v945, %v968
  %v1022 = vmul.f32 %v946, %v972
  %v1023 = vmul.f32 %v947, %v968
  %v1024 = vmul.f32 %v948, %v972
  %v1025 = vmul.f32 %v949, %v968
  %v1026 = vmul.f32 %v950, %v972
  %v1027 = vmul.f32 %v951, %v968
  %v1028 = vmul.f32 %v952, %v972
  %v1029 = vmul.f32 %v953, %v968
  %v1030 = vmul.f32 %v954, %v972
  %v1031 = vmul.f32 %v955, %v968
  %v1032 = vmul.f32 %v956, %v972
  %v1033 = vmul.f32 %v957, %v968
  %v1034 = vmul.f32 %v958, %v972
  %v1035 = vmul.f32 %v959, %v968
  %v1036 = vmul.f32 %v960, %v972
  %v1037 = vmul.f32 %v961, %v968
  %v1038 = vmul.f32 %v962, %v972
  %v1039 = vadd.f32 %v975, %v976
  %1040 = vadd.xlane.f32.xlu0 %v1039
  %v1041 = vpop.xlane.xlu0 %1040
  %v1042 = vadd.f32 %v977, %v978
  %1043 = vadd.xlane.f32.xlu0 %v1042
  %v1044 = vpop.xlane.xlu0 %1043
  %v1045 = vadd.f32 %v979, %v980
  %1046 = vadd.xlane.f32.xlu0 %v1045
  %v1047 = vpop.xlane.xlu0 %1046
  %v1048 = vadd.f32 %v981, %v982
  %1049 = vadd.xlane.f32.xlu0 %v1048
  %v1050 = vpop.xlane.xlu0 %1049
  %v1051 = vadd.f32 %v983, %v984
  %1052 = vadd.xlane.f32.xlu0 %v1051
  %v1053 = vpop.xlane.xlu0 %1052
  %v1054 = vadd.f32 %v985, %v986
  %1055 = vadd.xlane.f32.xlu0 %v1054
  %v1056 = vpop.xlane.xlu0 %1055
  %v1057 = vadd.f32 %v987, %v988
  %1058 = vadd.xlane.f32.xlu0 %v1057
  %v1059 = vpop.xlane.xlu0 %1058
  %v1060 = vadd.f32 %v989, %v990
  %1061 = vadd.xlane.f32.xlu0 %v1060
  %v1062 = vpop.xlane.xlu0 %1061
  %v1063 = vadd.f32 %v991, %v992
  %1064 = vadd.xlane.f32.xlu0 %v1063
  %v1065 = vpop.xlane.xlu0 %1064
  %v1066 = vadd.f32 %v993, %v994
  %1067 = vadd.xlane.f32.xlu0 %v1066
  %v1068 = vpop.xlane.xlu0 %1067
  %v1069 = vadd.f32 %v995, %v996
  %1070 = vadd.xlane.f32.xlu0 %v1069
  %v1071 = vpop.xlane.xlu0 %1070
  %v1072 = vadd.f32 %v997, %v998
  %1073 = vadd.xlane.f32.xlu0 %v1072
  %v1074 = vpop.xlane.xlu0 %1073
  %v1075 = vadd.f32 %v999, %v1000
  %1076 = vadd.xlane.f32.xlu0 %v1075
  %v1077 = vpop.xlane.xlu0 %1076
  %v1078 = vadd.f32 %v1001, %v1002
  %1079 = vadd.xlane.f32.xlu0 %v1078
  %v1080 = vpop.xlane.xlu0 %1079
  %v1081 = vadd.f32 %v1003, %v1004
  %1082 = vadd.xlane.f32.xlu0 %v1081
  %v1083 = vpop.xlane.xlu0 %1082
  %v1084 = vadd.f32 %v1005, %v1006
  %1085 = vadd.xlane.f32.xlu0 %v1084
  %v1086 = vpop.xlane.xlu0 %1085
  %v1087 = vadd.f32 %v1007, %v1008
  %1088 = vadd.xlane.f32.xlu0 %v1087
  %v1089 = vpop.xlane.xlu0 %1088
  %v1090 = vadd.f32 %v1009, %v1010
  %1091 = vadd.xlane.f32.xlu0 %v1090
  %v1092 = vpop.xlane.xlu0 %1091
  %v1093 = vadd.f32 %v1011, %v1012
  %1094 = vadd.xlane.f32.xlu0 %v1093
  %v1095 = vpop.xlane.xlu0 %1094
  %v1096 = vadd.f32 %v1013, %v1014
  %1097 = vadd.xlane.f32.xlu0 %v1096
  %v1098 = vpop.xlane.xlu0 %1097
  %v1099 = vadd.f32 %v1015, %v1016
  %1100 = vadd.xlane.f32.xlu0 %v1099
  %v1101 = vpop.xlane.xlu0 %1100
  %v1102 = vadd.f32 %v1017, %v1018
  %1103 = vadd.xlane.f32.xlu0 %v1102
  %v1104 = vpop.xlane.xlu0 %1103
  %v1105 = vadd.f32 %v1019, %v1020
  %1106 = vadd.xlane.f32.xlu0 %v1105
  %v1107 = vpop.xlane.xlu0 %1106
  %v1108 = vadd.f32 %v1021, %v1022
  %1109 = vadd.xlane.f32.xlu0 %v1108
  %v1110 = vpop.xlane.xlu0 %1109
  %v1111 = vadd.f32 %v1023, %v1024
  %1112 = vadd.xlane.f32.xlu0 %v1111
  %v1113 = vpop.xlane.xlu0 %1112
  %v1114 = vadd.f32 %v1025, %v1026
  %1115 = vadd.xlane.f32.xlu0 %v1114
  %v1116 = vpop.xlane.xlu0 %1115
  %v1117 = vadd.f32 %v1027, %v1028
  %1118 = vadd.xlane.f32.xlu0 %v1117
  %v1119 = vpop.xlane.xlu0 %1118
  %v1120 = vadd.f32 %v1029, %v1030
  %1121 = vadd.xlane.f32.xlu0 %v1120
  %v1122 = vpop.xlane.xlu0 %1121
  %v1123 = vadd.f32 %v1031, %v1032
  %1124 = vadd.xlane.f32.xlu0 %v1123
  %v1125 = vpop.xlane.xlu0 %1124
  %v1126 = vadd.f32 %v1033, %v1034
  %1127 = vadd.xlane.f32.xlu0 %v1126
  %v1128 = vpop.xlane.xlu0 %1127
  %v1129 = vadd.f32 %v1035, %v1036
  %1130 = vadd.xlane.f32.xlu0 %v1129
  %v1131 = vpop.xlane.xlu0 %1130
  %v1132 = vadd.f32 %v1037, %v1038
  %1133 = vadd.xlane.f32.xlu0 %v1132
  %v1134 = vpop.xlane.xlu0 %1133
  %s1135 = sld [smem:[#allocation2]]
  %v1136 = vstv %s1135
  %v1137 = vadd.f32 %v1041, %v1136
  %v1138 = vadd.f32 %v1044, %v1136
  %v1139 = vadd.f32 %v1047, %v1136
  %v1140 = vadd.f32 %v1050, %v1136
  %v1141 = vadd.f32 %v1053, %v1136
  %v1142 = vadd.f32 %v1056, %v1136
  %v1143 = vadd.f32 %v1059, %v1136
  %v1144 = vadd.f32 %v1062, %v1136
  %v1145 = vadd.f32 %v1065, %v1136
  %v1146 = vadd.f32 %v1068, %v1136
  %v1147 = vadd.f32 %v1071, %v1136
  %v1148 = vadd.f32 %v1074, %v1136
  %v1149 = vadd.f32 %v1077, %v1136
  %v1150 = vadd.f32 %v1080, %v1136
  %v1151 = vadd.f32 %v1083, %v1136
  %v1152 = vadd.f32 %v1086, %v1136
  %v1153 = vadd.f32 %v1089, %v1136
  %v1154 = vadd.f32 %v1092, %v1136
  %v1155 = vadd.f32 %v1095, %v1136
  %v1156 = vadd.f32 %v1098, %v1136
  %v1157 = vadd.f32 %v1101, %v1136
  %v1158 = vadd.f32 %v1104, %v1136
  %v1159 = vadd.f32 %v1107, %v1136
  %v1160 = vadd.f32 %v1110, %v1136
  %v1161 = vadd.f32 %v1113, %v1136
  %v1162 = vadd.f32 %v1116, %v1136
  %v1163 = vadd.f32 %v1119, %v1136
  %v1164 = vadd.f32 %v1122, %v1136
  %v1165 = vadd.f32 %v1125, %v1136
  %v1166 = vadd.f32 %v1128, %v1136
  %v1167 = vadd.f32 %v1131, %v1136
  %v1168 = vadd.f32 %v1134, %v1136
  %v1201 = vlaneseq
  %v1202 = vshrl.u32 %v1201, 7
  %v1203 = vsub.s32 0, %v1202
  %v1204 = vrot.slane %v1137, %v1203
  %v1205 = vlaneseq
  %v1206 = vshrl.u32 %v1205, 7
  %v1207 = vsub.s32 1, %v1206
  %v1208 = vrot.slane %v1137, %v1207
  %v1209 = vlaneseq
  %v1210 = vshrl.u32 %v1209, 7
  %v1211 = vsub.s32 2, %v1210
  %v1212 = vrot.slane %v1137, %v1211
  %v1213 = vlaneseq
  %v1214 = vshrl.u32 %v1213, 7
  %v1215 = vsub.s32 3, %v1214
  %v1216 = vrot.slane %v1137, %v1215
  %v1217 = vlaneseq
  %v1218 = vshrl.u32 %v1217, 7
  %v1219 = vsub.s32 4, %v1218
  %v1220 = vrot.slane %v1137, %v1219
  %v1221 = vlaneseq
  %v1222 = vshrl.u32 %v1221, 7
  %v1223 = vsub.s32 5, %v1222
  %v1224 = vrot.slane %v1137, %v1223
  %v1225 = vlaneseq
  %v1226 = vshrl.u32 %v1225, 7
  %v1227 = vsub.s32 6, %v1226
  %v1228 = vrot.slane %v1137, %v1227
  %v1229 = vlaneseq
  %v1230 = vshrl.u32 %v1229, 7
  %v1231 = vsub.s32 7, %v1230
  %v1232 = vrot.slane %v1137, %v1231
  %v1233 = vlaneseq
  %v1234 = vshrl.u32 %v1233, 7
  %v1235 = vsub.s32 0, %v1234
  %v1236 = vrot.slane %v1138, %v1235
  %v1237 = vlaneseq
  %v1238 = vshrl.u32 %v1237, 7
  %v1239 = vsub.s32 1, %v1238
  %v1240 = vrot.slane %v1138, %v1239
  %v1241 = vlaneseq
  %v1242 = vshrl.u32 %v1241, 7
  %v1243 = vsub.s32 2, %v1242
  %v1244 = vrot.slane %v1138, %v1243
  %v1245 = vlaneseq
  %v1246 = vshrl.u32 %v1245, 7
  %v1247 = vsub.s32 3, %v1246
  %v1248 = vrot.slane %v1138, %v1247
  %v1249 = vlaneseq
  %v1250 = vshrl.u32 %v1249, 7
  %v1251 = vsub.s32 4, %v1250
  %v1252 = vrot.slane %v1138, %v1251
  %v1253 = vlaneseq
  %v1254 = vshrl.u32 %v1253, 7
  %v1255 = vsub.s32 5, %v1254
  %v1256 = vrot.slane %v1138, %v1255
  %v1257 = vlaneseq
  %v1258 = vshrl.u32 %v1257, 7
  %v1259 = vsub.s32 6, %v1258
  %v1260 = vrot.slane %v1138, %v1259
  %v1261 = vlaneseq
  %v1262 = vshrl.u32 %v1261, 7
  %v1263 = vsub.s32 7, %v1262
  %v1264 = vrot.slane %v1138, %v1263
  %v1265 = vlaneseq
  %v1266 = vshrl.u32 %v1265, 7
  %v1267 = vsub.s32 0, %v1266
  %v1268 = vrot.slane %v1139, %v1267
  %v1269 = vlaneseq
  %v1270 = vshrl.u32 %v1269, 7
  %v1271 = vsub.s32 1, %v1270
  %v1272 = vrot.slane %v1139, %v1271
  %v1273 = vlaneseq
  %v1274 = vshrl.u32 %v1273, 7
  %v1275 = vsub.s32 2, %v1274
  %v1276 = vrot.slane %v1139, %v1275
  %v1277 = vlaneseq
  %v1278 = vshrl.u32 %v1277, 7
  %v1279 = vsub.s32 3, %v1278
  %v1280 = vrot.slane %v1139, %v1279
  %v1281 = vlaneseq
  %v1282 = vshrl.u32 %v1281, 7
  %v1283 = vsub.s32 4, %v1282
  %v1284 = vrot.slane %v1139, %v1283
  %v1285 = vlaneseq
  %v1286 = vshrl.u32 %v1285, 7
  %v1287 = vsub.s32 5, %v1286
  %v1288 = vrot.slane %v1139, %v1287
  %v1289 = vlaneseq
  %v1290 = vshrl.u32 %v1289, 7
  %v1291 = vsub.s32 6, %v1290
  %v1292 = vrot.slane %v1139, %v1291
  %v1293 = vlaneseq
  %v1294 = vshrl.u32 %v1293, 7
  %v1295 = vsub.s32 7, %v1294
  %v1296 = vrot.slane %v1139, %v1295
  %v1297 = vlaneseq
  %v1298 = vshrl.u32 %v1297, 7
  %v1299 = vsub.s32 0, %v1298
  %v1300 = vrot.slane %v1140, %v1299
  %v1301 = vlaneseq
  %v1302 = vshrl.u32 %v1301, 7
  %v1303 = vsub.s32 1, %v1302
  %v1304 = vrot.slane %v1140, %v1303
  %v1305 = vlaneseq
  %v1306 = vshrl.u32 %v1305, 7
  %v1307 = vsub.s32 2, %v1306
  %v1308 = vrot.slane %v1140, %v1307
  %v1309 = vlaneseq
  %v1310 = vshrl.u32 %v1309, 7
  %v1311 = vsub.s32 3, %v1310
  %v1312 = vrot.slane %v1140, %v1311
  %v1313 = vlaneseq
  %v1314 = vshrl.u32 %v1313, 7
  %v1315 = vsub.s32 4, %v1314
  %v1316 = vrot.slane %v1140, %v1315
  %v1317 = vlaneseq
  %v1318 = vshrl.u32 %v1317, 7
  %v1319 = vsub.s32 5, %v1318
  %v1320 = vrot.slane %v1140, %v1319
  %v1321 = vlaneseq
  %v1322 = vshrl.u32 %v1321, 7
  %v1323 = vsub.s32 6, %v1322
  %v1324 = vrot.slane %v1140, %v1323
  %v1325 = vlaneseq
  %v1326 = vshrl.u32 %v1325, 7
  %v1327 = vsub.s32 7, %v1326
  %v1328 = vrot.slane %v1140, %v1327
  %v1329 = vlaneseq
  %v1330 = vshrl.u32 %v1329, 7
  %v1331 = vsub.s32 0, %v1330
  %v1332 = vrot.slane %v1141, %v1331
  %v1333 = vlaneseq
  %v1334 = vshrl.u32 %v1333, 7
  %v1335 = vsub.s32 1, %v1334
  %v1336 = vrot.slane %v1141, %v1335
  %v1337 = vlaneseq
  %v1338 = vshrl.u32 %v1337, 7
  %v1339 = vsub.s32 2, %v1338
  %v1340 = vrot.slane %v1141, %v1339
  %v1341 = vlaneseq
  %v1342 = vshrl.u32 %v1341, 7
  %v1343 = vsub.s32 3, %v1342
  %v1344 = vrot.slane %v1141, %v1343
  %v1345 = vlaneseq
  %v1346 = vshrl.u32 %v1345, 7
  %v1347 = vsub.s32 4, %v1346
  %v1348 = vrot.slane %v1141, %v1347
  %v1349 = vlaneseq
  %v1350 = vshrl.u32 %v1349, 7
  %v1351 = vsub.s32 5, %v1350
  %v1352 = vrot.slane %v1141, %v1351
  %v1353 = vlaneseq
  %v1354 = vshrl.u32 %v1353, 7
  %v1355 = vsub.s32 6, %v1354
  %v1356 = vrot.slane %v1141, %v1355
  %v1357 = vlaneseq
  %v1358 = vshrl.u32 %v1357, 7
  %v1359 = vsub.s32 7, %v1358
  %v1360 = vrot.slane %v1141, %v1359
  %v1361 = vlaneseq
  %v1362 = vshrl.u32 %v1361, 7
  %v1363 = vsub.s32 0, %v1362
  %v1364 = vrot.slane %v1142, %v1363
  %v1365 = vlaneseq
  %v1366 = vshrl.u32 %v1365, 7
  %v1367 = vsub.s32 1, %v1366
  %v1368 = vrot.slane %v1142, %v1367
  %v1369 = vlaneseq
  %v1370 = vshrl.u32 %v1369, 7
  %v1371 = vsub.s32 2, %v1370
  %v1372 = vrot.slane %v1142, %v1371
  %v1373 = vlaneseq
  %v1374 = vshrl.u32 %v1373, 7
  %v1375 = vsub.s32 3, %v1374
  %v1376 = vrot.slane %v1142, %v1375
  %v1377 = vlaneseq
  %v1378 = vshrl.u32 %v1377, 7
  %v1379 = vsub.s32 4, %v1378
  %v1380 = vrot.slane %v1142, %v1379
  %v1381 = vlaneseq
  %v1382 = vshrl.u32 %v1381, 7
  %v1383 = vsub.s32 5, %v1382
  %v1384 = vrot.slane %v1142, %v1383
  %v1385 = vlaneseq
  %v1386 = vshrl.u32 %v1385, 7
  %v1387 = vsub.s32 6, %v1386
  %v1388 = vrot.slane %v1142, %v1387
  %v1389 = vlaneseq
  %v1390 = vshrl.u32 %v1389, 7
  %v1391 = vsub.s32 7, %v1390
  %v1392 = vrot.slane %v1142, %v1391
  %v1393 = vlaneseq
  %v1394 = vshrl.u32 %v1393, 7
  %v1395 = vsub.s32 0, %v1394
  %v1396 = vrot.slane %v1143, %v1395
  %v1397 = vlaneseq
  %v1398 = vshrl.u32 %v1397, 7
  %v1399 = vsub.s32 1, %v1398
  %v1400 = vrot.slane %v1143, %v1399
  %v1401 = vlaneseq
  %v1402 = vshrl.u32 %v1401, 7
  %v1403 = vsub.s32 2, %v1402
  %v1404 = vrot.slane %v1143, %v1403
  %v1405 = vlaneseq
  %v1406 = vshrl.u32 %v1405, 7
  %v1407 = vsub.s32 3, %v1406
  %v1408 = vrot.slane %v1143, %v1407
  %v1409 = vlaneseq
  %v1410 = vshrl.u32 %v1409, 7
  %v1411 = vsub.s32 4, %v1410
  %v1412 = vrot.slane %v1143, %v1411
  %v1413 = vlaneseq
  %v1414 = vshrl.u32 %v1413, 7
  %v1415 = vsub.s32 5, %v1414
  %v1416 = vrot.slane %v1143, %v1415
  %v1417 = vlaneseq
  %v1418 = vshrl.u32 %v1417, 7
  %v1419 = vsub.s32 6, %v1418
  %v1420 = vrot.slane %v1143, %v1419
  %v1421 = vlaneseq
  %v1422 = vshrl.u32 %v1421, 7
  %v1423 = vsub.s32 7, %v1422
  %v1424 = vrot.slane %v1143, %v1423
  %v1425 = vlaneseq
  %v1426 = vshrl.u32 %v1425, 7
  %v1427 = vsub.s32 0, %v1426
  %v1428 = vrot.slane %v1144, %v1427
  %v1429 = vlaneseq
  %v1430 = vshrl.u32 %v1429, 7
  %v1431 = vsub.s32 1, %v1430
  %v1432 = vrot.slane %v1144, %v1431
  %v1433 = vlaneseq
  %v1434 = vshrl.u32 %v1433, 7
  %v1435 = vsub.s32 2, %v1434
  %v1436 = vrot.slane %v1144, %v1435
  %v1437 = vlaneseq
  %v1438 = vshrl.u32 %v1437, 7
  %v1439 = vsub.s32 3, %v1438
  %v1440 = vrot.slane %v1144, %v1439
  %v1441 = vlaneseq
  %v1442 = vshrl.u32 %v1441, 7
  %v1443 = vsub.s32 4, %v1442
  %v1444 = vrot.slane %v1144, %v1443
  %v1445 = vlaneseq
  %v1446 = vshrl.u32 %v1445, 7
  %v1447 = vsub.s32 5, %v1446
  %v1448 = vrot.slane %v1144, %v1447
  %v1449 = vlaneseq
  %v1450 = vshrl.u32 %v1449, 7
  %v1451 = vsub.s32 6, %v1450
  %v1452 = vrot.slane %v1144, %v1451
  %v1453 = vlaneseq
  %v1454 = vshrl.u32 %v1453, 7
  %v1455 = vsub.s32 7, %v1454
  %v1456 = vrot.slane %v1144, %v1455
  %v1457 = vlaneseq
  %v1458 = vshrl.u32 %v1457, 7
  %v1459 = vsub.s32 0, %v1458
  %v1460 = vrot.slane %v1145, %v1459
  %v1461 = vlaneseq
  %v1462 = vshrl.u32 %v1461, 7
  %v1463 = vsub.s32 1, %v1462
  %v1464 = vrot.slane %v1145, %v1463
  %v1465 = vlaneseq
  %v1466 = vshrl.u32 %v1465, 7
  %v1467 = vsub.s32 2, %v1466
  %v1468 = vrot.slane %v1145, %v1467
  %v1469 = vlaneseq
  %v1470 = vshrl.u32 %v1469, 7
  %v1471 = vsub.s32 3, %v1470
  %v1472 = vrot.slane %v1145, %v1471
  %v1473 = vlaneseq
  %v1474 = vshrl.u32 %v1473, 7
  %v1475 = vsub.s32 4, %v1474
  %v1476 = vrot.slane %v1145, %v1475
  %v1477 = vlaneseq
  %v1478 = vshrl.u32 %v1477, 7
  %v1479 = vsub.s32 5, %v1478
  %v1480 = vrot.slane %v1145, %v1479
  %v1481 = vlaneseq
  %v1482 = vshrl.u32 %v1481, 7
  %v1483 = vsub.s32 6, %v1482
  %v1484 = vrot.slane %v1145, %v1483
  %v1485 = vlaneseq
  %v1486 = vshrl.u32 %v1485, 7
  %v1487 = vsub.s32 7, %v1486
  %v1488 = vrot.slane %v1145, %v1487
  %v1489 = vlaneseq
  %v1490 = vshrl.u32 %v1489, 7
  %v1491 = vsub.s32 0, %v1490
  %v1492 = vrot.slane %v1146, %v1491
  %v1493 = vlaneseq
  %v1494 = vshrl.u32 %v1493, 7
  %v1495 = vsub.s32 1, %v1494
  %v1496 = vrot.slane %v1146, %v1495
  %v1497 = vlaneseq
  %v1498 = vshrl.u32 %v1497, 7
  %v1499 = vsub.s32 2, %v1498
  %v1500 = vrot.slane %v1146, %v1499
  %v1501 = vlaneseq
  %v1502 = vshrl.u32 %v1501, 7
  %v1503 = vsub.s32 3, %v1502
  %v1504 = vrot.slane %v1146, %v1503
  %v1505 = vlaneseq
  %v1506 = vshrl.u32 %v1505, 7
  %v1507 = vsub.s32 4, %v1506
  %v1508 = vrot.slane %v1146, %v1507
  %v1509 = vlaneseq
  %v1510 = vshrl.u32 %v1509, 7
  %v1511 = vsub.s32 5, %v1510
  %v1512 = vrot.slane %v1146, %v1511
  %v1513 = vlaneseq
  %v1514 = vshrl.u32 %v1513, 7
  %v1515 = vsub.s32 6, %v1514
  %v1516 = vrot.slane %v1146, %v1515
  %v1517 = vlaneseq
  %v1518 = vshrl.u32 %v1517, 7
  %v1519 = vsub.s32 7, %v1518
  %v1520 = vrot.slane %v1146, %v1519
  %v1521 = vlaneseq
  %v1522 = vshrl.u32 %v1521, 7
  %v1523 = vsub.s32 0, %v1522
  %v1524 = vrot.slane %v1147, %v1523
  %v1525 = vlaneseq
  %v1526 = vshrl.u32 %v1525, 7
  %v1527 = vsub.s32 1, %v1526
  %v1528 = vrot.slane %v1147, %v1527
  %v1529 = vlaneseq
  %v1530 = vshrl.u32 %v1529, 7
  %v1531 = vsub.s32 2, %v1530
  %v1532 = vrot.slane %v1147, %v1531
  %v1533 = vlaneseq
  %v1534 = vshrl.u32 %v1533, 7
  %v1535 = vsub.s32 3, %v1534
  %v1536 = vrot.slane %v1147, %v1535
  %v1537 = vlaneseq
  %v1538 = vshrl.u32 %v1537, 7
  %v1539 = vsub.s32 4, %v1538
  %v1540 = vrot.slane %v1147, %v1539
  %v1541 = vlaneseq
  %v1542 = vshrl.u32 %v1541, 7
  %v1543 = vsub.s32 5, %v1542
  %v1544 = vrot.slane %v1147, %v1543
  %v1545 = vlaneseq
  %v1546 = vshrl.u32 %v1545, 7
  %v1547 = vsub.s32 6, %v1546
  %v1548 = vrot.slane %v1147, %v1547
  %v1549 = vlaneseq
  %v1550 = vshrl.u32 %v1549, 7
  %v1551 = vsub.s32 7, %v1550
  %v1552 = vrot.slane %v1147, %v1551
  %v1553 = vlaneseq
  %v1554 = vshrl.u32 %v1553, 7
  %v1555 = vsub.s32 0, %v1554
  %v1556 = vrot.slane %v1148, %v1555
  %v1557 = vlaneseq
  %v1558 = vshrl.u32 %v1557, 7
  %v1559 = vsub.s32 1, %v1558
  %v1560 = vrot.slane %v1148, %v1559
  %v1561 = vlaneseq
  %v1562 = vshrl.u32 %v1561, 7
  %v1563 = vsub.s32 2, %v1562
  %v1564 = vrot.slane %v1148, %v1563
  %v1565 = vlaneseq
  %v1566 = vshrl.u32 %v1565, 7
  %v1567 = vsub.s32 3, %v1566
  %v1568 = vrot.slane %v1148, %v1567
  %v1569 = vlaneseq
  %v1570 = vshrl.u32 %v1569, 7
  %v1571 = vsub.s32 4, %v1570
  %v1572 = vrot.slane %v1148, %v1571
  %v1573 = vlaneseq
  %v1574 = vshrl.u32 %v1573, 7
  %v1575 = vsub.s32 5, %v1574
  %v1576 = vrot.slane %v1148, %v1575
  %v1577 = vlaneseq
  %v1578 = vshrl.u32 %v1577, 7
  %v1579 = vsub.s32 6, %v1578
  %v1580 = vrot.slane %v1148, %v1579
  %v1581 = vlaneseq
  %v1582 = vshrl.u32 %v1581, 7
  %v1583 = vsub.s32 7, %v1582
  %v1584 = vrot.slane %v1148, %v1583
  %v1585 = vlaneseq
  %v1586 = vshrl.u32 %v1585, 7
  %v1587 = vsub.s32 0, %v1586
  %v1588 = vrot.slane %v1149, %v1587
  %v1589 = vlaneseq
  %v1590 = vshrl.u32 %v1589, 7
  %v1591 = vsub.s32 1, %v1590
  %v1592 = vrot.slane %v1149, %v1591
  %v1593 = vlaneseq
  %v1594 = vshrl.u32 %v1593, 7
  %v1595 = vsub.s32 2, %v1594
  %v1596 = vrot.slane %v1149, %v1595
  %v1597 = vlaneseq
  %v1598 = vshrl.u32 %v1597, 7
  %v1599 = vsub.s32 3, %v1598
  %v1600 = vrot.slane %v1149, %v1599
  %v1601 = vlaneseq
  %v1602 = vshrl.u32 %v1601, 7
  %v1603 = vsub.s32 4, %v1602
  %v1604 = vrot.slane %v1149, %v1603
  %v1605 = vlaneseq
  %v1606 = vshrl.u32 %v1605, 7
  %v1607 = vsub.s32 5, %v1606
  %v1608 = vrot.slane %v1149, %v1607
  %v1609 = vlaneseq
  %v1610 = vshrl.u32 %v1609, 7
  %v1611 = vsub.s32 6, %v1610
  %v1612 = vrot.slane %v1149, %v1611
  %v1613 = vlaneseq
  %v1614 = vshrl.u32 %v1613, 7
  %v1615 = vsub.s32 7, %v1614
  %v1616 = vrot.slane %v1149, %v1615
  %v1617 = vlaneseq
  %v1618 = vshrl.u32 %v1617, 7
  %v1619 = vsub.s32 0, %v1618
  %v1620 = vrot.slane %v1150, %v1619
  %v1621 = vlaneseq
  %v1622 = vshrl.u32 %v1621, 7
  %v1623 = vsub.s32 1, %v1622
  %v1624 = vrot.slane %v1150, %v1623
  %v1625 = vlaneseq
  %v1626 = vshrl.u32 %v1625, 7
  %v1627 = vsub.s32 2, %v1626
  %v1628 = vrot.slane %v1150, %v1627
  %v1629 = vlaneseq
  %v1630 = vshrl.u32 %v1629, 7
  %v1631 = vsub.s32 3, %v1630
  %v1632 = vrot.slane %v1150, %v1631
  %v1633 = vlaneseq
  %v1634 = vshrl.u32 %v1633, 7
  %v1635 = vsub.s32 4, %v1634
  %v1636 = vrot.slane %v1150, %v1635
  %v1637 = vlaneseq
  %v1638 = vshrl.u32 %v1637, 7
  %v1639 = vsub.s32 5, %v1638
  %v1640 = vrot.slane %v1150, %v1639
  %v1641 = vlaneseq
  %v1642 = vshrl.u32 %v1641, 7
  %v1643 = vsub.s32 6, %v1642
  %v1644 = vrot.slane %v1150, %v1643
  %v1645 = vlaneseq
  %v1646 = vshrl.u32 %v1645, 7
  %v1647 = vsub.s32 7, %v1646
  %v1648 = vrot.slane %v1150, %v1647
  %v1649 = vlaneseq
  %v1650 = vshrl.u32 %v1649, 7
  %v1651 = vsub.s32 0, %v1650
  %v1652 = vrot.slane %v1151, %v1651
  %v1653 = vlaneseq
  %v1654 = vshrl.u32 %v1653, 7
  %v1655 = vsub.s32 1, %v1654
  %v1656 = vrot.slane %v1151, %v1655
  %v1657 = vlaneseq
  %v1658 = vshrl.u32 %v1657, 7
  %v1659 = vsub.s32 2, %v1658
  %v1660 = vrot.slane %v1151, %v1659
  %v1661 = vlaneseq
  %v1662 = vshrl.u32 %v1661, 7
  %v1663 = vsub.s32 3, %v1662
  %v1664 = vrot.slane %v1151, %v1663
  %v1665 = vlaneseq
  %v1666 = vshrl.u32 %v1665, 7
  %v1667 = vsub.s32 4, %v1666
  %v1668 = vrot.slane %v1151, %v1667
  %v1669 = vlaneseq
  %v1670 = vshrl.u32 %v1669, 7
  %v1671 = vsub.s32 5, %v1670
  %v1672 = vrot.slane %v1151, %v1671
  %v1673 = vlaneseq
  %v1674 = vshrl.u32 %v1673, 7
  %v1675 = vsub.s32 6, %v1674
  %v1676 = vrot.slane %v1151, %v1675
  %v1677 = vlaneseq
  %v1678 = vshrl.u32 %v1677, 7
  %v1679 = vsub.s32 7, %v1678
  %v1680 = vrot.slane %v1151, %v1679
  %v1681 = vlaneseq
  %v1682 = vshrl.u32 %v1681, 7
  %v1683 = vsub.s32 0, %v1682
  %v1684 = vrot.slane %v1152, %v1683
  %v1685 = vlaneseq
  %v1686 = vshrl.u32 %v1685, 7
  %v1687 = vsub.s32 1, %v1686
  %v1688 = vrot.slane %v1152, %v1687
  %v1689 = vlaneseq
  %v1690 = vshrl.u32 %v1689, 7
  %v1691 = vsub.s32 2, %v1690
  %v1692 = vrot.slane %v1152, %v1691
  %v1693 = vlaneseq
  %v1694 = vshrl.u32 %v1693, 7
  %v1695 = vsub.s32 3, %v1694
  %v1696 = vrot.slane %v1152, %v1695
  %v1697 = vlaneseq
  %v1698 = vshrl.u32 %v1697, 7
  %v1699 = vsub.s32 4, %v1698
  %v1700 = vrot.slane %v1152, %v1699
  %v1701 = vlaneseq
  %v1702 = vshrl.u32 %v1701, 7
  %v1703 = vsub.s32 5, %v1702
  %v1704 = vrot.slane %v1152, %v1703
  %v1705 = vlaneseq
  %v1706 = vshrl.u32 %v1705, 7
  %v1707 = vsub.s32 6, %v1706
  %v1708 = vrot.slane %v1152, %v1707
  %v1709 = vlaneseq
  %v1710 = vshrl.u32 %v1709, 7
  %v1711 = vsub.s32 7, %v1710
  %v1712 = vrot.slane %v1152, %v1711
  %v1713 = vlaneseq
  %v1714 = vshrl.u32 %v1713, 7
  %v1715 = vsub.s32 0, %v1714
  %v1716 = vrot.slane %v1153, %v1715
  %v1717 = vlaneseq
  %v1718 = vshrl.u32 %v1717, 7
  %v1719 = vsub.s32 1, %v1718
  %v1720 = vrot.slane %v1153, %v1719
  %v1721 = vlaneseq
  %v1722 = vshrl.u32 %v1721, 7
  %v1723 = vsub.s32 2, %v1722
  %v1724 = vrot.slane %v1153, %v1723
  %v1725 = vlaneseq
  %v1726 = vshrl.u32 %v1725, 7
  %v1727 = vsub.s32 3, %v1726
  %v1728 = vrot.slane %v1153, %v1727
  %v1729 = vlaneseq
  %v1730 = vshrl.u32 %v1729, 7
  %v1731 = vsub.s32 4, %v1730
  %v1732 = vrot.slane %v1153, %v1731
  %v1733 = vlaneseq
  %v1734 = vshrl.u32 %v1733, 7
  %v1735 = vsub.s32 5, %v1734
  %v1736 = vrot.slane %v1153, %v1735
  %v1737 = vlaneseq
  %v1738 = vshrl.u32 %v1737, 7
  %v1739 = vsub.s32 6, %v1738
  %v1740 = vrot.slane %v1153, %v1739
  %v1741 = vlaneseq
  %v1742 = vshrl.u32 %v1741, 7
  %v1743 = vsub.s32 7, %v1742
  %v1744 = vrot.slane %v1153, %v1743
  %v1745 = vlaneseq
  %v1746 = vshrl.u32 %v1745, 7
  %v1747 = vsub.s32 0, %v1746
  %v1748 = vrot.slane %v1154, %v1747
  %v1749 = vlaneseq
  %v1750 = vshrl.u32 %v1749, 7
  %v1751 = vsub.s32 1, %v1750
  %v1752 = vrot.slane %v1154, %v1751
  %v1753 = vlaneseq
  %v1754 = vshrl.u32 %v1753, 7
  %v1755 = vsub.s32 2, %v1754
  %v1756 = vrot.slane %v1154, %v1755
  %v1757 = vlaneseq
  %v1758 = vshrl.u32 %v1757, 7
  %v1759 = vsub.s32 3, %v1758
  %v1760 = vrot.slane %v1154, %v1759
  %v1761 = vlaneseq
  %v1762 = vshrl.u32 %v1761, 7
  %v1763 = vsub.s32 4, %v1762
  %v1764 = vrot.slane %v1154, %v1763
  %v1765 = vlaneseq
  %v1766 = vshrl.u32 %v1765, 7
  %v1767 = vsub.s32 5, %v1766
  %v1768 = vrot.slane %v1154, %v1767
  %v1769 = vlaneseq
  %v1770 = vshrl.u32 %v1769, 7
  %v1771 = vsub.s32 6, %v1770
  %v1772 = vrot.slane %v1154, %v1771
  %v1773 = vlaneseq
  %v1774 = vshrl.u32 %v1773, 7
  %v1775 = vsub.s32 7, %v1774
  %v1776 = vrot.slane %v1154, %v1775
  %v1777 = vlaneseq
  %v1778 = vshrl.u32 %v1777, 7
  %v1779 = vsub.s32 0, %v1778
  %v1780 = vrot.slane %v1155, %v1779
  %v1781 = vlaneseq
  %v1782 = vshrl.u32 %v1781, 7
  %v1783 = vsub.s32 1, %v1782
  %v1784 = vrot.slane %v1155, %v1783
  %v1785 = vlaneseq
  %v1786 = vshrl.u32 %v1785, 7
  %v1787 = vsub.s32 2, %v1786
  %v1788 = vrot.slane %v1155, %v1787
  %v1789 = vlaneseq
  %v1790 = vshrl.u32 %v1789, 7
  %v1791 = vsub.s32 3, %v1790
  %v1792 = vrot.slane %v1155, %v1791
  %v1793 = vlaneseq
  %v1794 = vshrl.u32 %v1793, 7
  %v1795 = vsub.s32 4, %v1794
  %v1796 = vrot.slane %v1155, %v1795
  %v1797 = vlaneseq
  %v1798 = vshrl.u32 %v1797, 7
  %v1799 = vsub.s32 5, %v1798
  %v1800 = vrot.slane %v1155, %v1799
  %v1801 = vlaneseq
  %v1802 = vshrl.u32 %v1801, 7
  %v1803 = vsub.s32 6, %v1802
  %v1804 = vrot.slane %v1155, %v1803
  %v1805 = vlaneseq
  %v1806 = vshrl.u32 %v1805, 7
  %v1807 = vsub.s32 7, %v1806
  %v1808 = vrot.slane %v1155, %v1807
  %v1809 = vlaneseq
  %v1810 = vshrl.u32 %v1809, 7
  %v1811 = vsub.s32 0, %v1810
  %v1812 = vrot.slane %v1156, %v1811
  %v1813 = vlaneseq
  %v1814 = vshrl.u32 %v1813, 7
  %v1815 = vsub.s32 1, %v1814
  %v1816 = vrot.slane %v1156, %v1815
  %v1817 = vlaneseq
  %v1818 = vshrl.u32 %v1817, 7
  %v1819 = vsub.s32 2, %v1818
  %v1820 = vrot.slane %v1156, %v1819
  %v1821 = vlaneseq
  %v1822 = vshrl.u32 %v1821, 7
  %v1823 = vsub.s32 3, %v1822
  %v1824 = vrot.slane %v1156, %v1823
  %v1825 = vlaneseq
  %v1826 = vshrl.u32 %v1825, 7
  %v1827 = vsub.s32 4, %v1826
  %v1828 = vrot.slane %v1156, %v1827
  %v1829 = vlaneseq
  %v1830 = vshrl.u32 %v1829, 7
  %v1831 = vsub.s32 5, %v1830
  %v1832 = vrot.slane %v1156, %v1831
  %v1833 = vlaneseq
  %v1834 = vshrl.u32 %v1833, 7
  %v1835 = vsub.s32 6, %v1834
  %v1836 = vrot.slane %v1156, %v1835
  %v1837 = vlaneseq
  %v1838 = vshrl.u32 %v1837, 7
  %v1839 = vsub.s32 7, %v1838
  %v1840 = vrot.slane %v1156, %v1839
  %v1841 = vlaneseq
  %v1842 = vshrl.u32 %v1841, 7
  %v1843 = vsub.s32 0, %v1842
  %v1844 = vrot.slane %v1157, %v1843
  %v1845 = vlaneseq
  %v1846 = vshrl.u32 %v1845, 7
  %v1847 = vsub.s32 1, %v1846
  %v1848 = vrot.slane %v1157, %v1847
  %v1849 = vlaneseq
  %v1850 = vshrl.u32 %v1849, 7
  %v1851 = vsub.s32 2, %v1850
  %v1852 = vrot.slane %v1157, %v1851
  %v1853 = vlaneseq
  %v1854 = vshrl.u32 %v1853, 7
  %v1855 = vsub.s32 3, %v1854
  %v1856 = vrot.slane %v1157, %v1855
  %v1857 = vlaneseq
  %v1858 = vshrl.u32 %v1857, 7
  %v1859 = vsub.s32 4, %v1858
  %v1860 = vrot.slane %v1157, %v1859
  %v1861 = vlaneseq
  %v1862 = vshrl.u32 %v1861, 7
  %v1863 = vsub.s32 5, %v1862
  %v1864 = vrot.slane %v1157, %v1863
  %v1865 = vlaneseq
  %v1866 = vshrl.u32 %v1865, 7
  %v1867 = vsub.s32 6, %v1866
  %v1868 = vrot.slane %v1157, %v1867
  %v1869 = vlaneseq
  %v1870 = vshrl.u32 %v1869, 7
  %v1871 = vsub.s32 7, %v1870
  %v1872 = vrot.slane %v1157, %v1871
  %v1873 = vlaneseq
  %v1874 = vshrl.u32 %v1873, 7
  %v1875 = vsub.s32 0, %v1874
  %v1876 = vrot.slane %v1158, %v1875
  %v1877 = vlaneseq
  %v1878 = vshrl.u32 %v1877, 7
  %v1879 = vsub.s32 1, %v1878
  %v1880 = vrot.slane %v1158, %v1879
  %v1881 = vlaneseq
  %v1882 = vshrl.u32 %v1881, 7
  %v1883 = vsub.s32 2, %v1882
  %v1884 = vrot.slane %v1158, %v1883
  %v1885 = vlaneseq
  %v1886 = vshrl.u32 %v1885, 7
  %v1887 = vsub.s32 3, %v1886
  %v1888 = vrot.slane %v1158, %v1887
  %v1889 = vlaneseq
  %v1890 = vshrl.u32 %v1889, 7
  %v1891 = vsub.s32 4, %v1890
  %v1892 = vrot.slane %v1158, %v1891
  %v1893 = vlaneseq
  %v1894 = vshrl.u32 %v1893, 7
  %v1895 = vsub.s32 5, %v1894
  %v1896 = vrot.slane %v1158, %v1895
  %v1897 = vlaneseq
  %v1898 = vshrl.u32 %v1897, 7
  %v1899 = vsub.s32 6, %v1898
  %v1900 = vrot.slane %v1158, %v1899
  %v1901 = vlaneseq
  %v1902 = vshrl.u32 %v1901, 7
  %v1903 = vsub.s32 7, %v1902
  %v1904 = vrot.slane %v1158, %v1903
  %v1905 = vlaneseq
  %v1906 = vshrl.u32 %v1905, 7
  %v1907 = vsub.s32 0, %v1906
  %v1908 = vrot.slane %v1159, %v1907
  %v1909 = vlaneseq
  %v1910 = vshrl.u32 %v1909, 7
  %v1911 = vsub.s32 1, %v1910
  %v1912 = vrot.slane %v1159, %v1911
  %v1913 = vlaneseq
  %v1914 = vshrl.u32 %v1913, 7
  %v1915 = vsub.s32 2, %v1914
  %v1916 = vrot.slane %v1159, %v1915
  %v1917 = vlaneseq
  %v1918 = vshrl.u32 %v1917, 7
  %v1919 = vsub.s32 3, %v1918
  %v1920 = vrot.slane %v1159, %v1919
  %v1921 = vlaneseq
  %v1922 = vshrl.u32 %v1921, 7
  %v1923 = vsub.s32 4, %v1922
  %v1924 = vrot.slane %v1159, %v1923
  %v1925 = vlaneseq
  %v1926 = vshrl.u32 %v1925, 7
  %v1927 = vsub.s32 5, %v1926
  %v1928 = vrot.slane %v1159, %v1927
  %v1929 = vlaneseq
  %v1930 = vshrl.u32 %v1929, 7
  %v1931 = vsub.s32 6, %v1930
  %v1932 = vrot.slane %v1159, %v1931
  %v1933 = vlaneseq
  %v1934 = vshrl.u32 %v1933, 7
  %v1935 = vsub.s32 7, %v1934
  %v1936 = vrot.slane %v1159, %v1935
  %v1937 = vlaneseq
  %v1938 = vshrl.u32 %v1937, 7
  %v1939 = vsub.s32 0, %v1938
  %v1940 = vrot.slane %v1160, %v1939
  %v1941 = vlaneseq
  %v1942 = vshrl.u32 %v1941, 7
  %v1943 = vsub.s32 1, %v1942
  %v1944 = vrot.slane %v1160, %v1943
  %v1945 = vlaneseq
  %v1946 = vshrl.u32 %v1945, 7
  %v1947 = vsub.s32 2, %v1946
  %v1948 = vrot.slane %v1160, %v1947
  %v1949 = vlaneseq
  %v1950 = vshrl.u32 %v1949, 7
  %v1951 = vsub.s32 3, %v1950
  %v1952 = vrot.slane %v1160, %v1951
  %v1953 = vlaneseq
  %v1954 = vshrl.u32 %v1953, 7
  %v1955 = vsub.s32 4, %v1954
  %v1956 = vrot.slane %v1160, %v1955
  %v1957 = vlaneseq
  %v1958 = vshrl.u32 %v1957, 7
  %v1959 = vsub.s32 5, %v1958
  %v1960 = vrot.slane %v1160, %v1959
  %v1961 = vlaneseq
  %v1962 = vshrl.u32 %v1961, 7
  %v1963 = vsub.s32 6, %v1962
  %v1964 = vrot.slane %v1160, %v1963
  %v1965 = vlaneseq
  %v1966 = vshrl.u32 %v1965, 7
  %v1967 = vsub.s32 7, %v1966
  %v1968 = vrot.slane %v1160, %v1967
  %v1969 = vlaneseq
  %v1970 = vshrl.u32 %v1969, 7
  %v1971 = vsub.s32 0, %v1970
  %v1972 = vrot.slane %v1161, %v1971
  %v1973 = vlaneseq
  %v1974 = vshrl.u32 %v1973, 7
  %v1975 = vsub.s32 1, %v1974
  %v1976 = vrot.slane %v1161, %v1975
  %v1977 = vlaneseq
  %v1978 = vshrl.u32 %v1977, 7
  %v1979 = vsub.s32 2, %v1978
  %v1980 = vrot.slane %v1161, %v1979
  %v1981 = vlaneseq
  %v1982 = vshrl.u32 %v1981, 7
  %v1983 = vsub.s32 3, %v1982
  %v1984 = vrot.slane %v1161, %v1983
  %v1985 = vlaneseq
  %v1986 = vshrl.u32 %v1985, 7
  %v1987 = vsub.s32 4, %v1986
  %v1988 = vrot.slane %v1161, %v1987
  %v1989 = vlaneseq
  %v1990 = vshrl.u32 %v1989, 7
  %v1991 = vsub.s32 5, %v1990
  %v1992 = vrot.slane %v1161, %v1991
  %v1993 = vlaneseq
  %v1994 = vshrl.u32 %v1993, 7
  %v1995 = vsub.s32 6, %v1994
  %v1996 = vrot.slane %v1161, %v1995
  %v1997 = vlaneseq
  %v1998 = vshrl.u32 %v1997, 7
  %v1999 = vsub.s32 7, %v1998
  %v2000 = vrot.slane %v1161, %v1999
  %v2001 = vlaneseq
  %v2002 = vshrl.u32 %v2001, 7
  %v2003 = vsub.s32 0, %v2002
  %v2004 = vrot.slane %v1162, %v2003
  %v2005 = vlaneseq
  %v2006 = vshrl.u32 %v2005, 7
  %v2007 = vsub.s32 1, %v2006
  %v2008 = vrot.slane %v1162, %v2007
  %v2009 = vlaneseq
  %v2010 = vshrl.u32 %v2009, 7
  %v2011 = vsub.s32 2, %v2010
  %v2012 = vrot.slane %v1162, %v2011
  %v2013 = vlaneseq
  %v2014 = vshrl.u32 %v2013, 7
  %v2015 = vsub.s32 3, %v2014
  %v2016 = vrot.slane %v1162, %v2015
  %v2017 = vlaneseq
  %v2018 = vshrl.u32 %v2017, 7
  %v2019 = vsub.s32 4, %v2018
  %v2020 = vrot.slane %v1162, %v2019
  %v2021 = vlaneseq
  %v2022 = vshrl.u32 %v2021, 7
  %v2023 = vsub.s32 5, %v2022
  %v2024 = vrot.slane %v1162, %v2023
  %v2025 = vlaneseq
  %v2026 = vshrl.u32 %v2025, 7
  %v2027 = vsub.s32 6, %v2026
  %v2028 = vrot.slane %v1162, %v2027
  %v2029 = vlaneseq
  %v2030 = vshrl.u32 %v2029, 7
  %v2031 = vsub.s32 7, %v2030
  %v2032 = vrot.slane %v1162, %v2031
  %v2033 = vlaneseq
  %v2034 = vshrl.u32 %v2033, 7
  %v2035 = vsub.s32 0, %v2034
  %v2036 = vrot.slane %v1163, %v2035
  %v2037 = vlaneseq
  %v2038 = vshrl.u32 %v2037, 7
  %v2039 = vsub.s32 1, %v2038
  %v2040 = vrot.slane %v1163, %v2039
  %v2041 = vlaneseq
  %v2042 = vshrl.u32 %v2041, 7
  %v2043 = vsub.s32 2, %v2042
  %v2044 = vrot.slane %v1163, %v2043
  %v2045 = vlaneseq
  %v2046 = vshrl.u32 %v2045, 7
  %v2047 = vsub.s32 3, %v2046
  %v2048 = vrot.slane %v1163, %v2047
  %v2049 = vlaneseq
  %v2050 = vshrl.u32 %v2049, 7
  %v2051 = vsub.s32 4, %v2050
  %v2052 = vrot.slane %v1163, %v2051
  %v2053 = vlaneseq
  %v2054 = vshrl.u32 %v2053, 7
  %v2055 = vsub.s32 5, %v2054
  %v2056 = vrot.slane %v1163, %v2055
  %v2057 = vlaneseq
  %v2058 = vshrl.u32 %v2057, 7
  %v2059 = vsub.s32 6, %v2058
  %v2060 = vrot.slane %v1163, %v2059
  %v2061 = vlaneseq
  %v2062 = vshrl.u32 %v2061, 7
  %v2063 = vsub.s32 7, %v2062
  %v2064 = vrot.slane %v1163, %v2063
  %v2065 = vlaneseq
  %v2066 = vshrl.u32 %v2065, 7
  %v2067 = vsub.s32 0, %v2066
  %v2068 = vrot.slane %v1164, %v2067
  %v2069 = vlaneseq
  %v2070 = vshrl.u32 %v2069, 7
  %v2071 = vsub.s32 1, %v2070
  %v2072 = vrot.slane %v1164, %v2071
  %v2073 = vlaneseq
  %v2074 = vshrl.u32 %v2073, 7
  %v2075 = vsub.s32 2, %v2074
  %v2076 = vrot.slane %v1164, %v2075
  %v2077 = vlaneseq
  %v2078 = vshrl.u32 %v2077, 7
  %v2079 = vsub.s32 3, %v2078
  %v2080 = vrot.slane %v1164, %v2079
  %v2081 = vlaneseq
  %v2082 = vshrl.u32 %v2081, 7
  %v2083 = vsub.s32 4, %v2082
  %v2084 = vrot.slane %v1164, %v2083
  %v2085 = vlaneseq
  %v2086 = vshrl.u32 %v2085, 7
  %v2087 = vsub.s32 5, %v2086
  %v2088 = vrot.slane %v1164, %v2087
  %v2089 = vlaneseq
  %v2090 = vshrl.u32 %v2089, 7
  %v2091 = vsub.s32 6, %v2090
  %v2092 = vrot.slane %v1164, %v2091
  %v2093 = vlaneseq
  %v2094 = vshrl.u32 %v2093, 7
  %v2095 = vsub.s32 7, %v2094
  %v2096 = vrot.slane %v1164, %v2095
  %v2097 = vlaneseq
  %v2098 = vshrl.u32 %v2097, 7
  %v2099 = vsub.s32 0, %v2098
  %v2100 = vrot.slane %v1165, %v2099
  %v2101 = vlaneseq
  %v2102 = vshrl.u32 %v2101, 7
  %v2103 = vsub.s32 1, %v2102
  %v2104 = vrot.slane %v1165, %v2103
  %v2105 = vlaneseq
  %v2106 = vshrl.u32 %v2105, 7
  %v2107 = vsub.s32 2, %v2106
  %v2108 = vrot.slane %v1165, %v2107
  %v2109 = vlaneseq
  %v2110 = vshrl.u32 %v2109, 7
  %v2111 = vsub.s32 3, %v2110
  %v2112 = vrot.slane %v1165, %v2111
  %v2113 = vlaneseq
  %v2114 = vshrl.u32 %v2113, 7
  %v2115 = vsub.s32 4, %v2114
  %v2116 = vrot.slane %v1165, %v2115
  %v2117 = vlaneseq
  %v2118 = vshrl.u32 %v2117, 7
  %v2119 = vsub.s32 5, %v2118
  %v2120 = vrot.slane %v1165, %v2119
  %v2121 = vlaneseq
  %v2122 = vshrl.u32 %v2121, 7
  %v2123 = vsub.s32 6, %v2122
  %v2124 = vrot.slane %v1165, %v2123
  %v2125 = vlaneseq
  %v2126 = vshrl.u32 %v2125, 7
  %v2127 = vsub.s32 7, %v2126
  %v2128 = vrot.slane %v1165, %v2127
  %v2129 = vlaneseq
  %v2130 = vshrl.u32 %v2129, 7
  %v2131 = vsub.s32 0, %v2130
  %v2132 = vrot.slane %v1166, %v2131
  %v2133 = vlaneseq
  %v2134 = vshrl.u32 %v2133, 7
  %v2135 = vsub.s32 1, %v2134
  %v2136 = vrot.slane %v1166, %v2135
  %v2137 = vlaneseq
  %v2138 = vshrl.u32 %v2137, 7
  %v2139 = vsub.s32 2, %v2138
  %v2140 = vrot.slane %v1166, %v2139
  %v2141 = vlaneseq
  %v2142 = vshrl.u32 %v2141, 7
  %v2143 = vsub.s32 3, %v2142
  %v2144 = vrot.slane %v1166, %v2143
  %v2145 = vlaneseq
  %v2146 = vshrl.u32 %v2145, 7
  %v2147 = vsub.s32 4, %v2146
  %v2148 = vrot.slane %v1166, %v2147
  %v2149 = vlaneseq
  %v2150 = vshrl.u32 %v2149, 7
  %v2151 = vsub.s32 5, %v2150
  %v2152 = vrot.slane %v1166, %v2151
  %v2153 = vlaneseq
  %v2154 = vshrl.u32 %v2153, 7
  %v2155 = vsub.s32 6, %v2154
  %v2156 = vrot.slane %v1166, %v2155
  %v2157 = vlaneseq
  %v2158 = vshrl.u32 %v2157, 7
  %v2159 = vsub.s32 7, %v2158
  %v2160 = vrot.slane %v1166, %v2159
  %v2161 = vlaneseq
  %v2162 = vshrl.u32 %v2161, 7
  %v2163 = vsub.s32 0, %v2162
  %v2164 = vrot.slane %v1167, %v2163
  %v2165 = vlaneseq
  %v2166 = vshrl.u32 %v2165, 7
  %v2167 = vsub.s32 1, %v2166
  %v2168 = vrot.slane %v1167, %v2167
  %v2169 = vlaneseq
  %v2170 = vshrl.u32 %v2169, 7
  %v2171 = vsub.s32 2, %v2170
  %v2172 = vrot.slane %v1167, %v2171
  %v2173 = vlaneseq
  %v2174 = vshrl.u32 %v2173, 7
  %v2175 = vsub.s32 3, %v2174
  %v2176 = vrot.slane %v1167, %v2175
  %v2177 = vlaneseq
  %v2178 = vshrl.u32 %v2177, 7
  %v2179 = vsub.s32 4, %v2178
  %v2180 = vrot.slane %v1167, %v2179
  %v2181 = vlaneseq
  %v2182 = vshrl.u32 %v2181, 7
  %v2183 = vsub.s32 5, %v2182
  %v2184 = vrot.slane %v1167, %v2183
  %v2185 = vlaneseq
  %v2186 = vshrl.u32 %v2185, 7
  %v2187 = vsub.s32 6, %v2186
  %v2188 = vrot.slane %v1167, %v2187
  %v2189 = vlaneseq
  %v2190 = vshrl.u32 %v2189, 7
  %v2191 = vsub.s32 7, %v2190
  %v2192 = vrot.slane %v1167, %v2191
  %v2193 = vlaneseq
  %v2194 = vshrl.u32 %v2193, 7
  %v2195 = vsub.s32 0, %v2194
  %v2196 = vrot.slane %v1168, %v2195
  %v2197 = vlaneseq
  %v2198 = vshrl.u32 %v2197, 7
  %v2199 = vsub.s32 1, %v2198
  %v2200 = vrot.slane %v1168, %v2199
  %v2201 = vlaneseq
  %v2202 = vshrl.u32 %v2201, 7
  %v2203 = vsub.s32 2, %v2202
  %v2204 = vrot.slane %v1168, %v2203
  %v2205 = vlaneseq
  %v2206 = vshrl.u32 %v2205, 7
  %v2207 = vsub.s32 3, %v2206
  %v2208 = vrot.slane %v1168, %v2207
  %v2209 = vlaneseq
  %v2210 = vshrl.u32 %v2209, 7
  %v2211 = vsub.s32 4, %v2210
  %v2212 = vrot.slane %v1168, %v2211
  %v2213 = vlaneseq
  %v2214 = vshrl.u32 %v2213, 7
  %v2215 = vsub.s32 5, %v2214
  %v2216 = vrot.slane %v1168, %v2215
  %v2217 = vlaneseq
  %v2218 = vshrl.u32 %v2217, 7
  %v2219 = vsub.s32 6, %v2218
  %v2220 = vrot.slane %v1168, %v2219
  %v2221 = vlaneseq
  %v2222 = vshrl.u32 %v2221, 7
  %v2223 = vsub.s32 7, %v2222
  %v2224 = vrot.slane %v1168, %v2223
  %v2225 = vcombine.low %v1204, %v1208
  %v2226 = vcombine.low %v1212, %v1216
  %v2227 = vcombine.low %v1220, %v1224
  %v2228 = vcombine.low %v1228, %v1232
  %v2230 = vunpack.c.l.s4 1966171168
  %v2231 = vunpack.c.0.s8 %v2230
  %v2232 = vlaneseq
  %v2233 = vshrl.u32 %v2232, 7
  %v2234 = vsub.s32 %v2231, %v2233
  %v2235 = vrot.slane %v2225, %v2234
  %v2237 = vunpack.c.l.s4 1966171168
  %v2238 = vunpack.c.0.s8 %v2237
  %v2239 = vlaneseq
  %v2240 = vshrl.u32 %v2239, 7
  %v2241 = vsub.s32 %v2238, %v2240
  %v2242 = vrot.slane %v2226, %v2241
  %v2244 = vunpack.c.l.s4 1966171168
  %v2245 = vunpack.c.0.s8 %v2244
  %v2246 = vlaneseq
  %v2247 = vshrl.u32 %v2246, 7
  %v2248 = vsub.s32 %v2245, %v2247
  %v2249 = vrot.slane %v2227, %v2248
  %v2251 = vunpack.c.l.s4 1966171168
  %v2252 = vunpack.c.0.s8 %v2251
  %v2253 = vlaneseq
  %v2254 = vshrl.u32 %v2253, 7
  %v2255 = vsub.s32 %v2252, %v2254
  %v2256 = vrot.slane %v2228, %v2255
  %v2257 = vcombine.low %v2235, %v2242
  %v2258 = vcombine.low %v2249, %v2256
  %v2260 = vunpack.c.l.s4 1966171168
  %v2261 = vunpack.c.0.s8 %v2260
  %v2262 = vlaneseq
  %v2263 = vshrl.u32 %v2262, 7
  %v2264 = vsub.s32 %v2261, %v2263
  %v2265 = vrot.slane %v2257, %v2264
  %v2267 = vunpack.c.l.s4 1966171168
  %v2268 = vunpack.c.0.s8 %v2267
  %v2269 = vlaneseq
  %v2270 = vshrl.u32 %v2269, 7
  %v2271 = vsub.s32 %v2268, %v2270
  %v2272 = vrot.slane %v2258, %v2271
  %v2273 = vcombine.low %v2265, %v2272
  %v2274 = vcombine.low %v1236, %v1240
  %v2275 = vcombine.low %v1244, %v1248
  %v2276 = vcombine.low %v1252, %v1256
  %v2277 = vcombine.low %v1260, %v1264
  %v2279 = vunpack.c.l.s4 1966171168
  %v2280 = vunpack.c.0.s8 %v2279
  %v2281 = vlaneseq
  %v2282 = vshrl.u32 %v2281, 7
  %v2283 = vsub.s32 %v2280, %v2282
  %v2284 = vrot.slane %v2274, %v2283
  %v2286 = vunpack.c.l.s4 1966171168
  %v2287 = vunpack.c.0.s8 %v2286
  %v2288 = vlaneseq
  %v2289 = vshrl.u32 %v2288, 7
  %v2290 = vsub.s32 %v2287, %v2289
  %v2291 = vrot.slane %v2275, %v2290
  %v2293 = vunpack.c.l.s4 1966171168
  %v2294 = vunpack.c.0.s8 %v2293
  %v2295 = vlaneseq
  %v2296 = vshrl.u32 %v2295, 7
  %v2297 = vsub.s32 %v2294, %v2296
  %v2298 = vrot.slane %v2276, %v2297
  %v2300 = vunpack.c.l.s4 1966171168
  %v2301 = vunpack.c.0.s8 %v2300
  %v2302 = vlaneseq
  %v2303 = vshrl.u32 %v2302, 7
  %v2304 = vsub.s32 %v2301, %v2303
  %v2305 = vrot.slane %v2277, %v2304
  %v2306 = vcombine.low %v2284, %v2291
  %v2307 = vcombine.low %v2298, %v2305
  %v2309 = vunpack.c.l.s4 1966171168
  %v2310 = vunpack.c.0.s8 %v2309
  %v2311 = vlaneseq
  %v2312 = vshrl.u32 %v2311, 7
  %v2313 = vsub.s32 %v2310, %v2312
  %v2314 = vrot.slane %v2306, %v2313
  %v2316 = vunpack.c.l.s4 1966171168
  %v2317 = vunpack.c.0.s8 %v2316
  %v2318 = vlaneseq
  %v2319 = vshrl.u32 %v2318, 7
  %v2320 = vsub.s32 %v2317, %v2319
  %v2321 = vrot.slane %v2307, %v2320
  %v2322 = vcombine.low %v2314, %v2321
  %v2323 = vcombine.low %v1268, %v1272
  %v2324 = vcombine.low %v1276, %v1280
  %v2325 = vcombine.low %v1284, %v1288
  %v2326 = vcombine.low %v1292, %v1296
  %v2328 = vunpack.c.l.s4 1966171168
  %v2329 = vunpack.c.0.s8 %v2328
  %v2330 = vlaneseq
  %v2331 = vshrl.u32 %v2330, 7
  %v2332 = vsub.s32 %v2329, %v2331
  %v2333 = vrot.slane %v2323, %v2332
  %v2335 = vunpack.c.l.s4 1966171168
  %v2336 = vunpack.c.0.s8 %v2335
  %v2337 = vlaneseq
  %v2338 = vshrl.u32 %v2337, 7
  %v2339 = vsub.s32 %v2336, %v2338
  %v2340 = vrot.slane %v2324, %v2339
  %v2342 = vunpack.c.l.s4 1966171168
  %v2343 = vunpack.c.0.s8 %v2342
  %v2344 = vlaneseq
  %v2345 = vshrl.u32 %v2344, 7
  %v2346 = vsub.s32 %v2343, %v2345
  %v2347 = vrot.slane %v2325, %v2346
  %v2349 = vunpack.c.l.s4 1966171168
  %v2350 = vunpack.c.0.s8 %v2349
  %v2351 = vlaneseq
  %v2352 = vshrl.u32 %v2351, 7
  %v2353 = vsub.s32 %v2350, %v2352
  %v2354 = vrot.slane %v2326, %v2353
  %v2355 = vcombine.low %v2333, %v2340
  %v2356 = vcombine.low %v2347, %v2354
  %v2358 = vunpack.c.l.s4 1966171168
  %v2359 = vunpack.c.0.s8 %v2358
  %v2360 = vlaneseq
  %v2361 = vshrl.u32 %v2360, 7
  %v2362 = vsub.s32 %v2359, %v2361
  %v2363 = vrot.slane %v2355, %v2362
  %v2365 = vunpack.c.l.s4 1966171168
  %v2366 = vunpack.c.0.s8 %v2365
  %v2367 = vlaneseq
  %v2368 = vshrl.u32 %v2367, 7
  %v2369 = vsub.s32 %v2366, %v2368
  %v2370 = vrot.slane %v2356, %v2369
  %v2371 = vcombine.low %v2363, %v2370
  %v2372 = vcombine.low %v1300, %v1304
  %v2373 = vcombine.low %v1308, %v1312
  %v2374 = vcombine.low %v1316, %v1320
  %v2375 = vcombine.low %v1324, %v1328
  %v2377 = vunpack.c.l.s4 1966171168
  %v2378 = vunpack.c.0.s8 %v2377
  %v2379 = vlaneseq
  %v2380 = vshrl.u32 %v2379, 7
  %v2381 = vsub.s32 %v2378, %v2380
  %v2382 = vrot.slane %v2372, %v2381
  %v2384 = vunpack.c.l.s4 1966171168
  %v2385 = vunpack.c.0.s8 %v2384
  %v2386 = vlaneseq
  %v2387 = vshrl.u32 %v2386, 7
  %v2388 = vsub.s32 %v2385, %v2387
  %v2389 = vrot.slane %v2373, %v2388
  %v2391 = vunpack.c.l.s4 1966171168
  %v2392 = vunpack.c.0.s8 %v2391
  %v2393 = vlaneseq
  %v2394 = vshrl.u32 %v2393, 7
  %v2395 = vsub.s32 %v2392, %v2394
  %v2396 = vrot.slane %v2374, %v2395
  %v2398 = vunpack.c.l.s4 1966171168
  %v2399 = vunpack.c.0.s8 %v2398
  %v2400 = vlaneseq
  %v2401 = vshrl.u32 %v2400, 7
  %v2402 = vsub.s32 %v2399, %v2401
  %v2403 = vrot.slane %v2375, %v2402
  %v2404 = vcombine.low %v2382, %v2389
  %v2405 = vcombine.low %v2396, %v2403
  %v2407 = vunpack.c.l.s4 1966171168
  %v2408 = vunpack.c.0.s8 %v2407
  %v2409 = vlaneseq
  %v2410 = vshrl.u32 %v2409, 7
  %v2411 = vsub.s32 %v2408, %v2410
  %v2412 = vrot.slane %v2404, %v2411
  %v2414 = vunpack.c.l.s4 1966171168
  %v2415 = vunpack.c.0.s8 %v2414
  %v2416 = vlaneseq
  %v2417 = vshrl.u32 %v2416, 7
  %v2418 = vsub.s32 %v2415, %v2417
  %v2419 = vrot.slane %v2405, %v2418
  %v2420 = vcombine.low %v2412, %v2419
  %v2421 = vcombine.low %v1332, %v1336
  %v2422 = vcombine.low %v1340, %v1344
  %v2423 = vcombine.low %v1348, %v1352
  %v2424 = vcombine.low %v1356, %v1360
  %v2426 = vunpack.c.l.s4 1966171168
  %v2427 = vunpack.c.0.s8 %v2426
  %v2428 = vlaneseq
  %v2429 = vshrl.u32 %v2428, 7
  %v2430 = vsub.s32 %v2427, %v2429
  %v2431 = vrot.slane %v2421, %v2430
  %v2433 = vunpack.c.l.s4 1966171168
  %v2434 = vunpack.c.0.s8 %v2433
  %v2435 = vlaneseq
  %v2436 = vshrl.u32 %v2435, 7
  %v2437 = vsub.s32 %v2434, %v2436
  %v2438 = vrot.slane %v2422, %v2437
  %v2440 = vunpack.c.l.s4 1966171168
  %v2441 = vunpack.c.0.s8 %v2440
  %v2442 = vlaneseq
  %v2443 = vshrl.u32 %v2442, 7
  %v2444 = vsub.s32 %v2441, %v2443
  %v2445 = vrot.slane %v2423, %v2444
  %v2447 = vunpack.c.l.s4 1966171168
  %v2448 = vunpack.c.0.s8 %v2447
  %v2449 = vlaneseq
  %v2450 = vshrl.u32 %v2449, 7
  %v2451 = vsub.s32 %v2448, %v2450
  %v2452 = vrot.slane %v2424, %v2451
  %v2453 = vcombine.low %v2431, %v2438
  %v2454 = vcombine.low %v2445, %v2452
  %v2456 = vunpack.c.l.s4 1966171168
  %v2457 = vunpack.c.0.s8 %v2456
  %v2458 = vlaneseq
  %v2459 = vshrl.u32 %v2458, 7
  %v2460 = vsub.s32 %v2457, %v2459
  %v2461 = vrot.slane %v2453, %v2460
  %v2463 = vunpack.c.l.s4 1966171168
  %v2464 = vunpack.c.0.s8 %v2463
  %v2465 = vlaneseq
  %v2466 = vshrl.u32 %v2465, 7
  %v2467 = vsub.s32 %v2464, %v2466
  %v2468 = vrot.slane %v2454, %v2467
  %v2469 = vcombine.low %v2461, %v2468
  %v2470 = vcombine.low %v1364, %v1368
  %v2471 = vcombine.low %v1372, %v1376
  %v2472 = vcombine.low %v1380, %v1384
  %v2473 = vcombine.low %v1388, %v1392
  %v2475 = vunpack.c.l.s4 1966171168
  %v2476 = vunpack.c.0.s8 %v2475
  %v2477 = vlaneseq
  %v2478 = vshrl.u32 %v2477, 7
  %v2479 = vsub.s32 %v2476, %v2478
  %v2480 = vrot.slane %v2470, %v2479
  %v2482 = vunpack.c.l.s4 1966171168
  %v2483 = vunpack.c.0.s8 %v2482
  %v2484 = vlaneseq
  %v2485 = vshrl.u32 %v2484, 7
  %v2486 = vsub.s32 %v2483, %v2485
  %v2487 = vrot.slane %v2471, %v2486
  %v2489 = vunpack.c.l.s4 1966171168
  %v2490 = vunpack.c.0.s8 %v2489
  %v2491 = vlaneseq
  %v2492 = vshrl.u32 %v2491, 7
  %v2493 = vsub.s32 %v2490, %v2492
  %v2494 = vrot.slane %v2472, %v2493
  %v2496 = vunpack.c.l.s4 1966171168
  %v2497 = vunpack.c.0.s8 %v2496
  %v2498 = vlaneseq
  %v2499 = vshrl.u32 %v2498, 7
  %v2500 = vsub.s32 %v2497, %v2499
  %v2501 = vrot.slane %v2473, %v2500
  %v2502 = vcombine.low %v2480, %v2487
  %v2503 = vcombine.low %v2494, %v2501
  %v2505 = vunpack.c.l.s4 1966171168
  %v2506 = vunpack.c.0.s8 %v2505
  %v2507 = vlaneseq
  %v2508 = vshrl.u32 %v2507, 7
  %v2509 = vsub.s32 %v2506, %v2508
  %v2510 = vrot.slane %v2502, %v2509
  %v2512 = vunpack.c.l.s4 1966171168
  %v2513 = vunpack.c.0.s8 %v2512
  %v2514 = vlaneseq
  %v2515 = vshrl.u32 %v2514, 7
  %v2516 = vsub.s32 %v2513, %v2515
  %v2517 = vrot.slane %v2503, %v2516
  %v2518 = vcombine.low %v2510, %v2517
  %v2519 = vcombine.low %v1396, %v1400
  %v2520 = vcombine.low %v1404, %v1408
  %v2521 = vcombine.low %v1412, %v1416
  %v2522 = vcombine.low %v1420, %v1424
  %v2524 = vunpack.c.l.s4 1966171168
  %v2525 = vunpack.c.0.s8 %v2524
  %v2526 = vlaneseq
  %v2527 = vshrl.u32 %v2526, 7
  %v2528 = vsub.s32 %v2525, %v2527
  %v2529 = vrot.slane %v2519, %v2528
  %v2531 = vunpack.c.l.s4 1966171168
  %v2532 = vunpack.c.0.s8 %v2531
  %v2533 = vlaneseq
  %v2534 = vshrl.u32 %v2533, 7
  %v2535 = vsub.s32 %v2532, %v2534
  %v2536 = vrot.slane %v2520, %v2535
  %v2538 = vunpack.c.l.s4 1966171168
  %v2539 = vunpack.c.0.s8 %v2538
  %v2540 = vlaneseq
  %v2541 = vshrl.u32 %v2540, 7
  %v2542 = vsub.s32 %v2539, %v2541
  %v2543 = vrot.slane %v2521, %v2542
  %v2545 = vunpack.c.l.s4 1966171168
  %v2546 = vunpack.c.0.s8 %v2545
  %v2547 = vlaneseq
  %v2548 = vshrl.u32 %v2547, 7
  %v2549 = vsub.s32 %v2546, %v2548
  %v2550 = vrot.slane %v2522, %v2549
  %v2551 = vcombine.low %v2529, %v2536
  %v2552 = vcombine.low %v2543, %v2550
  %v2554 = vunpack.c.l.s4 1966171168
  %v2555 = vunpack.c.0.s8 %v2554
  %v2556 = vlaneseq
  %v2557 = vshrl.u32 %v2556, 7
  %v2558 = vsub.s32 %v2555, %v2557
  %v2559 = vrot.slane %v2551, %v2558
  %v2561 = vunpack.c.l.s4 1966171168
  %v2562 = vunpack.c.0.s8 %v2561
  %v2563 = vlaneseq
  %v2564 = vshrl.u32 %v2563, 7
  %v2565 = vsub.s32 %v2562, %v2564
  %v2566 = vrot.slane %v2552, %v2565
  %v2567 = vcombine.low %v2559, %v2566
  %v2568 = vcombine.low %v1428, %v1432
  %v2569 = vcombine.low %v1436, %v1440
  %v2570 = vcombine.low %v1444, %v1448
  %v2571 = vcombine.low %v1452, %v1456
  %v2573 = vunpack.c.l.s4 1966171168
  %v2574 = vunpack.c.0.s8 %v2573
  %v2575 = vlaneseq
  %v2576 = vshrl.u32 %v2575, 7
  %v2577 = vsub.s32 %v2574, %v2576
  %v2578 = vrot.slane %v2568, %v2577
  %v2580 = vunpack.c.l.s4 1966171168
  %v2581 = vunpack.c.0.s8 %v2580
  %v2582 = vlaneseq
  %v2583 = vshrl.u32 %v2582, 7
  %v2584 = vsub.s32 %v2581, %v2583
  %v2585 = vrot.slane %v2569, %v2584
  %v2587 = vunpack.c.l.s4 1966171168
  %v2588 = vunpack.c.0.s8 %v2587
  %v2589 = vlaneseq
  %v2590 = vshrl.u32 %v2589, 7
  %v2591 = vsub.s32 %v2588, %v2590
  %v2592 = vrot.slane %v2570, %v2591
  %v2594 = vunpack.c.l.s4 1966171168
  %v2595 = vunpack.c.0.s8 %v2594
  %v2596 = vlaneseq
  %v2597 = vshrl.u32 %v2596, 7
  %v2598 = vsub.s32 %v2595, %v2597
  %v2599 = vrot.slane %v2571, %v2598
  %v2600 = vcombine.low %v2578, %v2585
  %v2601 = vcombine.low %v2592, %v2599
  %v2603 = vunpack.c.l.s4 1966171168
  %v2604 = vunpack.c.0.s8 %v2603
  %v2605 = vlaneseq
  %v2606 = vshrl.u32 %v2605, 7
  %v2607 = vsub.s32 %v2604, %v2606
  %v2608 = vrot.slane %v2600, %v2607
  %v2610 = vunpack.c.l.s4 1966171168
  %v2611 = vunpack.c.0.s8 %v2610
  %v2612 = vlaneseq
  %v2613 = vshrl.u32 %v2612, 7
  %v2614 = vsub.s32 %v2611, %v2613
  %v2615 = vrot.slane %v2601, %v2614
  %v2616 = vcombine.low %v2608, %v2615
  %v2617 = vcombine.low %v1460, %v1464
  %v2618 = vcombine.low %v1468, %v1472
  %v2619 = vcombine.low %v1476, %v1480
  %v2620 = vcombine.low %v1484, %v1488
  %v2622 = vunpack.c.l.s4 1966171168
  %v2623 = vunpack.c.0.s8 %v2622
  %v2624 = vlaneseq
  %v2625 = vshrl.u32 %v2624, 7
  %v2626 = vsub.s32 %v2623, %v2625
  %v2627 = vrot.slane %v2617, %v2626
  %v2629 = vunpack.c.l.s4 1966171168
  %v2630 = vunpack.c.0.s8 %v2629
  %v2631 = vlaneseq
  %v2632 = vshrl.u32 %v2631, 7
  %v2633 = vsub.s32 %v2630, %v2632
  %v2634 = vrot.slane %v2618, %v2633
  %v2636 = vunpack.c.l.s4 1966171168
  %v2637 = vunpack.c.0.s8 %v2636
  %v2638 = vlaneseq
  %v2639 = vshrl.u32 %v2638, 7
  %v2640 = vsub.s32 %v2637, %v2639
  %v2641 = vrot.slane %v2619, %v2640
  %v2643 = vunpack.c.l.s4 1966171168
  %v2644 = vunpack.c.0.s8 %v2643
  %v2645 = vlaneseq
  %v2646 = vshrl.u32 %v2645, 7
  %v2647 = vsub.s32 %v2644, %v2646
  %v2648 = vrot.slane %v2620, %v2647
  %v2649 = vcombine.low %v2627, %v2634
  %v2650 = vcombine.low %v2641, %v2648
  %v2652 = vunpack.c.l.s4 1966171168
  %v2653 = vunpack.c.0.s8 %v2652
  %v2654 = vlaneseq
  %v2655 = vshrl.u32 %v2654, 7
  %v2656 = vsub.s32 %v2653, %v2655
  %v2657 = vrot.slane %v2649, %v2656
  %v2659 = vunpack.c.l.s4 1966171168
  %v2660 = vunpack.c.0.s8 %v2659
  %v2661 = vlaneseq
  %v2662 = vshrl.u32 %v2661, 7
  %v2663 = vsub.s32 %v2660, %v2662
  %v2664 = vrot.slane %v2650, %v2663
  %v2665 = vcombine.low %v2657, %v2664
  %v2666 = vcombine.low %v1492, %v1496
  %v2667 = vcombine.low %v1500, %v1504
  %v2668 = vcombine.low %v1508, %v1512
  %v2669 = vcombine.low %v1516, %v1520
  %v2671 = vunpack.c.l.s4 1966171168
  %v2672 = vunpack.c.0.s8 %v2671
  %v2673 = vlaneseq
  %v2674 = vshrl.u32 %v2673, 7
  %v2675 = vsub.s32 %v2672, %v2674
  %v2676 = vrot.slane %v2666, %v2675
  %v2678 = vunpack.c.l.s4 1966171168
  %v2679 = vunpack.c.0.s8 %v2678
  %v2680 = vlaneseq
  %v2681 = vshrl.u32 %v2680, 7
  %v2682 = vsub.s32 %v2679, %v2681
  %v2683 = vrot.slane %v2667, %v2682
  %v2685 = vunpack.c.l.s4 1966171168
  %v2686 = vunpack.c.0.s8 %v2685
  %v2687 = vlaneseq
  %v2688 = vshrl.u32 %v2687, 7
  %v2689 = vsub.s32 %v2686, %v2688
  %v2690 = vrot.slane %v2668, %v2689
  %v2692 = vunpack.c.l.s4 1966171168
  %v2693 = vunpack.c.0.s8 %v2692
  %v2694 = vlaneseq
  %v2695 = vshrl.u32 %v2694, 7
  %v2696 = vsub.s32 %v2693, %v2695
  %v2697 = vrot.slane %v2669, %v2696
  %v2698 = vcombine.low %v2676, %v2683
  %v2699 = vcombine.low %v2690, %v2697
  %v2701 = vunpack.c.l.s4 1966171168
  %v2702 = vunpack.c.0.s8 %v2701
  %v2703 = vlaneseq
  %v2704 = vshrl.u32 %v2703, 7
  %v2705 = vsub.s32 %v2702, %v2704
  %v2706 = vrot.slane %v2698, %v2705
  %v2708 = vunpack.c.l.s4 1966171168
  %v2709 = vunpack.c.0.s8 %v2708
  %v2710 = vlaneseq
  %v2711 = vshrl.u32 %v2710, 7
  %v2712 = vsub.s32 %v2709, %v2711
  %v2713 = vrot.slane %v2699, %v2712
  %v2714 = vcombine.low %v2706, %v2713
  %v2715 = vcombine.low %v1524, %v1528
  %v2716 = vcombine.low %v1532, %v1536
  %v2717 = vcombine.low %v1540, %v1544
  %v2718 = vcombine.low %v1548, %v1552
  %v2720 = vunpack.c.l.s4 1966171168
  %v2721 = vunpack.c.0.s8 %v2720
  %v2722 = vlaneseq
  %v2723 = vshrl.u32 %v2722, 7
  %v2724 = vsub.s32 %v2721, %v2723
  %v2725 = vrot.slane %v2715, %v2724
  %v2727 = vunpack.c.l.s4 1966171168
  %v2728 = vunpack.c.0.s8 %v2727
  %v2729 = vlaneseq
  %v2730 = vshrl.u32 %v2729, 7
  %v2731 = vsub.s32 %v2728, %v2730
  %v2732 = vrot.slane %v2716, %v2731
  %v2734 = vunpack.c.l.s4 1966171168
  %v2735 = vunpack.c.0.s8 %v2734
  %v2736 = vlaneseq
  %v2737 = vshrl.u32 %v2736, 7
  %v2738 = vsub.s32 %v2735, %v2737
  %v2739 = vrot.slane %v2717, %v2738
  %v2741 = vunpack.c.l.s4 1966171168
  %v2742 = vunpack.c.0.s8 %v2741
  %v2743 = vlaneseq
  %v2744 = vshrl.u32 %v2743, 7
  %v2745 = vsub.s32 %v2742, %v2744
  %v2746 = vrot.slane %v2718, %v2745
  %v2747 = vcombine.low %v2725, %v2732
  %v2748 = vcombine.low %v2739, %v2746
  %v2750 = vunpack.c.l.s4 1966171168
  %v2751 = vunpack.c.0.s8 %v2750
  %v2752 = vlaneseq
  %v2753 = vshrl.u32 %v2752, 7
  %v2754 = vsub.s32 %v2751, %v2753
  %v2755 = vrot.slane %v2747, %v2754
  %v2757 = vunpack.c.l.s4 1966171168
  %v2758 = vunpack.c.0.s8 %v2757
  %v2759 = vlaneseq
  %v2760 = vshrl.u32 %v2759, 7
  %v2761 = vsub.s32 %v2758, %v2760
  %v2762 = vrot.slane %v2748, %v2761
  %v2763 = vcombine.low %v2755, %v2762
  %v2764 = vcombine.low %v1556, %v1560
  %v2765 = vcombine.low %v1564, %v1568
  %v2766 = vcombine.low %v1572, %v1576
  %v2767 = vcombine.low %v1580, %v1584
  %v2769 = vunpack.c.l.s4 1966171168
  %v2770 = vunpack.c.0.s8 %v2769
  %v2771 = vlaneseq
  %v2772 = vshrl.u32 %v2771, 7
  %v2773 = vsub.s32 %v2770, %v2772
  %v2774 = vrot.slane %v2764, %v2773
  %v2776 = vunpack.c.l.s4 1966171168
  %v2777 = vunpack.c.0.s8 %v2776
  %v2778 = vlaneseq
  %v2779 = vshrl.u32 %v2778, 7
  %v2780 = vsub.s32 %v2777, %v2779
  %v2781 = vrot.slane %v2765, %v2780
  %v2783 = vunpack.c.l.s4 1966171168
  %v2784 = vunpack.c.0.s8 %v2783
  %v2785 = vlaneseq
  %v2786 = vshrl.u32 %v2785, 7
  %v2787 = vsub.s32 %v2784, %v2786
  %v2788 = vrot.slane %v2766, %v2787
  %v2790 = vunpack.c.l.s4 1966171168
  %v2791 = vunpack.c.0.s8 %v2790
  %v2792 = vlaneseq
  %v2793 = vshrl.u32 %v2792, 7
  %v2794 = vsub.s32 %v2791, %v2793
  %v2795 = vrot.slane %v2767, %v2794
  %v2796 = vcombine.low %v2774, %v2781
  %v2797 = vcombine.low %v2788, %v2795
  %v2799 = vunpack.c.l.s4 1966171168
  %v2800 = vunpack.c.0.s8 %v2799
  %v2801 = vlaneseq
  %v2802 = vshrl.u32 %v2801, 7
  %v2803 = vsub.s32 %v2800, %v2802
  %v2804 = vrot.slane %v2796, %v2803
  %v2806 = vunpack.c.l.s4 1966171168
  %v2807 = vunpack.c.0.s8 %v2806
  %v2808 = vlaneseq
  %v2809 = vshrl.u32 %v2808, 7
  %v2810 = vsub.s32 %v2807, %v2809
  %v2811 = vrot.slane %v2797, %v2810
  %v2812 = vcombine.low %v2804, %v2811
  %v2813 = vcombine.low %v1588, %v1592
  %v2814 = vcombine.low %v1596, %v1600
  %v2815 = vcombine.low %v1604, %v1608
  %v2816 = vcombine.low %v1612, %v1616
  %v2818 = vunpack.c.l.s4 1966171168
  %v2819 = vunpack.c.0.s8 %v2818
  %v2820 = vlaneseq
  %v2821 = vshrl.u32 %v2820, 7
  %v2822 = vsub.s32 %v2819, %v2821
  %v2823 = vrot.slane %v2813, %v2822
  %v2825 = vunpack.c.l.s4 1966171168
  %v2826 = vunpack.c.0.s8 %v2825
  %v2827 = vlaneseq
  %v2828 = vshrl.u32 %v2827, 7
  %v2829 = vsub.s32 %v2826, %v2828
  %v2830 = vrot.slane %v2814, %v2829
  %v2832 = vunpack.c.l.s4 1966171168
  %v2833 = vunpack.c.0.s8 %v2832
  %v2834 = vlaneseq
  %v2835 = vshrl.u32 %v2834, 7
  %v2836 = vsub.s32 %v2833, %v2835
  %v2837 = vrot.slane %v2815, %v2836
  %v2839 = vunpack.c.l.s4 1966171168
  %v2840 = vunpack.c.0.s8 %v2839
  %v2841 = vlaneseq
  %v2842 = vshrl.u32 %v2841, 7
  %v2843 = vsub.s32 %v2840, %v2842
  %v2844 = vrot.slane %v2816, %v2843
  %v2845 = vcombine.low %v2823, %v2830
  %v2846 = vcombine.low %v2837, %v2844
  %v2848 = vunpack.c.l.s4 1966171168
  %v2849 = vunpack.c.0.s8 %v2848
  %v2850 = vlaneseq
  %v2851 = vshrl.u32 %v2850, 7
  %v2852 = vsub.s32 %v2849, %v2851
  %v2853 = vrot.slane %v2845, %v2852
  %v2855 = vunpack.c.l.s4 1966171168
  %v2856 = vunpack.c.0.s8 %v2855
  %v2857 = vlaneseq
  %v2858 = vshrl.u32 %v2857, 7
  %v2859 = vsub.s32 %v2856, %v2858
  %v2860 = vrot.slane %v2846, %v2859
  %v2861 = vcombine.low %v2853, %v2860
  %v2862 = vcombine.low %v1620, %v1624
  %v2863 = vcombine.low %v1628, %v1632
  %v2864 = vcombine.low %v1636, %v1640
  %v2865 = vcombine.low %v1644, %v1648
  %v2867 = vunpack.c.l.s4 1966171168
  %v2868 = vunpack.c.0.s8 %v2867
  %v2869 = vlaneseq
  %v2870 = vshrl.u32 %v2869, 7
  %v2871 = vsub.s32 %v2868, %v2870
  %v2872 = vrot.slane %v2862, %v2871
  %v2874 = vunpack.c.l.s4 1966171168
  %v2875 = vunpack.c.0.s8 %v2874
  %v2876 = vlaneseq
  %v2877 = vshrl.u32 %v2876, 7
  %v2878 = vsub.s32 %v2875, %v2877
  %v2879 = vrot.slane %v2863, %v2878
  %v2881 = vunpack.c.l.s4 1966171168
  %v2882 = vunpack.c.0.s8 %v2881
  %v2883 = vlaneseq
  %v2884 = vshrl.u32 %v2883, 7
  %v2885 = vsub.s32 %v2882, %v2884
  %v2886 = vrot.slane %v2864, %v2885
  %v2888 = vunpack.c.l.s4 1966171168
  %v2889 = vunpack.c.0.s8 %v2888
  %v2890 = vlaneseq
  %v2891 = vshrl.u32 %v2890, 7
  %v2892 = vsub.s32 %v2889, %v2891
  %v2893 = vrot.slane %v2865, %v2892
  %v2894 = vcombine.low %v2872, %v2879
  %v2895 = vcombine.low %v2886, %v2893
  %v2897 = vunpack.c.l.s4 1966171168
  %v2898 = vunpack.c.0.s8 %v2897
  %v2899 = vlaneseq
  %v2900 = vshrl.u32 %v2899, 7
  %v2901 = vsub.s32 %v2898, %v2900
  %v2902 = vrot.slane %v2894, %v2901
  %v2904 = vunpack.c.l.s4 1966171168
  %v2905 = vunpack.c.0.s8 %v2904
  %v2906 = vlaneseq
  %v2907 = vshrl.u32 %v2906, 7
  %v2908 = vsub.s32 %v2905, %v2907
  %v2909 = vrot.slane %v2895, %v2908
  %v2910 = vcombine.low %v2902, %v2909
  %v2911 = vcombine.low %v1652, %v1656
  %v2912 = vcombine.low %v1660, %v1664
  %v2913 = vcombine.low %v1668, %v1672
  %v2914 = vcombine.low %v1676, %v1680
  %v2916 = vunpack.c.l.s4 1966171168
  %v2917 = vunpack.c.0.s8 %v2916
  %v2918 = vlaneseq
  %v2919 = vshrl.u32 %v2918, 7
  %v2920 = vsub.s32 %v2917, %v2919
  %v2921 = vrot.slane %v2911, %v2920
  %v2923 = vunpack.c.l.s4 1966171168
  %v2924 = vunpack.c.0.s8 %v2923
  %v2925 = vlaneseq
  %v2926 = vshrl.u32 %v2925, 7
  %v2927 = vsub.s32 %v2924, %v2926
  %v2928 = vrot.slane %v2912, %v2927
  %v2930 = vunpack.c.l.s4 1966171168
  %v2931 = vunpack.c.0.s8 %v2930
  %v2932 = vlaneseq
  %v2933 = vshrl.u32 %v2932, 7
  %v2934 = vsub.s32 %v2931, %v2933
  %v2935 = vrot.slane %v2913, %v2934
  %v2937 = vunpack.c.l.s4 1966171168
  %v2938 = vunpack.c.0.s8 %v2937
  %v2939 = vlaneseq
  %v2940 = vshrl.u32 %v2939, 7
  %v2941 = vsub.s32 %v2938, %v2940
  %v2942 = vrot.slane %v2914, %v2941
  %v2943 = vcombine.low %v2921, %v2928
  %v2944 = vcombine.low %v2935, %v2942
  %v2946 = vunpack.c.l.s4 1966171168
  %v2947 = vunpack.c.0.s8 %v2946
  %v2948 = vlaneseq
  %v2949 = vshrl.u32 %v2948, 7
  %v2950 = vsub.s32 %v2947, %v2949
  %v2951 = vrot.slane %v2943, %v2950
  %v2953 = vunpack.c.l.s4 1966171168
  %v2954 = vunpack.c.0.s8 %v2953
  %v2955 = vlaneseq
  %v2956 = vshrl.u32 %v2955, 7
  %v2957 = vsub.s32 %v2954, %v2956
  %v2958 = vrot.slane %v2944, %v2957
  %v2959 = vcombine.low %v2951, %v2958
  %v2960 = vcombine.low %v1684, %v1688
  %v2961 = vcombine.low %v1692, %v1696
  %v2962 = vcombine.low %v1700, %v1704
  %v2963 = vcombine.low %v1708, %v1712
  %v2965 = vunpack.c.l.s4 1966171168
  %v2966 = vunpack.c.0.s8 %v2965
  %v2967 = vlaneseq
  %v2968 = vshrl.u32 %v2967, 7
  %v2969 = vsub.s32 %v2966, %v2968
  %v2970 = vrot.slane %v2960, %v2969
  %v2972 = vunpack.c.l.s4 1966171168
  %v2973 = vunpack.c.0.s8 %v2972
  %v2974 = vlaneseq
  %v2975 = vshrl.u32 %v2974, 7
  %v2976 = vsub.s32 %v2973, %v2975
  %v2977 = vrot.slane %v2961, %v2976
  %v2979 = vunpack.c.l.s4 1966171168
  %v2980 = vunpack.c.0.s8 %v2979
  %v2981 = vlaneseq
  %v2982 = vshrl.u32 %v2981, 7
  %v2983 = vsub.s32 %v2980, %v2982
  %v2984 = vrot.slane %v2962, %v2983
  %v2986 = vunpack.c.l.s4 1966171168
  %v2987 = vunpack.c.0.s8 %v2986
  %v2988 = vlaneseq
  %v2989 = vshrl.u32 %v2988, 7
  %v2990 = vsub.s32 %v2987, %v2989
  %v2991 = vrot.slane %v2963, %v2990
  %v2992 = vcombine.low %v2970, %v2977
  %v2993 = vcombine.low %v2984, %v2991
  %v2995 = vunpack.c.l.s4 1966171168
  %v2996 = vunpack.c.0.s8 %v2995
  %v2997 = vlaneseq
  %v2998 = vshrl.u32 %v2997, 7
  %v2999 = vsub.s32 %v2996, %v2998
  %v3000 = vrot.slane %v2992, %v2999
  %v3002 = vunpack.c.l.s4 1966171168
  %v3003 = vunpack.c.0.s8 %v3002
  %v3004 = vlaneseq
  %v3005 = vshrl.u32 %v3004, 7
  %v3006 = vsub.s32 %v3003, %v3005
  %v3007 = vrot.slane %v2993, %v3006
  %v3008 = vcombine.low %v3000, %v3007
  %v3009 = vcombine.low %v1716, %v1720
  %v3010 = vcombine.low %v1724, %v1728
  %v3011 = vcombine.low %v1732, %v1736
  %v3012 = vcombine.low %v1740, %v1744
  %v3014 = vunpack.c.l.s4 1966171168
  %v3015 = vunpack.c.0.s8 %v3014
  %v3016 = vlaneseq
  %v3017 = vshrl.u32 %v3016, 7
  %v3018 = vsub.s32 %v3015, %v3017
  %v3019 = vrot.slane %v3009, %v3018
  %v3021 = vunpack.c.l.s4 1966171168
  %v3022 = vunpack.c.0.s8 %v3021
  %v3023 = vlaneseq
  %v3024 = vshrl.u32 %v3023, 7
  %v3025 = vsub.s32 %v3022, %v3024
  %v3026 = vrot.slane %v3010, %v3025
  %v3028 = vunpack.c.l.s4 1966171168
  %v3029 = vunpack.c.0.s8 %v3028
  %v3030 = vlaneseq
  %v3031 = vshrl.u32 %v3030, 7
  %v3032 = vsub.s32 %v3029, %v3031
  %v3033 = vrot.slane %v3011, %v3032
  %v3035 = vunpack.c.l.s4 1966171168
  %v3036 = vunpack.c.0.s8 %v3035
  %v3037 = vlaneseq
  %v3038 = vshrl.u32 %v3037, 7
  %v3039 = vsub.s32 %v3036, %v3038
  %v3040 = vrot.slane %v3012, %v3039
  %v3041 = vcombine.low %v3019, %v3026
  %v3042 = vcombine.low %v3033, %v3040
  %v3044 = vunpack.c.l.s4 1966171168
  %v3045 = vunpack.c.0.s8 %v3044
  %v3046 = vlaneseq
  %v3047 = vshrl.u32 %v3046, 7
  %v3048 = vsub.s32 %v3045, %v3047
  %v3049 = vrot.slane %v3041, %v3048
  %v3051 = vunpack.c.l.s4 1966171168
  %v3052 = vunpack.c.0.s8 %v3051
  %v3053 = vlaneseq
  %v3054 = vshrl.u32 %v3053, 7
  %v3055 = vsub.s32 %v3052, %v3054
  %v3056 = vrot.slane %v3042, %v3055
  %v3057 = vcombine.low %v3049, %v3056
  %v3058 = vcombine.low %v1748, %v1752
  %v3059 = vcombine.low %v1756, %v1760
  %v3060 = vcombine.low %v1764, %v1768
  %v3061 = vcombine.low %v1772, %v1776
  %v3063 = vunpack.c.l.s4 1966171168
  %v3064 = vunpack.c.0.s8 %v3063
  %v3065 = vlaneseq
  %v3066 = vshrl.u32 %v3065, 7
  %v3067 = vsub.s32 %v3064, %v3066
  %v3068 = vrot.slane %v3058, %v3067
  %v3070 = vunpack.c.l.s4 1966171168
  %v3071 = vunpack.c.0.s8 %v3070
  %v3072 = vlaneseq
  %v3073 = vshrl.u32 %v3072, 7
  %v3074 = vsub.s32 %v3071, %v3073
  %v3075 = vrot.slane %v3059, %v3074
  %v3077 = vunpack.c.l.s4 1966171168
  %v3078 = vunpack.c.0.s8 %v3077
  %v3079 = vlaneseq
  %v3080 = vshrl.u32 %v3079, 7
  %v3081 = vsub.s32 %v3078, %v3080
  %v3082 = vrot.slane %v3060, %v3081
  %v3084 = vunpack.c.l.s4 1966171168
  %v3085 = vunpack.c.0.s8 %v3084
  %v3086 = vlaneseq
  %v3087 = vshrl.u32 %v3086, 7
  %v3088 = vsub.s32 %v3085, %v3087
  %v3089 = vrot.slane %v3061, %v3088
  %v3090 = vcombine.low %v3068, %v3075
  %v3091 = vcombine.low %v3082, %v3089
  %v3093 = vunpack.c.l.s4 1966171168
  %v3094 = vunpack.c.0.s8 %v3093
  %v3095 = vlaneseq
  %v3096 = vshrl.u32 %v3095, 7
  %v3097 = vsub.s32 %v3094, %v3096
  %v3098 = vrot.slane %v3090, %v3097
  %v3100 = vunpack.c.l.s4 1966171168
  %v3101 = vunpack.c.0.s8 %v3100
  %v3102 = vlaneseq
  %v3103 = vshrl.u32 %v3102, 7
  %v3104 = vsub.s32 %v3101, %v3103
  %v3105 = vrot.slane %v3091, %v3104
  %v3106 = vcombine.low %v3098, %v3105
  %v3107 = vcombine.low %v1780, %v1784
  %v3108 = vcombine.low %v1788, %v1792
  %v3109 = vcombine.low %v1796, %v1800
  %v3110 = vcombine.low %v1804, %v1808
  %v3112 = vunpack.c.l.s4 1966171168
  %v3113 = vunpack.c.0.s8 %v3112
  %v3114 = vlaneseq
  %v3115 = vshrl.u32 %v3114, 7
  %v3116 = vsub.s32 %v3113, %v3115
  %v3117 = vrot.slane %v3107, %v3116
  %v3119 = vunpack.c.l.s4 1966171168
  %v3120 = vunpack.c.0.s8 %v3119
  %v3121 = vlaneseq
  %v3122 = vshrl.u32 %v3121, 7
  %v3123 = vsub.s32 %v3120, %v3122
  %v3124 = vrot.slane %v3108, %v3123
  %v3126 = vunpack.c.l.s4 1966171168
  %v3127 = vunpack.c.0.s8 %v3126
  %v3128 = vlaneseq
  %v3129 = vshrl.u32 %v3128, 7
  %v3130 = vsub.s32 %v3127, %v3129
  %v3131 = vrot.slane %v3109, %v3130
  %v3133 = vunpack.c.l.s4 1966171168
  %v3134 = vunpack.c.0.s8 %v3133
  %v3135 = vlaneseq
  %v3136 = vshrl.u32 %v3135, 7
  %v3137 = vsub.s32 %v3134, %v3136
  %v3138 = vrot.slane %v3110, %v3137
  %v3139 = vcombine.low %v3117, %v3124
  %v3140 = vcombine.low %v3131, %v3138
  %v3142 = vunpack.c.l.s4 1966171168
  %v3143 = vunpack.c.0.s8 %v3142
  %v3144 = vlaneseq
  %v3145 = vshrl.u32 %v3144, 7
  %v3146 = vsub.s32 %v3143, %v3145
  %v3147 = vrot.slane %v3139, %v3146
  %v3149 = vunpack.c.l.s4 1966171168
  %v3150 = vunpack.c.0.s8 %v3149
  %v3151 = vlaneseq
  %v3152 = vshrl.u32 %v3151, 7
  %v3153 = vsub.s32 %v3150, %v3152
  %v3154 = vrot.slane %v3140, %v3153
  %v3155 = vcombine.low %v3147, %v3154
  %v3156 = vcombine.low %v1812, %v1816
  %v3157 = vcombine.low %v1820, %v1824
  %v3158 = vcombine.low %v1828, %v1832
  %v3159 = vcombine.low %v1836, %v1840
  %v3161 = vunpack.c.l.s4 1966171168
  %v3162 = vunpack.c.0.s8 %v3161
  %v3163 = vlaneseq
  %v3164 = vshrl.u32 %v3163, 7
  %v3165 = vsub.s32 %v3162, %v3164
  %v3166 = vrot.slane %v3156, %v3165
  %v3168 = vunpack.c.l.s4 1966171168
  %v3169 = vunpack.c.0.s8 %v3168
  %v3170 = vlaneseq
  %v3171 = vshrl.u32 %v3170, 7
  %v3172 = vsub.s32 %v3169, %v3171
  %v3173 = vrot.slane %v3157, %v3172
  %v3175 = vunpack.c.l.s4 1966171168
  %v3176 = vunpack.c.0.s8 %v3175
  %v3177 = vlaneseq
  %v3178 = vshrl.u32 %v3177, 7
  %v3179 = vsub.s32 %v3176, %v3178
  %v3180 = vrot.slane %v3158, %v3179
  %v3182 = vunpack.c.l.s4 1966171168
  %v3183 = vunpack.c.0.s8 %v3182
  %v3184 = vlaneseq
  %v3185 = vshrl.u32 %v3184, 7
  %v3186 = vsub.s32 %v3183, %v3185
  %v3187 = vrot.slane %v3159, %v3186
  %v3188 = vcombine.low %v3166, %v3173
  %v3189 = vcombine.low %v3180, %v3187
  %v3191 = vunpack.c.l.s4 1966171168
  %v3192 = vunpack.c.0.s8 %v3191
  %v3193 = vlaneseq
  %v3194 = vshrl.u32 %v3193, 7
  %v3195 = vsub.s32 %v3192, %v3194
  %v3196 = vrot.slane %v3188, %v3195
  %v3198 = vunpack.c.l.s4 1966171168
  %v3199 = vunpack.c.0.s8 %v3198
  %v3200 = vlaneseq
  %v3201 = vshrl.u32 %v3200, 7
  %v3202 = vsub.s32 %v3199, %v3201
  %v3203 = vrot.slane %v3189, %v3202
  %v3204 = vcombine.low %v3196, %v3203
  %v3205 = vcombine.low %v1844, %v1848
  %v3206 = vcombine.low %v1852, %v1856
  %v3207 = vcombine.low %v1860, %v1864
  %v3208 = vcombine.low %v1868, %v1872
  %v3210 = vunpack.c.l.s4 1966171168
  %v3211 = vunpack.c.0.s8 %v3210
  %v3212 = vlaneseq
  %v3213 = vshrl.u32 %v3212, 7
  %v3214 = vsub.s32 %v3211, %v3213
  %v3215 = vrot.slane %v3205, %v3214
  %v3217 = vunpack.c.l.s4 1966171168
  %v3218 = vunpack.c.0.s8 %v3217
  %v3219 = vlaneseq
  %v3220 = vshrl.u32 %v3219, 7
  %v3221 = vsub.s32 %v3218, %v3220
  %v3222 = vrot.slane %v3206, %v3221
  %v3224 = vunpack.c.l.s4 1966171168
  %v3225 = vunpack.c.0.s8 %v3224
  %v3226 = vlaneseq
  %v3227 = vshrl.u32 %v3226, 7
  %v3228 = vsub.s32 %v3225, %v3227
  %v3229 = vrot.slane %v3207, %v3228
  %v3231 = vunpack.c.l.s4 1966171168
  %v3232 = vunpack.c.0.s8 %v3231
  %v3233 = vlaneseq
  %v3234 = vshrl.u32 %v3233, 7
  %v3235 = vsub.s32 %v3232, %v3234
  %v3236 = vrot.slane %v3208, %v3235
  %v3237 = vcombine.low %v3215, %v3222
  %v3238 = vcombine.low %v3229, %v3236
  %v3240 = vunpack.c.l.s4 1966171168
  %v3241 = vunpack.c.0.s8 %v3240
  %v3242 = vlaneseq
  %v3243 = vshrl.u32 %v3242, 7
  %v3244 = vsub.s32 %v3241, %v3243
  %v3245 = vrot.slane %v3237, %v3244
  %v3247 = vunpack.c.l.s4 1966171168
  %v3248 = vunpack.c.0.s8 %v3247
  %v3249 = vlaneseq
  %v3250 = vshrl.u32 %v3249, 7
  %v3251 = vsub.s32 %v3248, %v3250
  %v3252 = vrot.slane %v3238, %v3251
  %v3253 = vcombine.low %v3245, %v3252
  %v3254 = vcombine.low %v1876, %v1880
  %v3255 = vcombine.low %v1884, %v1888
  %v3256 = vcombine.low %v1892, %v1896
  %v3257 = vcombine.low %v1900, %v1904
  %v3259 = vunpack.c.l.s4 1966171168
  %v3260 = vunpack.c.0.s8 %v3259
  %v3261 = vlaneseq
  %v3262 = vshrl.u32 %v3261, 7
  %v3263 = vsub.s32 %v3260, %v3262
  %v3264 = vrot.slane %v3254, %v3263
  %v3266 = vunpack.c.l.s4 1966171168
  %v3267 = vunpack.c.0.s8 %v3266
  %v3268 = vlaneseq
  %v3269 = vshrl.u32 %v3268, 7
  %v3270 = vsub.s32 %v3267, %v3269
  %v3271 = vrot.slane %v3255, %v3270
  %v3273 = vunpack.c.l.s4 1966171168
  %v3274 = vunpack.c.0.s8 %v3273
  %v3275 = vlaneseq
  %v3276 = vshrl.u32 %v3275, 7
  %v3277 = vsub.s32 %v3274, %v3276
  %v3278 = vrot.slane %v3256, %v3277
  %v3280 = vunpack.c.l.s4 1966171168
  %v3281 = vunpack.c.0.s8 %v3280
  %v3282 = vlaneseq
  %v3283 = vshrl.u32 %v3282, 7
  %v3284 = vsub.s32 %v3281, %v3283
  %v3285 = vrot.slane %v3257, %v3284
  %v3286 = vcombine.low %v3264, %v3271
  %v3287 = vcombine.low %v3278, %v3285
  %v3289 = vunpack.c.l.s4 1966171168
  %v3290 = vunpack.c.0.s8 %v3289
  %v3291 = vlaneseq
  %v3292 = vshrl.u32 %v3291, 7
  %v3293 = vsub.s32 %v3290, %v3292
  %v3294 = vrot.slane %v3286, %v3293
  %v3296 = vunpack.c.l.s4 1966171168
  %v3297 = vunpack.c.0.s8 %v3296
  %v3298 = vlaneseq
  %v3299 = vshrl.u32 %v3298, 7
  %v3300 = vsub.s32 %v3297, %v3299
  %v3301 = vrot.slane %v3287, %v3300
  %v3302 = vcombine.low %v3294, %v3301
  %v3303 = vcombine.low %v1908, %v1912
  %v3304 = vcombine.low %v1916, %v1920
  %v3305 = vcombine.low %v1924, %v1928
  %v3306 = vcombine.low %v1932, %v1936
  %v3308 = vunpack.c.l.s4 1966171168
  %v3309 = vunpack.c.0.s8 %v3308
  %v3310 = vlaneseq
  %v3311 = vshrl.u32 %v3310, 7
  %v3312 = vsub.s32 %v3309, %v3311
  %v3313 = vrot.slane %v3303, %v3312
  %v3315 = vunpack.c.l.s4 1966171168
  %v3316 = vunpack.c.0.s8 %v3315
  %v3317 = vlaneseq
  %v3318 = vshrl.u32 %v3317, 7
  %v3319 = vsub.s32 %v3316, %v3318
  %v3320 = vrot.slane %v3304, %v3319
  %v3322 = vunpack.c.l.s4 1966171168
  %v3323 = vunpack.c.0.s8 %v3322
  %v3324 = vlaneseq
  %v3325 = vshrl.u32 %v3324, 7
  %v3326 = vsub.s32 %v3323, %v3325
  %v3327 = vrot.slane %v3305, %v3326
  %v3329 = vunpack.c.l.s4 1966171168
  %v3330 = vunpack.c.0.s8 %v3329
  %v3331 = vlaneseq
  %v3332 = vshrl.u32 %v3331, 7
  %v3333 = vsub.s32 %v3330, %v3332
  %v3334 = vrot.slane %v3306, %v3333
  %v3335 = vcombine.low %v3313, %v3320
  %v3336 = vcombine.low %v3327, %v3334
  %v3338 = vunpack.c.l.s4 1966171168
  %v3339 = vunpack.c.0.s8 %v3338
  %v3340 = vlaneseq
  %v3341 = vshrl.u32 %v3340, 7
  %v3342 = vsub.s32 %v3339, %v3341
  %v3343 = vrot.slane %v3335, %v3342
  %v3345 = vunpack.c.l.s4 1966171168
  %v3346 = vunpack.c.0.s8 %v3345
  %v3347 = vlaneseq
  %v3348 = vshrl.u32 %v3347, 7
  %v3349 = vsub.s32 %v3346, %v3348
  %v3350 = vrot.slane %v3336, %v3349
  %v3351 = vcombine.low %v3343, %v3350
  %v3352 = vcombine.low %v1940, %v1944
  %v3353 = vcombine.low %v1948, %v1952
  %v3354 = vcombine.low %v1956, %v1960
  %v3355 = vcombine.low %v1964, %v1968
  %v3357 = vunpack.c.l.s4 1966171168
  %v3358 = vunpack.c.0.s8 %v3357
  %v3359 = vlaneseq
  %v3360 = vshrl.u32 %v3359, 7
  %v3361 = vsub.s32 %v3358, %v3360
  %v3362 = vrot.slane %v3352, %v3361
  %v3364 = vunpack.c.l.s4 1966171168
  %v3365 = vunpack.c.0.s8 %v3364
  %v3366 = vlaneseq
  %v3367 = vshrl.u32 %v3366, 7
  %v3368 = vsub.s32 %v3365, %v3367
  %v3369 = vrot.slane %v3353, %v3368
  %v3371 = vunpack.c.l.s4 1966171168
  %v3372 = vunpack.c.0.s8 %v3371
  %v3373 = vlaneseq
  %v3374 = vshrl.u32 %v3373, 7
  %v3375 = vsub.s32 %v3372, %v3374
  %v3376 = vrot.slane %v3354, %v3375
  %v3378 = vunpack.c.l.s4 1966171168
  %v3379 = vunpack.c.0.s8 %v3378
  %v3380 = vlaneseq
  %v3381 = vshrl.u32 %v3380, 7
  %v3382 = vsub.s32 %v3379, %v3381
  %v3383 = vrot.slane %v3355, %v3382
  %v3384 = vcombine.low %v3362, %v3369
  %v3385 = vcombine.low %v3376, %v3383
  %v3387 = vunpack.c.l.s4 1966171168
  %v3388 = vunpack.c.0.s8 %v3387
  %v3389 = vlaneseq
  %v3390 = vshrl.u32 %v3389, 7
  %v3391 = vsub.s32 %v3388, %v3390
  %v3392 = vrot.slane %v3384, %v3391
  %v3394 = vunpack.c.l.s4 1966171168
  %v3395 = vunpack.c.0.s8 %v3394
  %v3396 = vlaneseq
  %v3397 = vshrl.u32 %v3396, 7
  %v3398 = vsub.s32 %v3395, %v3397
  %v3399 = vrot.slane %v3385, %v3398
  %v3400 = vcombine.low %v3392, %v3399
  %v3401 = vcombine.low %v1972, %v1976
  %v3402 = vcombine.low %v1980, %v1984
  %v3403 = vcombine.low %v1988, %v1992
  %v3404 = vcombine.low %v1996, %v2000
  %v3406 = vunpack.c.l.s4 1966171168
  %v3407 = vunpack.c.0.s8 %v3406
  %v3408 = vlaneseq
  %v3409 = vshrl.u32 %v3408, 7
  %v3410 = vsub.s32 %v3407, %v3409
  %v3411 = vrot.slane %v3401, %v3410
  %v3413 = vunpack.c.l.s4 1966171168
  %v3414 = vunpack.c.0.s8 %v3413
  %v3415 = vlaneseq
  %v3416 = vshrl.u32 %v3415, 7
  %v3417 = vsub.s32 %v3414, %v3416
  %v3418 = vrot.slane %v3402, %v3417
  %v3420 = vunpack.c.l.s4 1966171168
  %v3421 = vunpack.c.0.s8 %v3420
  %v3422 = vlaneseq
  %v3423 = vshrl.u32 %v3422, 7
  %v3424 = vsub.s32 %v3421, %v3423
  %v3425 = vrot.slane %v3403, %v3424
  %v3427 = vunpack.c.l.s4 1966171168
  %v3428 = vunpack.c.0.s8 %v3427
  %v3429 = vlaneseq
  %v3430 = vshrl.u32 %v3429, 7
  %v3431 = vsub.s32 %v3428, %v3430
  %v3432 = vrot.slane %v3404, %v3431
  %v3433 = vcombine.low %v3411, %v3418
  %v3434 = vcombine.low %v3425, %v3432
  %v3436 = vunpack.c.l.s4 1966171168
  %v3437 = vunpack.c.0.s8 %v3436
  %v3438 = vlaneseq
  %v3439 = vshrl.u32 %v3438, 7
  %v3440 = vsub.s32 %v3437, %v3439
  %v3441 = vrot.slane %v3433, %v3440
  %v3443 = vunpack.c.l.s4 1966171168
  %v3444 = vunpack.c.0.s8 %v3443
  %v3445 = vlaneseq
  %v3446 = vshrl.u32 %v3445, 7
  %v3447 = vsub.s32 %v3444, %v3446
  %v3448 = vrot.slane %v3434, %v3447
  %v3449 = vcombine.low %v3441, %v3448
  %v3450 = vcombine.low %v2004, %v2008
  %v3451 = vcombine.low %v2012, %v2016
  %v3452 = vcombine.low %v2020, %v2024
  %v3453 = vcombine.low %v2028, %v2032
  %v3455 = vunpack.c.l.s4 1966171168
  %v3456 = vunpack.c.0.s8 %v3455
  %v3457 = vlaneseq
  %v3458 = vshrl.u32 %v3457, 7
  %v3459 = vsub.s32 %v3456, %v3458
  %v3460 = vrot.slane %v3450, %v3459
  %v3462 = vunpack.c.l.s4 1966171168
  %v3463 = vunpack.c.0.s8 %v3462
  %v3464 = vlaneseq
  %v3465 = vshrl.u32 %v3464, 7
  %v3466 = vsub.s32 %v3463, %v3465
  %v3467 = vrot.slane %v3451, %v3466
  %v3469 = vunpack.c.l.s4 1966171168
  %v3470 = vunpack.c.0.s8 %v3469
  %v3471 = vlaneseq
  %v3472 = vshrl.u32 %v3471, 7
  %v3473 = vsub.s32 %v3470, %v3472
  %v3474 = vrot.slane %v3452, %v3473
  %v3476 = vunpack.c.l.s4 1966171168
  %v3477 = vunpack.c.0.s8 %v3476
  %v3478 = vlaneseq
  %v3479 = vshrl.u32 %v3478, 7
  %v3480 = vsub.s32 %v3477, %v3479
  %v3481 = vrot.slane %v3453, %v3480
  %v3482 = vcombine.low %v3460, %v3467
  %v3483 = vcombine.low %v3474, %v3481
  %v3485 = vunpack.c.l.s4 1966171168
  %v3486 = vunpack.c.0.s8 %v3485
  %v3487 = vlaneseq
  %v3488 = vshrl.u32 %v3487, 7
  %v3489 = vsub.s32 %v3486, %v3488
  %v3490 = vrot.slane %v3482, %v3489
  %v3492 = vunpack.c.l.s4 1966171168
  %v3493 = vunpack.c.0.s8 %v3492
  %v3494 = vlaneseq
  %v3495 = vshrl.u32 %v3494, 7
  %v3496 = vsub.s32 %v3493, %v3495
  %v3497 = vrot.slane %v3483, %v3496
  %v3498 = vcombine.low %v3490, %v3497
  %v3499 = vcombine.low %v2036, %v2040
  %v3500 = vcombine.low %v2044, %v2048
  %v3501 = vcombine.low %v2052, %v2056
  %v3502 = vcombine.low %v2060, %v2064
  %v3504 = vunpack.c.l.s4 1966171168
  %v3505 = vunpack.c.0.s8 %v3504
  %v3506 = vlaneseq
  %v3507 = vshrl.u32 %v3506, 7
  %v3508 = vsub.s32 %v3505, %v3507
  %v3509 = vrot.slane %v3499, %v3508
  %v3511 = vunpack.c.l.s4 1966171168
  %v3512 = vunpack.c.0.s8 %v3511
  %v3513 = vlaneseq
  %v3514 = vshrl.u32 %v3513, 7
  %v3515 = vsub.s32 %v3512, %v3514
  %v3516 = vrot.slane %v3500, %v3515
  %v3518 = vunpack.c.l.s4 1966171168
  %v3519 = vunpack.c.0.s8 %v3518
  %v3520 = vlaneseq
  %v3521 = vshrl.u32 %v3520, 7
  %v3522 = vsub.s32 %v3519, %v3521
  %v3523 = vrot.slane %v3501, %v3522
  %v3525 = vunpack.c.l.s4 1966171168
  %v3526 = vunpack.c.0.s8 %v3525
  %v3527 = vlaneseq
  %v3528 = vshrl.u32 %v3527, 7
  %v3529 = vsub.s32 %v3526, %v3528
  %v3530 = vrot.slane %v3502, %v3529
  %v3531 = vcombine.low %v3509, %v3516
  %v3532 = vcombine.low %v3523, %v3530
  %v3534 = vunpack.c.l.s4 1966171168
  %v3535 = vunpack.c.0.s8 %v3534
  %v3536 = vlaneseq
  %v3537 = vshrl.u32 %v3536, 7
  %v3538 = vsub.s32 %v3535, %v3537
  %v3539 = vrot.slane %v3531, %v3538
  %v3541 = vunpack.c.l.s4 1966171168
  %v3542 = vunpack.c.0.s8 %v3541
  %v3543 = vlaneseq
  %v3544 = vshrl.u32 %v3543, 7
  %v3545 = vsub.s32 %v3542, %v3544
  %v3546 = vrot.slane %v3532, %v3545
  %v3547 = vcombine.low %v3539, %v3546
  %v3548 = vcombine.low %v2068, %v2072
  %v3549 = vcombine.low %v2076, %v2080
  %v3550 = vcombine.low %v2084, %v2088
  %v3551 = vcombine.low %v2092, %v2096
  %v3553 = vunpack.c.l.s4 1966171168
  %v3554 = vunpack.c.0.s8 %v3553
  %v3555 = vlaneseq
  %v3556 = vshrl.u32 %v3555, 7
  %v3557 = vsub.s32 %v3554, %v3556
  %v3558 = vrot.slane %v3548, %v3557
  %v3560 = vunpack.c.l.s4 1966171168
  %v3561 = vunpack.c.0.s8 %v3560
  %v3562 = vlaneseq
  %v3563 = vshrl.u32 %v3562, 7
  %v3564 = vsub.s32 %v3561, %v3563
  %v3565 = vrot.slane %v3549, %v3564
  %v3567 = vunpack.c.l.s4 1966171168
  %v3568 = vunpack.c.0.s8 %v3567
  %v3569 = vlaneseq
  %v3570 = vshrl.u32 %v3569, 7
  %v3571 = vsub.s32 %v3568, %v3570
  %v3572 = vrot.slane %v3550, %v3571
  %v3574 = vunpack.c.l.s4 1966171168
  %v3575 = vunpack.c.0.s8 %v3574
  %v3576 = vlaneseq
  %v3577 = vshrl.u32 %v3576, 7
  %v3578 = vsub.s32 %v3575, %v3577
  %v3579 = vrot.slane %v3551, %v3578
  %v3580 = vcombine.low %v3558, %v3565
  %v3581 = vcombine.low %v3572, %v3579
  %v3583 = vunpack.c.l.s4 1966171168
  %v3584 = vunpack.c.0.s8 %v3583
  %v3585 = vlaneseq
  %v3586 = vshrl.u32 %v3585, 7
  %v3587 = vsub.s32 %v3584, %v3586
  %v3588 = vrot.slane %v3580, %v3587
  %v3590 = vunpack.c.l.s4 1966171168
  %v3591 = vunpack.c.0.s8 %v3590
  %v3592 = vlaneseq
  %v3593 = vshrl.u32 %v3592, 7
  %v3594 = vsub.s32 %v3591, %v3593
  %v3595 = vrot.slane %v3581, %v3594
  %v3596 = vcombine.low %v3588, %v3595
  %v3597 = vcombine.low %v2100, %v2104
  %v3598 = vcombine.low %v2108, %v2112
  %v3599 = vcombine.low %v2116, %v2120
  %v3600 = vcombine.low %v2124, %v2128
  %v3602 = vunpack.c.l.s4 1966171168
  %v3603 = vunpack.c.0.s8 %v3602
  %v3604 = vlaneseq
  %v3605 = vshrl.u32 %v3604, 7
  %v3606 = vsub.s32 %v3603, %v3605
  %v3607 = vrot.slane %v3597, %v3606
  %v3609 = vunpack.c.l.s4 1966171168
  %v3610 = vunpack.c.0.s8 %v3609
  %v3611 = vlaneseq
  %v3612 = vshrl.u32 %v3611, 7
  %v3613 = vsub.s32 %v3610, %v3612
  %v3614 = vrot.slane %v3598, %v3613
  %v3616 = vunpack.c.l.s4 1966171168
  %v3617 = vunpack.c.0.s8 %v3616
  %v3618 = vlaneseq
  %v3619 = vshrl.u32 %v3618, 7
  %v3620 = vsub.s32 %v3617, %v3619
  %v3621 = vrot.slane %v3599, %v3620
  %v3623 = vunpack.c.l.s4 1966171168
  %v3624 = vunpack.c.0.s8 %v3623
  %v3625 = vlaneseq
  %v3626 = vshrl.u32 %v3625, 7
  %v3627 = vsub.s32 %v3624, %v3626
  %v3628 = vrot.slane %v3600, %v3627
  %v3629 = vcombine.low %v3607, %v3614
  %v3630 = vcombine.low %v3621, %v3628
  %v3632 = vunpack.c.l.s4 1966171168
  %v3633 = vunpack.c.0.s8 %v3632
  %v3634 = vlaneseq
  %v3635 = vshrl.u32 %v3634, 7
  %v3636 = vsub.s32 %v3633, %v3635
  %v3637 = vrot.slane %v3629, %v3636
  %v3639 = vunpack.c.l.s4 1966171168
  %v3640 = vunpack.c.0.s8 %v3639
  %v3641 = vlaneseq
  %v3642 = vshrl.u32 %v3641, 7
  %v3643 = vsub.s32 %v3640, %v3642
  %v3644 = vrot.slane %v3630, %v3643
  %v3645 = vcombine.low %v3637, %v3644
  %v3646 = vcombine.low %v2132, %v2136
  %v3647 = vcombine.low %v2140, %v2144
  %v3648 = vcombine.low %v2148, %v2152
  %v3649 = vcombine.low %v2156, %v2160
  %v3651 = vunpack.c.l.s4 1966171168
  %v3652 = vunpack.c.0.s8 %v3651
  %v3653 = vlaneseq
  %v3654 = vshrl.u32 %v3653, 7
  %v3655 = vsub.s32 %v3652, %v3654
  %v3656 = vrot.slane %v3646, %v3655
  %v3658 = vunpack.c.l.s4 1966171168
  %v3659 = vunpack.c.0.s8 %v3658
  %v3660 = vlaneseq
  %v3661 = vshrl.u32 %v3660, 7
  %v3662 = vsub.s32 %v3659, %v3661
  %v3663 = vrot.slane %v3647, %v3662
  %v3665 = vunpack.c.l.s4 1966171168
  %v3666 = vunpack.c.0.s8 %v3665
  %v3667 = vlaneseq
  %v3668 = vshrl.u32 %v3667, 7
  %v3669 = vsub.s32 %v3666, %v3668
  %v3670 = vrot.slane %v3648, %v3669
  %v3672 = vunpack.c.l.s4 1966171168
  %v3673 = vunpack.c.0.s8 %v3672
  %v3674 = vlaneseq
  %v3675 = vshrl.u32 %v3674, 7
  %v3676 = vsub.s32 %v3673, %v3675
  %v3677 = vrot.slane %v3649, %v3676
  %v3678 = vcombine.low %v3656, %v3663
  %v3679 = vcombine.low %v3670, %v3677
  %v3681 = vunpack.c.l.s4 1966171168
  %v3682 = vunpack.c.0.s8 %v3681
  %v3683 = vlaneseq
  %v3684 = vshrl.u32 %v3683, 7
  %v3685 = vsub.s32 %v3682, %v3684
  %v3686 = vrot.slane %v3678, %v3685
  %v3688 = vunpack.c.l.s4 1966171168
  %v3689 = vunpack.c.0.s8 %v3688
  %v3690 = vlaneseq
  %v3691 = vshrl.u32 %v3690, 7
  %v3692 = vsub.s32 %v3689, %v3691
  %v3693 = vrot.slane %v3679, %v3692
  %v3694 = vcombine.low %v3686, %v3693
  %v3695 = vcombine.low %v2164, %v2168
  %v3696 = vcombine.low %v2172, %v2176
  %v3697 = vcombine.low %v2180, %v2184
  %v3698 = vcombine.low %v2188, %v2192
  %v3700 = vunpack.c.l.s4 1966171168
  %v3701 = vunpack.c.0.s8 %v3700
  %v3702 = vlaneseq
  %v3703 = vshrl.u32 %v3702, 7
  %v3704 = vsub.s32 %v3701, %v3703
  %v3705 = vrot.slane %v3695, %v3704
  %v3707 = vunpack.c.l.s4 1966171168
  %v3708 = vunpack.c.0.s8 %v3707
  %v3709 = vlaneseq
  %v3710 = vshrl.u32 %v3709, 7
  %v3711 = vsub.s32 %v3708, %v3710
  %v3712 = vrot.slane %v3696, %v3711
  %v3714 = vunpack.c.l.s4 1966171168
  %v3715 = vunpack.c.0.s8 %v3714
  %v3716 = vlaneseq
  %v3717 = vshrl.u32 %v3716, 7
  %v3718 = vsub.s32 %v3715, %v3717
  %v3719 = vrot.slane %v3697, %v3718
  %v3721 = vunpack.c.l.s4 1966171168
  %v3722 = vunpack.c.0.s8 %v3721
  %v3723 = vlaneseq
  %v3724 = vshrl.u32 %v3723, 7
  %v3725 = vsub.s32 %v3722, %v3724
  %v3726 = vrot.slane %v3698, %v3725
  %v3727 = vcombine.low %v3705, %v3712
  %v3728 = vcombine.low %v3719, %v3726
  %v3730 = vunpack.c.l.s4 1966171168
  %v3731 = vunpack.c.0.s8 %v3730
  %v3732 = vlaneseq
  %v3733 = vshrl.u32 %v3732, 7
  %v3734 = vsub.s32 %v3731, %v3733
  %v3735 = vrot.slane %v3727, %v3734
  %v3737 = vunpack.c.l.s4 1966171168
  %v3738 = vunpack.c.0.s8 %v3737
  %v3739 = vlaneseq
  %v3740 = vshrl.u32 %v3739, 7
  %v3741 = vsub.s32 %v3738, %v3740
  %v3742 = vrot.slane %v3728, %v3741
  %v3743 = vcombine.low %v3735, %v3742
  %v3744 = vcombine.low %v2196, %v2200
  %v3745 = vcombine.low %v2204, %v2208
  %v3746 = vcombine.low %v2212, %v2216
  %v3747 = vcombine.low %v2220, %v2224
  %v3749 = vunpack.c.l.s4 1966171168
  %v3750 = vunpack.c.0.s8 %v3749
  %v3751 = vlaneseq
  %v3752 = vshrl.u32 %v3751, 7
  %v3753 = vsub.s32 %v3750, %v3752
  %v3754 = vrot.slane %v3744, %v3753
  %v3756 = vunpack.c.l.s4 1966171168
  %v3757 = vunpack.c.0.s8 %v3756
  %v3758 = vlaneseq
  %v3759 = vshrl.u32 %v3758, 7
  %v3760 = vsub.s32 %v3757, %v3759
  %v3761 = vrot.slane %v3745, %v3760
  %v3763 = vunpack.c.l.s4 1966171168
  %v3764 = vunpack.c.0.s8 %v3763
  %v3765 = vlaneseq
  %v3766 = vshrl.u32 %v3765, 7
  %v3767 = vsub.s32 %v3764, %v3766
  %v3768 = vrot.slane %v3746, %v3767
  %v3770 = vunpack.c.l.s4 1966171168
  %v3771 = vunpack.c.0.s8 %v3770
  %v3772 = vlaneseq
  %v3773 = vshrl.u32 %v3772, 7
  %v3774 = vsub.s32 %v3771, %v3773
  %v3775 = vrot.slane %v3747, %v3774
  %v3776 = vcombine.low %v3754, %v3761
  %v3777 = vcombine.low %v3768, %v3775
  %v3779 = vunpack.c.l.s4 1966171168
  %v3780 = vunpack.c.0.s8 %v3779
  %v3781 = vlaneseq
  %v3782 = vshrl.u32 %v3781, 7
  %v3783 = vsub.s32 %v3780, %v3782
  %v3784 = vrot.slane %v3776, %v3783
  %v3786 = vunpack.c.l.s4 1966171168
  %v3787 = vunpack.c.0.s8 %v3786
  %v3788 = vlaneseq
  %v3789 = vshrl.u32 %v3788, 7
  %v3790 = vsub.s32 %v3787, %v3789
  %v3791 = vrot.slane %v3777, %v3790
  %v3792 = vcombine.low %v3784, %v3791
  %3793 = vset.pattern.permute.xlu0 0
  %3794 = vperm.xlu0 %3793, %v2273
  %v3795 = vpop.permute.xlu0 %3794
  %3796 = vset.pattern.permute.xlu0 0
  %3797 = vperm.xlu0 %3796, %v2322
  %v3798 = vpop.permute.xlu0 %3797
  %3799 = vset.pattern.permute.xlu0 0
  %3800 = vperm.xlu0 %3799, %v2371
  %v3801 = vpop.permute.xlu0 %3800
  %3802 = vset.pattern.permute.xlu0 0
  %3803 = vperm.xlu0 %3802, %v2420
  %v3804 = vpop.permute.xlu0 %3803
  %3805 = vset.pattern.permute.xlu0 0
  %3806 = vperm.xlu0 %3805, %v2469
  %v3807 = vpop.permute.xlu0 %3806
  %3808 = vset.pattern.permute.xlu0 0
  %3809 = vperm.xlu0 %3808, %v2518
  %v3810 = vpop.permute.xlu0 %3809
  %3811 = vset.pattern.permute.xlu0 0
  %3812 = vperm.xlu0 %3811, %v2567
  %v3813 = vpop.permute.xlu0 %3812
  %3814 = vset.pattern.permute.xlu0 0
  %3815 = vperm.xlu0 %3814, %v2616
  %v3816 = vpop.permute.xlu0 %3815
  %3817 = vset.pattern.permute.xlu0 0
  %3818 = vperm.xlu0 %3817, %v2665
  %v3819 = vpop.permute.xlu0 %3818
  %3820 = vset.pattern.permute.xlu0 0
  %3821 = vperm.xlu0 %3820, %v2714
  %v3822 = vpop.permute.xlu0 %3821
  %3823 = vset.pattern.permute.xlu0 0
  %3824 = vperm.xlu0 %3823, %v2763
  %v3825 = vpop.permute.xlu0 %3824
  %3826 = vset.pattern.permute.xlu0 0
  %3827 = vperm.xlu0 %3826, %v2812
  %v3828 = vpop.permute.xlu0 %3827
  %3829 = vset.pattern.permute.xlu0 0
  %3830 = vperm.xlu0 %3829, %v2861
  %v3831 = vpop.permute.xlu0 %3830
  %3832 = vset.pattern.permute.xlu0 0
  %3833 = vperm.xlu0 %3832, %v2910
  %v3834 = vpop.permute.xlu0 %3833
  %3835 = vset.pattern.permute.xlu0 0
  %3836 = vperm.xlu0 %3835, %v2959
  %v3837 = vpop.permute.xlu0 %3836
  %3838 = vset.pattern.permute.xlu0 0
  %3839 = vperm.xlu0 %3838, %v3008
  %v3840 = vpop.permute.xlu0 %3839
  %3841 = vset.pattern.permute.xlu0 0
  %3842 = vperm.xlu0 %3841, %v3057
  %v3843 = vpop.permute.xlu0 %3842
  %3844 = vset.pattern.permute.xlu0 0
  %3845 = vperm.xlu0 %3844, %v3106
  %v3846 = vpop.permute.xlu0 %3845
  %3847 = vset.pattern.permute.xlu0 0
  %3848 = vperm.xlu0 %3847, %v3155
  %v3849 = vpop.permute.xlu0 %3848
  %3850 = vset.pattern.permute.xlu0 0
  %3851 = vperm.xlu0 %3850, %v3204
  %v3852 = vpop.permute.xlu0 %3851
  %3853 = vset.pattern.permute.xlu0 0
  %3854 = vperm.xlu0 %3853, %v3253
  %v3855 = vpop.permute.xlu0 %3854
  %3856 = vset.pattern.permute.xlu0 0
  %3857 = vperm.xlu0 %3856, %v3302
  %v3858 = vpop.permute.xlu0 %3857
  %3859 = vset.pattern.permute.xlu0 0
  %3860 = vperm.xlu0 %3859, %v3351
  %v3861 = vpop.permute.xlu0 %3860
  %3862 = vset.pattern.permute.xlu0 0
  %3863 = vperm.xlu0 %3862, %v3400
  %v3864 = vpop.permute.xlu0 %3863
  %3865 = vset.pattern.permute.xlu0 0
  %3866 = vperm.xlu0 %3865, %v3449
  %v3867 = vpop.permute.xlu0 %3866
  %3868 = vset.pattern.permute.xlu0 0
  %3869 = vperm.xlu0 %3868, %v3498
  %v3870 = vpop.permute.xlu0 %3869
  %3871 = vset.pattern.permute.xlu0 0
  %3872 = vperm.xlu0 %3871, %v3547
  %v3873 = vpop.permute.xlu0 %3872
  %3874 = vset.pattern.permute.xlu0 0
  %3875 = vperm.xlu0 %3874, %v3596
  %v3876 = vpop.permute.xlu0 %3875
  %3877 = vset.pattern.permute.xlu0 0
  %3878 = vperm.xlu0 %3877, %v3645
  %v3879 = vpop.permute.xlu0 %3878
  %3880 = vset.pattern.permute.xlu0 0
  %3881 = vperm.xlu0 %3880, %v3694
  %v3882 = vpop.permute.xlu0 %3881
  %3883 = vset.pattern.permute.xlu0 0
  %3884 = vperm.xlu0 %3883, %v3743
  %v3885 = vpop.permute.xlu0 %3884
  %3886 = vset.pattern.permute.xlu0 0
  %3887 = vperm.xlu0 %3886, %v3792
  %v3888 = vpop.permute.xlu0 %3887
  %v3889 = vlaneseq
  %v3890 = vand.u32 %v3889, 127
  %v3891 = vlaneseq
  %v3892 = vshrl.u32 %v3891, 7
  %v3893 = vsub.s32 %v3890, %v3892
  %v3894 = vrot.slane %v3795, %v3893
  %v3895 = vadd.s32 %v3890, 4294967288
  %v3896 = vlaneseq
  %v3897 = vshrl.u32 %v3896, 7
  %v3898 = vsub.s32 %v3895, %v3897
  %v3899 = vrot.slane %v3798, %v3898
  %vm3900 = vcmask 130112
  %v3901 = vsel %vm3900, %v3899, %v3894
  %v3902 = vadd.s32 %v3890, 4294967280
  %v3903 = vlaneseq
  %v3904 = vshrl.u32 %v3903, 7
  %v3905 = vsub.s32 %v3902, %v3904
  %v3906 = vrot.slane %v3801, %v3905
  %vm3907 = vcmask 195712
  %v3908 = vsel %vm3907, %v3906, %v3901
  %v3909 = vadd.s32 %v3890, 4294967272
  %v3910 = vlaneseq
  %v3911 = vshrl.u32 %v3910, 7
  %v3912 = vsub.s32 %v3909, %v3911
  %v3913 = vrot.slane %v3804, %v3912
  %vm3914 = vcmask 261312
  %v3915 = vsel %vm3914, %v3913, %v3908
  %v3916 = vadd.s32 %v3890, 4294967264
  %v3917 = vlaneseq
  %v3918 = vshrl.u32 %v3917, 7
  %v3919 = vsub.s32 %v3916, %v3918
  %v3920 = vrot.slane %v3807, %v3919
  %vm3921 = vcmask 326912
  %v3922 = vsel %vm3921, %v3920, %v3915
  %v3923 = vadd.s32 %v3890, 4294967256
  %v3924 = vlaneseq
  %v3925 = vshrl.u32 %v3924, 7
  %v3926 = vsub.s32 %v3923, %v3925
  %v3927 = vrot.slane %v3810, %v3926
  %vm3928 = vcmask 392512
  %v3929 = vsel %vm3928, %v3927, %v3922
  %v3930 = vadd.s32 %v3890, 4294967248
  %v3931 = vlaneseq
  %v3932 = vshrl.u32 %v3931, 7
  %v3933 = vsub.s32 %v3930, %v3932
  %v3934 = vrot.slane %v3813, %v3933
  %vm3935 = vcmask 458112
  %v3936 = vsel %vm3935, %v3934, %v3929
  %v3937 = vadd.s32 %v3890, 4294967240
  %v3938 = vlaneseq
  %v3939 = vshrl.u32 %v3938, 7
  %v3940 = vsub.s32 %v3937, %v3939
  %v3941 = vrot.slane %v3816, %v3940
  %vm3942 = vcmask 523712
  %v3943 = vsel %vm3942, %v3941, %v3936
  %v3944 = vadd.s32 %v3890, 4294967232
  %v3945 = vlaneseq
  %v3946 = vshrl.u32 %v3945, 7
  %v3947 = vsub.s32 %v3944, %v3946
  %v3948 = vrot.slane %v3819, %v3947
  %vm3949 = vcmask 589312
  %v3950 = vsel %vm3949, %v3948, %v3943
  %v3951 = vadd.s32 %v3890, 4294967224
  %v3952 = vlaneseq
  %v3953 = vshrl.u32 %v3952, 7
  %v3954 = vsub.s32 %v3951, %v3953
  %v3955 = vrot.slane %v3822, %v3954
  %vm3956 = vcmask 654912
  %v3957 = vsel %vm3956, %v3955, %v3950
  %v3958 = vadd.s32 %v3890, 4294967216
  %v3959 = vlaneseq
  %v3960 = vshrl.u32 %v3959, 7
  %v3961 = vsub.s32 %v3958, %v3960
  %v3962 = vrot.slane %v3825, %v3961
  %vm3963 = vcmask 720512
  %v3964 = vsel %vm3963, %v3962, %v3957
  %v3965 = vadd.s32 %v3890, 4294967208
  %v3966 = vlaneseq
  %v3967 = vshrl.u32 %v3966, 7
  %v3968 = vsub.s32 %v3965, %v3967
  %v3969 = vrot.slane %v3828, %v3968
  %vm3970 = vcmask 786112
  %v3971 = vsel %vm3970, %v3969, %v3964
  %v3972 = vadd.s32 %v3890, 4294967200
  %v3973 = vlaneseq
  %v3974 = vshrl.u32 %v3973, 7
  %v3975 = vsub.s32 %v3972, %v3974
  %v3976 = vrot.slane %v3831, %v3975
  %vm3977 = vcmask 851712
  %v3978 = vsel %vm3977, %v3976, %v3971
  %v3979 = vadd.s32 %v3890, 4294967192
  %v3980 = vlaneseq
  %v3981 = vshrl.u32 %v3980, 7
  %v3982 = vsub.s32 %v3979, %v3981
  %v3983 = vrot.slane %v3834, %v3982
  %vm3984 = vcmask 917312
  %v3985 = vsel %vm3984, %v3983, %v3978
  %v3986 = vadd.s32 %v3890, 4294967184
  %v3987 = vlaneseq
  %v3988 = vshrl.u32 %v3987, 7
  %v3989 = vsub.s32 %v3986, %v3988
  %v3990 = vrot.slane %v3837, %v3989
  %vm3991 = vcmask 982912
  %v3992 = vsel %vm3991, %v3990, %v3985
  %v3993 = vadd.s32 %v3890, 4294967176
  %v3994 = vlaneseq
  %v3995 = vshrl.u32 %v3994, 7
  %v3996 = vsub.s32 %v3993, %v3995
  %v3997 = vrot.slane %v3840, %v3996
  %vm3998 = vcmask 1048512
  %v3999 = vsel %vm3998, %v3997, %v3992
  %v4000 = vlaneseq
  %v4001 = vshrl.u32 %v4000, 7
  %v4002 = vsub.s32 %v3890, %v4001
  %v4003 = vrot.slane %v3843, %v4002
  %v4004 = vlaneseq
  %v4005 = vshrl.u32 %v4004, 7
  %v4006 = vsub.s32 %v3895, %v4005
  %v4007 = vrot.slane %v3846, %v4006
  %v4008 = vsel %vm3900, %v4007, %v4003
  %v4009 = vlaneseq
  %v4010 = vshrl.u32 %v4009, 7
  %v4011 = vsub.s32 %v3902, %v4010
  %v4012 = vrot.slane %v3849, %v4011
  %v4013 = vsel %vm3907, %v4012, %v4008
  %v4014 = vlaneseq
  %v4015 = vshrl.u32 %v4014, 7
  %v4016 = vsub.s32 %v3909, %v4015
  %v4017 = vrot.slane %v3852, %v4016
  %v4018 = vsel %vm3914, %v4017, %v4013
  %v4019 = vlaneseq
  %v4020 = vshrl.u32 %v4019, 7
  %v4021 = vsub.s32 %v3916, %v4020
  %v4022 = vrot.slane %v3855, %v4021
  %v4023 = vsel %vm3921, %v4022, %v4018
  %v4024 = vlaneseq
  %v4025 = vshrl.u32 %v4024, 7
  %v4026 = vsub.s32 %v3923, %v4025
  %v4027 = vrot.slane %v3858, %v4026
  %v4028 = vsel %vm3928, %v4027, %v4023
  %v4029 = vlaneseq
  %v4030 = vshrl.u32 %v4029, 7
  %v4031 = vsub.s32 %v3930, %v4030
  %v4032 = vrot.slane %v3861, %v4031
  %v4033 = vsel %vm3935, %v4032, %v4028
  %v4034 = vlaneseq
  %v4035 = vshrl.u32 %v4034, 7
  %v4036 = vsub.s32 %v3937, %v4035
  %v4037 = vrot.slane %v3864, %v4036
  %v4038 = vsel %vm3942, %v4037, %v4033
  %v4039 = vlaneseq
  %v4040 = vshrl.u32 %v4039, 7
  %v4041 = vsub.s32 %v3944, %v4040
  %v4042 = vrot.slane %v3867, %v4041
  %v4043 = vsel %vm3949, %v4042, %v4038
  %v4044 = vlaneseq
  %v4045 = vshrl.u32 %v4044, 7
  %v4046 = vsub.s32 %v3951, %v4045
  %v4047 = vrot.slane %v3870, %v4046
  %v4048 = vsel %vm3956, %v4047, %v4043
  %v4049 = vlaneseq
  %v4050 = vshrl.u32 %v4049, 7
  %v4051 = vsub.s32 %v3958, %v4050
  %v4052 = vrot.slane %v3873, %v4051
  %v4053 = vsel %vm3963, %v4052, %v4048
  %v4054 = vlaneseq
  %v4055 = vshrl.u32 %v4054, 7
  %v4056 = vsub.s32 %v3965, %v4055
  %v4057 = vrot.slane %v3876, %v4056
  %v4058 = vsel %vm3970, %v4057, %v4053
  %v4059 = vlaneseq
  %v4060 = vshrl.u32 %v4059, 7
  %v4061 = vsub.s32 %v3972, %v4060
  %v4062 = vrot.slane %v3879, %v4061
  %v4063 = vsel %vm3977, %v4062, %v4058
  %v4064 = vlaneseq
  %v4065 = vshrl.u32 %v4064, 7
  %v4066 = vsub.s32 %v3979, %v4065
  %v4067 = vrot.slane %v3882, %v4066
  %v4068 = vsel %vm3984, %v4067, %v4063
  %v4069 = vlaneseq
  %v4070 = vshrl.u32 %v4069, 7
  %v4071 = vsub.s32 %v3986, %v4070
  %v4072 = vrot.slane %v3885, %v4071
  %v4073 = vsel %vm3991, %v4072, %v4068
  %v4074 = vlaneseq
  %v4075 = vshrl.u32 %v4074, 7
  %v4076 = vsub.s32 %v3993, %v4075
  %v4077 = vrot.slane %v3888, %v4076
  %v4078 = vsel %vm3998, %v4077, %v4073
  %v4079 = vcombine.low %v3999, %v4078
  %v4081 = vunpack.c.l.s4 1966171168
  %v4082 = vunpack.c.0.s8 %v4081
  %v4083 = vlaneseq
  %v4084 = vshrl.u32 %v4083, 7
  %v4085 = vsub.s32 %v4082, %v4084
  %v4086 = vrot.slane %v4079, %v4085
  %v4088 = vunpack.c.l.s4 1966171168
  %v4089 = vunpack.c.0.s8 %v4088
  %v4090 = vlaneseq
  %v4091 = vshrl.u32 %v4090, 7
  %v4092 = vsub.s32 %v4089, %v4091
  %v4093 = vrot.slane %v4086, %v4092
  %v4095 = vlaneseq
  %vm4096 = vcmp.ge.s32.totalorder %v4095, 0
  %vm4097 = vcmp.lt.s32.totalorder %v4095, 256
  %vm4098 = vmand %vm4096, %vm4097
  %4099 = vst.msk [vmem:[%s7] sm:$0x3] %vm4098, %v4093
  // Predicated region
  $region30: #{softq_forward.1} parent=0 // pred_check
    _
  $region31: #{softq_forward.1} parent=0 // pred_check_branch
    %4101 = sbr.rel (0) target = $region33
  $region32: #{softq_forward.1} parent=0 // pred_region
    _
  $region33: #{softq_forward.1} parent=0 // pred_fallthru
    _
  // Predicated region
  $region34: #{softq_forward.1} parent=0 // pred_check
    _
  $region35: #{softq_forward.1} parent=0 // pred_check_branch
    %4103 = sbr.rel (0) target = $region37
  $region36: #{softq_forward.1} parent=0 // pred_region
    _
  $region37: #{softq_forward.1} parent=0 // pred_fallthru
    _

</llo_original>
